<compile_context>
chip_gen: v5e
topology: v5e:2x2
jax: 0.10.0
libtpu: 0.0.40
codegen_flags: <defaults>
</compile_context>

<pallas_src>
import functools

import jax
import jax.numpy as jnp
from jax.experimental import pallas as pl
from jax.experimental.pallas import tpu as pltpu  # noqa: F401


# ----------------------------------------------------------------------------
# Pallas kernels
# ----------------------------------------------------------------------------
def conv_relu_pool_kernel(cols_ref, w_ref, b_ref, o_ref, *, rows_per_tap):
    """Fused conv(im2col matmul) + 2x2 max-pool + bias + ReLU.

    cols_ref: (4*R, K)  tap-major rows: rows [t*R:(t+1)*R] hold pool-tap t,
                        R = N * pooled pixels, K = 9 * C_in
    w_ref:    (K, Cout)
    b_ref:    (1, Cout)
    o_ref:    (R, Cout)
    """
    r = rows_per_tap
    # Single MXU matmul over all 4 pool taps at once (one push/drain stream
    # instead of four tiny ones).
    y = jnp.dot(cols_ref[...], w_ref[...], preferred_element_type=jnp.float32)
    # 2x2 max-pool == elementwise max of the 4 contiguous row-slices.
    m = jnp.maximum(jnp.maximum(y[0:r], y[r:2 * r]),
                    jnp.maximum(y[2 * r:3 * r], y[3 * r:4 * r]))
    # Bias once after the max (tap-invariant), then ReLU.
    o_ref[...] = jnp.maximum(m + b_ref[...], 0.0).astype(o_ref.dtype)


def fc_fused_kernel(x_ref, w1_ref, b1_ref, w2_ref, b2_ref, o_ref):
    """Fused fc1 + ReLU + Dropout(eval identity) + fc2.

    x:(N,F) w1:(F,625) b1:(1,625) w2:(625,10) b2:(1,10) o:(N,10).
    The (N,625) intermediate stays on-chip (never written to HBM).
    """
    h = jnp.dot(x_ref[...], w1_ref[...], preferred_element_type=jnp.float32)
    h = jnp.maximum(h + b1_ref[...], 0.0)
    # Dropout(0.5): eval-mode identity (inference forward).
    y = jnp.dot(h, w2_ref[...], preferred_element_type=jnp.float32)
    o_ref[...] = (y + b2_ref[...]).astype(o_ref.dtype)


# ----------------------------------------------------------------------------
# Wrappers (minimal XLA glue: pad + static strided tap slices + concat)
# ----------------------------------------------------------------------------
def _im2col_pool_taps(x_nhwc):
    """Gather im2col taps for Conv2d(k=3, s=2, p=1) directly at the resolution
    of the subsequent MaxPool2d(2, 2), tap-major.

    Returns cols of shape (4*N*Hp*Wp, 9*Cin) where rows [t*R:(t+1)*R] belong to
    pool tap t (R = N*Hp*Wp) and K is ordered (ky, kx, cin), plus (Hp, Wp).
    """
    N, H, W, Cin = x_nhwc.shape
    Hc = (H + 2 - 3) // 2 + 1          # conv output size (stride 2, pad 1)
    Wc = (W + 2 - 3) // 2 + 1
    Hp, Wp = Hc // 2, Wc // 2          # after 2x2 max-pool
    xpad = jnp.pad(x_nhwc, ((0, 0), (1, 1), (1, 1), (0, 0)))

    # For pool pixel (hp, wp), pool tap (dy, dx), kernel tap (ky, kx) the
    # padded-input pixel is (4*hp + 2*dy + ky, 4*wp + 2*dx + kx): a static
    # stride-4 slice of the padded input per (oh, ow) = (2dy+ky, 2dx+kx).
    slice_cache = {}

    def tap(oh, ow):
        key = (oh, ow)
        if key not in slice_cache:
            slice_cache[key] = xpad[:,
                                    oh:oh + 4 * (Hp - 1) + 1:4,
                                    ow:ow + 4 * (Wp - 1) + 1:4, :]
        return slice_cache[key]

    pool_taps = []
    for dy in range(2):
        for dx in range(2):
            ktaps = [tap(2 * dy + ky, 2 * dx + kx)
                     for ky in range(3) for kx in range(3)]
            pool_taps.append(jnp.concatenate(ktaps, axis=-1))  # (N,Hp,Wp,9*Cin)
    cols = jnp.stack(pool_taps, axis=0)                        # (4,N,Hp,Wp,K)
    return cols.reshape(4 * N * Hp * Wp, 9 * Cin), (Hp, Wp)


def conv_relu_pool(x_nhwc, wmat, bmat):
    """Conv2d(k=3, s=2, p=1) + ReLU + MaxPool2d(2, 2) as one Pallas call.

    x_nhwc: (N, H, W, Cin); wmat: (9*Cin, Cout); bmat: (1, Cout)
    returns (N, Hp, Wp, Cout).
    """
    N = x_nhwc.shape[0]
    Cout = wmat.shape[1]
    cols, (Hp, Wp) = _im2col_pool_taps(x_nhwc)
    rows = N * Hp * Wp
    # Everything (cols, weights, output) fits VMEM at these shapes, so no grid:
    # a single invocation avoids per-step pipeline overhead entirely.
    out = pl.pallas_call(
        functools.partial(conv_relu_pool_kernel, rows_per_tap=rows),
        out_shape=jax.ShapeDtypeStruct((rows, Cout), jnp.float32),
    )(cols, wmat, bmat)
    return out.reshape(N, Hp, Wp, Cout)


def fc_fused(x, w1m, b1m, w2m, b2m):
    return pl.pallas_call(
        fc_fused_kernel,
        out_shape=jax.ShapeDtypeStruct((x.shape[0], w2m.shape[1]), jnp.float32),
    )(x, w1m, b1m, w2m, b2m)


@jax.jit
def cnn_forward(x_nchw, params):
    N, C, H, W = x_nchw.shape
    # Cin == 1: NCHW -> NHWC is a pure reshape (no data movement).
    if C == 1:
        h = x_nchw.reshape(N, H, W, 1)
    else:
        h = jnp.transpose(x_nchw, (0, 2, 3, 1))
    h = conv_relu_pool(h, params["w1m"], params["b1m"])      # (N, 16, 16, 32)
    h = conv_relu_pool(h, params["w2m"], params["b2m"])      # (N,  4,  4, 64)
    # Flatten in NHWC order; fc1's weight was pre-permuted (outside jit) so
    # this matches PyTorch's NCHW view(N, -1) exactly -- no transpose here.
    h = h.reshape(N, -1)
    return fc_fused(h, params["fc1_wm"], params["fc1_bm"],
                    params["fc2_wm"], params["fc2_bm"])       # (N, 10)


# ----------------------------------------------------------------------------
# Deterministic parameter init + one-time (outside-jit) weight re-layout
# ----------------------------------------------------------------------------
def init_params(key, flat_features):
    """PyTorch-style init of the raw (torch-layout) parameters."""
    ks = jax.random.split(key, 8)

    def u(k, shape, bound):
        return jax.random.uniform(k, shape, jnp.float32, -bound, bound)

    b1 = 1.0 / jnp.sqrt(1.0 * 9)
    b2 = 1.0 / jnp.sqrt(32.0 * 9)
    bl1 = 1.0 / jnp.sqrt(float(flat_features))
    bl2 = 1.0 / jnp.sqrt(625.0)
    xav = jnp.sqrt(6.0 / (625.0 + 10.0))   # xavier_uniform_ for layer4 weight
    return {
        "w1": u(ks[0], (32, 1, 3, 3), b1),
        "b1": u(ks[1], (32,), b1),
        "w2": u(ks[2], (64, 32, 3, 3), b2),
        "b2": u(ks[3], (64,), b2),
        "fc1_w": u(ks[4], (625, flat_features), bl1),
        "fc1_b": u(ks[5], (625,), bl1),
        "fc2_w": u(ks[6], (10, 625), xav),
        "fc2_b": u(ks[7], (10,), bl2),
    }


def prepare_params(raw, conv_out_chw):
    """One-time re-layout (outside jit) of torch-style params into the
    matmul-friendly layouts the kernels consume; the jitted forward graph
    therefore contains no weight transposes."""
    C, Hp, Wp = conv_out_chw

    def conv_w(w):   # (Cout, Cin, 3, 3) -> (9*Cin, Cout), K ordered (ky,kx,cin)
        cin, cout = w.shape[1], w.shape[0]
        return jnp.transpose(w, (2, 3, 1, 0)).reshape(9 * cin, cout)

    # fc1 weight: (625, C*Hp*Wp) with inputs in NCHW order ->
    # (Hp*Wp*C, 625) with inputs in NHWC order (folds the flatten permutation
    # into the weight so the forward pass needs only a reshape).
    fc1_w = raw["fc1_w"].reshape(-1, C, Hp, Wp)
    fc1_wm = jnp.transpose(fc1_w, (2, 3, 1, 0)).reshape(Hp * Wp * C, -1)

    return {
        "w1m": conv_w(raw["w1"]), "b1m": raw["b1"].reshape(1, -1),
        "w2m": conv_w(raw["w2"]), "b2m": raw["b2"].reshape(1, -1),
        "fc1_wm": fc1_wm, "fc1_bm": raw["fc1_b"].reshape(1, -1),
        "fc2_wm": jnp.transpose(raw["fc2_w"]),
        "fc2_bm": raw["fc2_b"].reshape(1, -1),
    }


if __name__ == "__main__":
    key = jax.random.PRNGKey(0)
    k_x, k_p = jax.random.split(key)

    N, H, W = 2, 64, 64                    # small NCHW input, 1 channel
    x = jax.random.normal(k_x, (N, 1, H, W), jnp.float32)

    # flatten size implied by the conv stack for a 64x64 input: 64 * 4 * 4
    raw = init_params(k_p, flat_features=64 * 4 * 4)
    params = prepare_params(raw, conv_out_chw=(64, 4, 4))

    out = cnn_forward(x, params)
    out = jax.block_until_ready(out)
    assert out.shape == (N, 10) and out.dtype == jnp.float32
    print("KERNEL_OK")
</pallas_src>

<mosaic_0001>
module attributes {stable_mosaic.version = 11 : i64} {
  func.func @conv_relu_pool_kernel(%arg0: memref<2048x9xf32, #tpu.memory_space<vmem>>, %arg1: memref<9x32xf32, #tpu.memory_space<vmem>>, %arg2: memref<1x32xf32, #tpu.memory_space<vmem>>, %arg3: memref<512x32xf32, #tpu.memory_space<vmem>>) attributes {dimension_semantics = [], scalar_prefetch = 0 : i64, scratch_operands = 0 : i64, tpu.core_type = #tpu.core_type<tc>} {
    %c0 = arith.constant 0 : index
    %c0_0 = arith.constant 0 : index
    %0 = vector.load %arg0[%c0, %c0_0] : memref<2048x9xf32, #tpu.memory_space<vmem>>, vector<2048x9xf32>
    %c0_1 = arith.constant 0 : index
    %c0_2 = arith.constant 0 : index
    %1 = vector.load %arg1[%c0_1, %c0_2] : memref<9x32xf32, #tpu.memory_space<vmem>>, vector<9x32xf32>
    %cst = arith.constant dense<0.000000e+00> : vector<2048x32xf32>
    %2 = tpu.matmul %0, %1, %cst {dimension_numbers = #tpu.dot_dimension_numbers<[1], [0], [0], [1], [0, 0, 1, 1], [], []>} : vector<2048x9xf32>, vector<9x32xf32>, vector<2048x32xf32> -> vector<2048x32xf32>
    %3 = vector.extract_strided_slice %2 {offsets = [0, 0], sizes = [512, 32], strides = [1, 1]} : vector<2048x32xf32> to vector<512x32xf32>
    %4 = vector.extract_strided_slice %2 {offsets = [512, 0], sizes = [512, 32], strides = [1, 1]} : vector<2048x32xf32> to vector<512x32xf32>
    %5 = arith.maximumf %3, %4 : vector<512x32xf32>
    %6 = vector.extract_strided_slice %2 {offsets = [1024, 0], sizes = [512, 32], strides = [1, 1]} : vector<2048x32xf32> to vector<512x32xf32>
    %7 = vector.extract_strided_slice %2 {offsets = [1536, 0], sizes = [512, 32], strides = [1, 1]} : vector<2048x32xf32> to vector<512x32xf32>
    %8 = arith.maximumf %6, %7 : vector<512x32xf32>
    %9 = arith.maximumf %5, %8 : vector<512x32xf32>
    %c0_3 = arith.constant 0 : index
    %c0_4 = arith.constant 0 : index
    %10 = vector.load %arg2[%c0_3, %c0_4] : memref<1x32xf32, #tpu.memory_space<vmem>>, vector<1x32xf32>
    %11 = vector.broadcast %10 : vector<1x32xf32> to vector<512x32xf32>
    %12 = arith.addf %9, %11 : vector<512x32xf32>
    %cst_5 = arith.constant 0.000000e+00 : f32
    %13 = vector.broadcast %cst_5 : f32 to vector<512x32xf32>
    %14 = arith.maximumf %12, %13 : vector<512x32xf32>
    %c0_6 = arith.constant 0 : index
    %c0_7 = arith.constant 0 : index
    %15 = vector.load %arg3[%c0_6, %c0_7] : memref<512x32xf32, #tpu.memory_space<vmem>>, vector<512x32xf32>
    tpu.vector_store %arg3[%c0_6, %c0_7], %14 {strides = array<i32>} : memref<512x32xf32, #tpu.memory_space<vmem>>, vector<512x32xf32>,
    return
  }
}

module attributes {stable_mosaic.version = 11 : i64} {
  func.func @conv_relu_pool_kernel(%arg0: memref<128x288xf32, #tpu.memory_space<vmem>>, %arg1: memref<288x64xf32, #tpu.memory_space<vmem>>, %arg2: memref<1x64xf32, #tpu.memory_space<vmem>>, %arg3: memref<32x64xf32, #tpu.memory_space<vmem>>) attributes {dimension_semantics = [], scalar_prefetch = 0 : i64, scratch_operands = 0 : i64, tpu.core_type = #tpu.core_type<tc>} {
    %c0 = arith.constant 0 : index
    %c0_0 = arith.constant 0 : index
    %0 = vector.load %arg0[%c0, %c0_0] : memref<128x288xf32, #tpu.memory_space<vmem>>, vector<128x288xf32>
    %c0_1 = arith.constant 0 : index
    %c0_2 = arith.constant 0 : index
    %1 = vector.load %arg1[%c0_1, %c0_2] : memref<288x64xf32, #tpu.memory_space<vmem>>, vector<288x64xf32>
    %cst = arith.constant dense<0.000000e+00> : vector<128x64xf32>
    %2 = tpu.matmul %0, %1, %cst {dimension_numbers = #tpu.dot_dimension_numbers<[1], [0], [0], [1], [0, 0, 1, 1], [], []>} : vector<128x288xf32>, vector<288x64xf32>, vector<128x64xf32> -> vector<128x64xf32>
    %3 = vector.extract_strided_slice %2 {offsets = [0, 0], sizes = [32, 64], strides = [1, 1]} : vector<128x64xf32> to vector<32x64xf32>
    %4 = vector.extract_strided_slice %2 {offsets = [32, 0], sizes = [32, 64], strides = [1, 1]} : vector<128x64xf32> to vector<32x64xf32>
    %5 = arith.maximumf %3, %4 : vector<32x64xf32>
    %6 = vector.extract_strided_slice %2 {offsets = [64, 0], sizes = [32, 64], strides = [1, 1]} : vector<128x64xf32> to vector<32x64xf32>
    %7 = vector.extract_strided_slice %2 {offsets = [96, 0], sizes = [32, 64], strides = [1, 1]} : vector<128x64xf32> to vector<32x64xf32>
    %8 = arith.maximumf %6, %7 : vector<32x64xf32>
    %9 = arith.maximumf %5, %8 : vector<32x64xf32>
    %c0_3 = arith.constant 0 : index
    %c0_4 = arith.constant 0 : index
    %10 = vector.load %arg2[%c0_3, %c0_4] : memref<1x64xf32, #tpu.memory_space<vmem>>, vector<1x64xf32>
    %11 = vector.broadcast %10 : vector<1x64xf32> to vector<32x64xf32>
    %12 = arith.addf %9, %11 : vector<32x64xf32>
    %cst_5 = arith.constant 0.000000e+00 : f32
    %13 = vector.broadcast %cst_5 : f32 to vector<32x64xf32>
    %14 = arith.maximumf %12, %13 : vector<32x64xf32>
    %c0_6 = arith.constant 0 : index
    %c0_7 = arith.constant 0 : index
    %15 = vector.load %arg3[%c0_6, %c0_7] : memref<32x64xf32, #tpu.memory_space<vmem>>, vector<32x64xf32>
    tpu.vector_store %arg3[%c0_6, %c0_7], %14 {strides = array<i32>} : memref<32x64xf32, #tpu.memory_space<vmem>>, vector<32x64xf32>,
    return
  }
}

module attributes {stable_mosaic.version = 11 : i64} {
  func.func @fc_fused_kernel(%arg0: memref<2x1024xf32, #tpu.memory_space<vmem>>, %arg1: memref<1024x625xf32, #tpu.memory_space<vmem>>, %arg2: memref<1x625xf32, #tpu.memory_space<vmem>>, %arg3: memref<625x10xf32, #tpu.memory_space<vmem>>, %arg4: memref<1x10xf32, #tpu.memory_space<vmem>>, %arg5: memref<2x10xf32, #tpu.memory_space<vmem>>) attributes {dimension_semantics = [], scalar_prefetch = 0 : i64, scratch_operands = 0 : i64, tpu.core_type = #tpu.core_type<tc>} {
    %c0 = arith.constant 0 : index
    %c0_0 = arith.constant 0 : index
    %0 = vector.load %arg0[%c0, %c0_0] : memref<2x1024xf32, #tpu.memory_space<vmem>>, vector<2x1024xf32>
    %c0_1 = arith.constant 0 : index
    %c0_2 = arith.constant 0 : index
    %1 = vector.load %arg1[%c0_1, %c0_2] : memref<1024x625xf32, #tpu.memory_space<vmem>>, vector<1024x625xf32>
    %cst = arith.constant dense<0.000000e+00> : vector<2x625xf32>
    %2 = tpu.matmul %0, %1, %cst {dimension_numbers = #tpu.dot_dimension_numbers<[1], [0], [0], [1], [0, 0, 1, 1], [], []>} : vector<2x1024xf32>, vector<1024x625xf32>, vector<2x625xf32> -> vector<2x625xf32>
    %c0_3 = arith.constant 0 : index
    %c0_4 = arith.constant 0 : index
    %3 = vector.load %arg2[%c0_3, %c0_4] : memref<1x625xf32, #tpu.memory_space<vmem>>, vector<1x625xf32>
    %4 = vector.broadcast %3 : vector<1x625xf32> to vector<2x625xf32>
    %5 = arith.addf %2, %4 : vector<2x625xf32>
    %cst_5 = arith.constant 0.000000e+00 : f32
    %6 = vector.broadcast %cst_5 : f32 to vector<2x625xf32>
    %7 = arith.maximumf %5, %6 : vector<2x625xf32>
    %c0_6 = arith.constant 0 : index
    %c0_7 = arith.constant 0 : index
    %8 = vector.load %arg3[%c0_6, %c0_7] : memref<625x10xf32, #tpu.memory_space<vmem>>, vector<625x10xf32>
    %cst_8 = arith.constant dense<0.000000e+00> : vector<2x10xf32>
    %9 = tpu.matmul %7, %8, %cst_8 {dimension_numbers = #tpu.dot_dimension_numbers<[1], [0], [0], [1], [0, 0, 1, 1], [], []>} : vector<2x625xf32>, vector<625x10xf32>, vector<2x10xf32> -> vector<2x10xf32>
    %c0_9 = arith.constant 0 : index
    %c0_10 = arith.constant 0 : index
    %10 = vector.load %arg4[%c0_9, %c0_10] : memref<1x10xf32, #tpu.memory_space<vmem>>, vector<1x10xf32>
    %11 = vector.broadcast %10 : vector<1x10xf32> to vector<2x10xf32>
    %12 = arith.addf %9, %11 : vector<2x10xf32>
    %c0_11 = arith.constant 0 : index
    %c0_12 = arith.constant 0 : index
    %13 = vector.load %arg5[%c0_11, %c0_12] : memref<2x10xf32, #tpu.memory_space<vmem>>, vector<2x10xf32>
    tpu.vector_store %arg5[%c0_11, %c0_12], %12 {strides = array<i32>} : memref<2x10xf32, #tpu.memory_space<vmem>>, vector<2x10xf32>,
    return
  }
}

</mosaic_0001>

<llo_original>
// kernel: cnn_forward.3
$region0: #{cnn_forward.3}
  #allocation0 [shape = 'u32[]', space=smem, size = 0x4, offset = 0x4, fixed_abs, tag = 'smem constant byte address 0x4 - core index']
  #allocation1 [shape = 'u32[72,128]{1,0:T(1,128)}', space=vmem, size = 0x9000, scoped, tag = 'internal scratch']
  %s0 = inlined_call_operand.vmem [shape: f32[2048,9], index: 0, kind: input, shape index: {}]
  %s1 = inlined_call_operand.vmem [shape: f32[9,32], index: 1, kind: input, shape index: {}]
  %s2 = inlined_call_operand.vmem [shape: f32[1,32], index: 2, kind: input, shape index: {}]
  %s3 = inlined_call_operand.vmem [shape: f32[512,32], index: 3, kind: output, shape index: {}]
  %s4 = sld [smem:[#allocation0]]
  $region22: #{cnn_forward.3} parent=0
    _
  %s6 = ssub.s32 1, %s4
  %s7 = scalar_select 0, %s6, %s4
  // Predicated region
  $region2: #{cnn_forward.3} parent=0 // pred_check
    _
  $region3: #{cnn_forward.3} parent=0 // pred_check_branch
    %9 = sbr.rel (0) target = $region5
  $region4: #{cnn_forward.3} parent=0 // pred_region
    _
  $region5: #{cnn_forward.3} parent=0 // pred_fallthru
    _
  // Predicated region
  $region6: #{cnn_forward.3} parent=0 // pred_check
    _
  $region7: #{cnn_forward.3} parent=0 // pred_check_branch
    %11 = sbr.rel (0) target = $region9
  $region8: #{cnn_forward.3} parent=0 // pred_region
    _
  $region9: #{cnn_forward.3} parent=0 // pred_fallthru
    _
  // Predicated region
  $region10: #{cnn_forward.3} parent=0 // pred_check
    _
  $region11: #{cnn_forward.3} parent=0 // pred_check_branch
    %13 = sbr.rel (0) target = $region13
  $region12: #{cnn_forward.3} parent=0 // pred_region
    _
  $region13: #{cnn_forward.3} parent=0 // pred_fallthru
    _
  %v14 = vld [vmem:[%s0] sm:$0xff]
  %v15 = vld [vmem:[%s0 + $0x8] sm:$0xff]
  %v16 = vld [vmem:[%s0 + $0x10] sm:$0xff]
  %v17 = vld [vmem:[%s0 + $0x18] sm:$0xff]
  %v18 = vld [vmem:[%s0 + $0x20] sm:$0xff]
  %v19 = vld [vmem:[%s0 + $0x28] sm:$0xff]
  %v20 = vld [vmem:[%s0 + $0x30] sm:$0xff]
  %v21 = vld [vmem:[%s0 + $0x38] sm:$0xff]
  %v22 = vld [vmem:[%s0 + $0x40] sm:$0xff]
  %v23 = vld [vmem:[%s0 + $0x48] sm:$0xff]
  %v24 = vld [vmem:[%s0 + $0x50] sm:$0xff]
  %v25 = vld [vmem:[%s0 + $0x58] sm:$0xff]
  %v26 = vld [vmem:[%s0 + $0x60] sm:$0xff]
  %v27 = vld [vmem:[%s0 + $0x68] sm:$0xff]
  %v28 = vld [vmem:[%s0 + $0x70] sm:$0xff]
  %v29 = vld [vmem:[%s0 + $0x78] sm:$0xff]
  %v30 = vld [vmem:[%s0 + $0x80] sm:$0xff]
  %v31 = vld [vmem:[%s0 + $0x88] sm:$0xff]
  %v32 = vld [vmem:[%s0 + $0x90] sm:$0xff]
  %v33 = vld [vmem:[%s0 + $0x98] sm:$0xff]
  %v34 = vld [vmem:[%s0 + $0xa0] sm:$0xff]
  %v35 = vld [vmem:[%s0 + $0xa8] sm:$0xff]
  %v36 = vld [vmem:[%s0 + $0xb0] sm:$0xff]
  %v37 = vld [vmem:[%s0 + $0xb8] sm:$0xff]
  %v38 = vld [vmem:[%s0 + $0xc0] sm:$0xff]
  %v39 = vld [vmem:[%s0 + $0xc8] sm:$0xff]
  %v40 = vld [vmem:[%s0 + $0xd0] sm:$0xff]
  %v41 = vld [vmem:[%s0 + $0xd8] sm:$0xff]
  %v42 = vld [vmem:[%s0 + $0xe0] sm:$0xff]
  %v43 = vld [vmem:[%s0 + $0xe8] sm:$0xff]
  %v44 = vld [vmem:[%s0 + $0xf0] sm:$0xff]
  %v45 = vld [vmem:[%s0 + $0xf8] sm:$0xff]
  %v46 = vld [vmem:[%s0 + $0x100] sm:$0xff]
  %v47 = vld [vmem:[%s0 + $0x108] sm:$0xff]
  %v48 = vld [vmem:[%s0 + $0x110] sm:$0xff]
  %v49 = vld [vmem:[%s0 + $0x118] sm:$0xff]
  %v50 = vld [vmem:[%s0 + $0x120] sm:$0xff]
  %v51 = vld [vmem:[%s0 + $0x128] sm:$0xff]
  %v52 = vld [vmem:[%s0 + $0x130] sm:$0xff]
  %v53 = vld [vmem:[%s0 + $0x138] sm:$0xff]
  %v54 = vld [vmem:[%s0 + $0x140] sm:$0xff]
  %v55 = vld [vmem:[%s0 + $0x148] sm:$0xff]
  %v56 = vld [vmem:[%s0 + $0x150] sm:$0xff]
  %v57 = vld [vmem:[%s0 + $0x158] sm:$0xff]
  %v58 = vld [vmem:[%s0 + $0x160] sm:$0xff]
  %v59 = vld [vmem:[%s0 + $0x168] sm:$0xff]
  %v60 = vld [vmem:[%s0 + $0x170] sm:$0xff]
  %v61 = vld [vmem:[%s0 + $0x178] sm:$0xff]
  %v62 = vld [vmem:[%s0 + $0x180] sm:$0xff]
  %v63 = vld [vmem:[%s0 + $0x188] sm:$0xff]
  %v64 = vld [vmem:[%s0 + $0x190] sm:$0xff]
  %v65 = vld [vmem:[%s0 + $0x198] sm:$0xff]
  %v66 = vld [vmem:[%s0 + $0x1a0] sm:$0xff]
  %v67 = vld [vmem:[%s0 + $0x1a8] sm:$0xff]
  %v68 = vld [vmem:[%s0 + $0x1b0] sm:$0xff]
  %v69 = vld [vmem:[%s0 + $0x1b8] sm:$0xff]
  %v70 = vld [vmem:[%s0 + $0x1c0] sm:$0xff]
  %v71 = vld [vmem:[%s0 + $0x1c8] sm:$0xff]
  %v72 = vld [vmem:[%s0 + $0x1d0] sm:$0xff]
  %v73 = vld [vmem:[%s0 + $0x1d8] sm:$0xff]
  %v74 = vld [vmem:[%s0 + $0x1e0] sm:$0xff]
  %v75 = vld [vmem:[%s0 + $0x1e8] sm:$0xff]
  %v76 = vld [vmem:[%s0 + $0x1f0] sm:$0xff]
  %v77 = vld [vmem:[%s0 + $0x1f8] sm:$0xff]
  %v78 = vld [vmem:[%s0 + $0x200] sm:$0xff]
  %v79 = vld [vmem:[%s0 + $0x208] sm:$0xff]
  %v80 = vld [vmem:[%s0 + $0x210] sm:$0xff]
  %v81 = vld [vmem:[%s0 + $0x218] sm:$0xff]
  %v82 = vld [vmem:[%s0 + $0x220] sm:$0xff]
  %v83 = vld [vmem:[%s0 + $0x228] sm:$0xff]
  %v84 = vld [vmem:[%s0 + $0x230] sm:$0xff]
  %v85 = vld [vmem:[%s0 + $0x238] sm:$0xff]
  %v86 = vld [vmem:[%s0 + $0x240] sm:$0xff]
  %v87 = vld [vmem:[%s0 + $0x248] sm:$0xff]
  %v88 = vld [vmem:[%s0 + $0x250] sm:$0xff]
  %v89 = vld [vmem:[%s0 + $0x258] sm:$0xff]
  %v90 = vld [vmem:[%s0 + $0x260] sm:$0xff]
  %v91 = vld [vmem:[%s0 + $0x268] sm:$0xff]
  %v92 = vld [vmem:[%s0 + $0x270] sm:$0xff]
  %v93 = vld [vmem:[%s0 + $0x278] sm:$0xff]
  %v94 = vld [vmem:[%s0 + $0x280] sm:$0xff]
  %v95 = vld [vmem:[%s0 + $0x288] sm:$0xff]
  %v96 = vld [vmem:[%s0 + $0x290] sm:$0xff]
  %v97 = vld [vmem:[%s0 + $0x298] sm:$0xff]
  %v98 = vld [vmem:[%s0 + $0x2a0] sm:$0xff]
  %v99 = vld [vmem:[%s0 + $0x2a8] sm:$0xff]
  %v100 = vld [vmem:[%s0 + $0x2b0] sm:$0xff]
  %v101 = vld [vmem:[%s0 + $0x2b8] sm:$0xff]
  %v102 = vld [vmem:[%s0 + $0x2c0] sm:$0xff]
  %v103 = vld [vmem:[%s0 + $0x2c8] sm:$0xff]
  %v104 = vld [vmem:[%s0 + $0x2d0] sm:$0xff]
  %v105 = vld [vmem:[%s0 + $0x2d8] sm:$0xff]
  %v106 = vld [vmem:[%s0 + $0x2e0] sm:$0xff]
  %v107 = vld [vmem:[%s0 + $0x2e8] sm:$0xff]
  %v108 = vld [vmem:[%s0 + $0x2f0] sm:$0xff]
  %v109 = vld [vmem:[%s0 + $0x2f8] sm:$0xff]
  %v110 = vld [vmem:[%s0 + $0x300] sm:$0xff]
  %v111 = vld [vmem:[%s0 + $0x308] sm:$0xff]
  %v112 = vld [vmem:[%s0 + $0x310] sm:$0xff]
  %v113 = vld [vmem:[%s0 + $0x318] sm:$0xff]
  %v114 = vld [vmem:[%s0 + $0x320] sm:$0xff]
  %v115 = vld [vmem:[%s0 + $0x328] sm:$0xff]
  %v116 = vld [vmem:[%s0 + $0x330] sm:$0xff]
  %v117 = vld [vmem:[%s0 + $0x338] sm:$0xff]
  %v118 = vld [vmem:[%s0 + $0x340] sm:$0xff]
  %v119 = vld [vmem:[%s0 + $0x348] sm:$0xff]
  %v120 = vld [vmem:[%s0 + $0x350] sm:$0xff]
  %v121 = vld [vmem:[%s0 + $0x358] sm:$0xff]
  %v122 = vld [vmem:[%s0 + $0x360] sm:$0xff]
  %v123 = vld [vmem:[%s0 + $0x368] sm:$0xff]
  %v124 = vld [vmem:[%s0 + $0x370] sm:$0xff]
  %v125 = vld [vmem:[%s0 + $0x378] sm:$0xff]
  %v126 = vld [vmem:[%s0 + $0x380] sm:$0xff]
  %v127 = vld [vmem:[%s0 + $0x388] sm:$0xff]
  %v128 = vld [vmem:[%s0 + $0x390] sm:$0xff]
  %v129 = vld [vmem:[%s0 + $0x398] sm:$0xff]
  %v130 = vld [vmem:[%s0 + $0x3a0] sm:$0xff]
  %v131 = vld [vmem:[%s0 + $0x3a8] sm:$0xff]
  %v132 = vld [vmem:[%s0 + $0x3b0] sm:$0xff]
  %v133 = vld [vmem:[%s0 + $0x3b8] sm:$0xff]
  %v134 = vld [vmem:[%s0 + $0x3c0] sm:$0xff]
  %v135 = vld [vmem:[%s0 + $0x3c8] sm:$0xff]
  %v136 = vld [vmem:[%s0 + $0x3d0] sm:$0xff]
  %v137 = vld [vmem:[%s0 + $0x3d8] sm:$0xff]
  %v138 = vld [vmem:[%s0 + $0x3e0] sm:$0xff]
  %v139 = vld [vmem:[%s0 + $0x3e8] sm:$0xff]
  %v140 = vld [vmem:[%s0 + $0x3f0] sm:$0xff]
  %v141 = vld [vmem:[%s0 + $0x3f8] sm:$0xff]
  %v142 = vld [vmem:[%s0 + $0x400] sm:$0xff]
  %v143 = vld [vmem:[%s0 + $0x408] sm:$0xff]
  %v144 = vld [vmem:[%s0 + $0x410] sm:$0xff]
  %v145 = vld [vmem:[%s0 + $0x418] sm:$0xff]
  %v146 = vld [vmem:[%s0 + $0x420] sm:$0xff]
  %v147 = vld [vmem:[%s0 + $0x428] sm:$0xff]
  %v148 = vld [vmem:[%s0 + $0x430] sm:$0xff]
  %v149 = vld [vmem:[%s0 + $0x438] sm:$0xff]
  %v150 = vld [vmem:[%s0 + $0x440] sm:$0xff]
  %v151 = vld [vmem:[%s0 + $0x448] sm:$0xff]
  %v152 = vld [vmem:[%s0 + $0x450] sm:$0xff]
  %v153 = vld [vmem:[%s0 + $0x458] sm:$0xff]
  %v154 = vld [vmem:[%s0 + $0x460] sm:$0xff]
  %v155 = vld [vmem:[%s0 + $0x468] sm:$0xff]
  %v156 = vld [vmem:[%s0 + $0x470] sm:$0xff]
  %v157 = vld [vmem:[%s0 + $0x478] sm:$0xff]
  %v158 = vld [vmem:[%s0 + $0x480] sm:$0xff]
  %v159 = vld [vmem:[%s0 + $0x488] sm:$0xff]
  %v160 = vld [vmem:[%s0 + $0x490] sm:$0xff]
  %v161 = vld [vmem:[%s0 + $0x498] sm:$0xff]
  %v162 = vld [vmem:[%s0 + $0x4a0] sm:$0xff]
  %v163 = vld [vmem:[%s0 + $0x4a8] sm:$0xff]
  %v164 = vld [vmem:[%s0 + $0x4b0] sm:$0xff]
  %v165 = vld [vmem:[%s0 + $0x4b8] sm:$0xff]
  %v166 = vld [vmem:[%s0 + $0x4c0] sm:$0xff]
  %v167 = vld [vmem:[%s0 + $0x4c8] sm:$0xff]
  %v168 = vld [vmem:[%s0 + $0x4d0] sm:$0xff]
  %v169 = vld [vmem:[%s0 + $0x4d8] sm:$0xff]
  %v170 = vld [vmem:[%s0 + $0x4e0] sm:$0xff]
  %v171 = vld [vmem:[%s0 + $0x4e8] sm:$0xff]
  %v172 = vld [vmem:[%s0 + $0x4f0] sm:$0xff]
  %v173 = vld [vmem:[%s0 + $0x4f8] sm:$0xff]
  %v174 = vld [vmem:[%s0 + $0x500] sm:$0xff]
  %v175 = vld [vmem:[%s0 + $0x508] sm:$0xff]
  %v176 = vld [vmem:[%s0 + $0x510] sm:$0xff]
  %v177 = vld [vmem:[%s0 + $0x518] sm:$0xff]
  %v178 = vld [vmem:[%s0 + $0x520] sm:$0xff]
  %v179 = vld [vmem:[%s0 + $0x528] sm:$0xff]
  %v180 = vld [vmem:[%s0 + $0x530] sm:$0xff]
  %v181 = vld [vmem:[%s0 + $0x538] sm:$0xff]
  %v182 = vld [vmem:[%s0 + $0x540] sm:$0xff]
  %v183 = vld [vmem:[%s0 + $0x548] sm:$0xff]
  %v184 = vld [vmem:[%s0 + $0x550] sm:$0xff]
  %v185 = vld [vmem:[%s0 + $0x558] sm:$0xff]
  %v186 = vld [vmem:[%s0 + $0x560] sm:$0xff]
  %v187 = vld [vmem:[%s0 + $0x568] sm:$0xff]
  %v188 = vld [vmem:[%s0 + $0x570] sm:$0xff]
  %v189 = vld [vmem:[%s0 + $0x578] sm:$0xff]
  %v190 = vld [vmem:[%s0 + $0x580] sm:$0xff]
  %v191 = vld [vmem:[%s0 + $0x588] sm:$0xff]
  %v192 = vld [vmem:[%s0 + $0x590] sm:$0xff]
  %v193 = vld [vmem:[%s0 + $0x598] sm:$0xff]
  %v194 = vld [vmem:[%s0 + $0x5a0] sm:$0xff]
  %v195 = vld [vmem:[%s0 + $0x5a8] sm:$0xff]
  %v196 = vld [vmem:[%s0 + $0x5b0] sm:$0xff]
  %v197 = vld [vmem:[%s0 + $0x5b8] sm:$0xff]
  %v198 = vld [vmem:[%s0 + $0x5c0] sm:$0xff]
  %v199 = vld [vmem:[%s0 + $0x5c8] sm:$0xff]
  %v200 = vld [vmem:[%s0 + $0x5d0] sm:$0xff]
  %v201 = vld [vmem:[%s0 + $0x5d8] sm:$0xff]
  %v202 = vld [vmem:[%s0 + $0x5e0] sm:$0xff]
  %v203 = vld [vmem:[%s0 + $0x5e8] sm:$0xff]
  %v204 = vld [vmem:[%s0 + $0x5f0] sm:$0xff]
  %v205 = vld [vmem:[%s0 + $0x5f8] sm:$0xff]
  %v206 = vld [vmem:[%s0 + $0x600] sm:$0xff]
  %v207 = vld [vmem:[%s0 + $0x608] sm:$0xff]
  %v208 = vld [vmem:[%s0 + $0x610] sm:$0xff]
  %v209 = vld [vmem:[%s0 + $0x618] sm:$0xff]
  %v210 = vld [vmem:[%s0 + $0x620] sm:$0xff]
  %v211 = vld [vmem:[%s0 + $0x628] sm:$0xff]
  %v212 = vld [vmem:[%s0 + $0x630] sm:$0xff]
  %v213 = vld [vmem:[%s0 + $0x638] sm:$0xff]
  %v214 = vld [vmem:[%s0 + $0x640] sm:$0xff]
  %v215 = vld [vmem:[%s0 + $0x648] sm:$0xff]
  %v216 = vld [vmem:[%s0 + $0x650] sm:$0xff]
  %v217 = vld [vmem:[%s0 + $0x658] sm:$0xff]
  %v218 = vld [vmem:[%s0 + $0x660] sm:$0xff]
  %v219 = vld [vmem:[%s0 + $0x668] sm:$0xff]
  %v220 = vld [vmem:[%s0 + $0x670] sm:$0xff]
  %v221 = vld [vmem:[%s0 + $0x678] sm:$0xff]
  %v222 = vld [vmem:[%s0 + $0x680] sm:$0xff]
  %v223 = vld [vmem:[%s0 + $0x688] sm:$0xff]
  %v224 = vld [vmem:[%s0 + $0x690] sm:$0xff]
  %v225 = vld [vmem:[%s0 + $0x698] sm:$0xff]
  %v226 = vld [vmem:[%s0 + $0x6a0] sm:$0xff]
  %v227 = vld [vmem:[%s0 + $0x6a8] sm:$0xff]
  %v228 = vld [vmem:[%s0 + $0x6b0] sm:$0xff]
  %v229 = vld [vmem:[%s0 + $0x6b8] sm:$0xff]
  %v230 = vld [vmem:[%s0 + $0x6c0] sm:$0xff]
  %v231 = vld [vmem:[%s0 + $0x6c8] sm:$0xff]
  %v232 = vld [vmem:[%s0 + $0x6d0] sm:$0xff]
  %v233 = vld [vmem:[%s0 + $0x6d8] sm:$0xff]
  %v234 = vld [vmem:[%s0 + $0x6e0] sm:$0xff]
  %v235 = vld [vmem:[%s0 + $0x6e8] sm:$0xff]
  %v236 = vld [vmem:[%s0 + $0x6f0] sm:$0xff]
  %v237 = vld [vmem:[%s0 + $0x6f8] sm:$0xff]
  %v238 = vld [vmem:[%s0 + $0x700] sm:$0xff]
  %v239 = vld [vmem:[%s0 + $0x708] sm:$0xff]
  %v240 = vld [vmem:[%s0 + $0x710] sm:$0xff]
  %v241 = vld [vmem:[%s0 + $0x718] sm:$0xff]
  %v242 = vld [vmem:[%s0 + $0x720] sm:$0xff]
  %v243 = vld [vmem:[%s0 + $0x728] sm:$0xff]
  %v244 = vld [vmem:[%s0 + $0x730] sm:$0xff]
  %v245 = vld [vmem:[%s0 + $0x738] sm:$0xff]
  %v246 = vld [vmem:[%s0 + $0x740] sm:$0xff]
  %v247 = vld [vmem:[%s0 + $0x748] sm:$0xff]
  %v248 = vld [vmem:[%s0 + $0x750] sm:$0xff]
  %v249 = vld [vmem:[%s0 + $0x758] sm:$0xff]
  %v250 = vld [vmem:[%s0 + $0x760] sm:$0xff]
  %v251 = vld [vmem:[%s0 + $0x768] sm:$0xff]
  %v252 = vld [vmem:[%s0 + $0x770] sm:$0xff]
  %v253 = vld [vmem:[%s0 + $0x778] sm:$0xff]
  %v254 = vld [vmem:[%s0 + $0x780] sm:$0xff]
  %v255 = vld [vmem:[%s0 + $0x788] sm:$0xff]
  %v256 = vld [vmem:[%s0 + $0x790] sm:$0xff]
  %v257 = vld [vmem:[%s0 + $0x798] sm:$0xff]
  %v258 = vld [vmem:[%s0 + $0x7a0] sm:$0xff]
  %v259 = vld [vmem:[%s0 + $0x7a8] sm:$0xff]
  %v260 = vld [vmem:[%s0 + $0x7b0] sm:$0xff]
  %v261 = vld [vmem:[%s0 + $0x7b8] sm:$0xff]
  %v262 = vld [vmem:[%s0 + $0x7c0] sm:$0xff]
  %v263 = vld [vmem:[%s0 + $0x7c8] sm:$0xff]
  %v264 = vld [vmem:[%s0 + $0x7d0] sm:$0xff]
  %v265 = vld [vmem:[%s0 + $0x7d8] sm:$0xff]
  %v266 = vld [vmem:[%s0 + $0x7e0] sm:$0xff]
  %v267 = vld [vmem:[%s0 + $0x7e8] sm:$0xff]
  %v268 = vld [vmem:[%s0 + $0x7f0] sm:$0xff]
  %v269 = vld [vmem:[%s0 + $0x7f8] sm:$0xff]
  %v270 = vld [vmem:[%s1] sm:$0xff]
  %v271 = vld [vmem:[%s1 + $0x8] sm:$0x1]
  %vm272 = vcmask 72704
  %v274 = vsel %vm272, %v14, 0
  %v277 = vsel %vm272, %v15, 0
  %v280 = vsel %vm272, %v16, 0
  %v283 = vsel %vm272, %v17, 0
  %v286 = vsel %vm272, %v18, 0
  %v289 = vsel %vm272, %v19, 0
  %v292 = vsel %vm272, %v20, 0
  %v295 = vsel %vm272, %v21, 0
  %v298 = vsel %vm272, %v22, 0
  %v301 = vsel %vm272, %v23, 0
  %v304 = vsel %vm272, %v24, 0
  %v307 = vsel %vm272, %v25, 0
  %v310 = vsel %vm272, %v26, 0
  %v313 = vsel %vm272, %v27, 0
  %v316 = vsel %vm272, %v28, 0
  %v319 = vsel %vm272, %v29, 0
  %v322 = vsel %vm272, %v30, 0
  %v325 = vsel %vm272, %v31, 0
  %v328 = vsel %vm272, %v32, 0
  %v331 = vsel %vm272, %v33, 0
  %v334 = vsel %vm272, %v34, 0
  %v337 = vsel %vm272, %v35, 0
  %v340 = vsel %vm272, %v36, 0
  %v343 = vsel %vm272, %v37, 0
  %v346 = vsel %vm272, %v38, 0
  %v349 = vsel %vm272, %v39, 0
  %v352 = vsel %vm272, %v40, 0
  %v355 = vsel %vm272, %v41, 0
  %v358 = vsel %vm272, %v42, 0
  %v361 = vsel %vm272, %v43, 0
  %v364 = vsel %vm272, %v44, 0
  %v367 = vsel %vm272, %v45, 0
  %v370 = vsel %vm272, %v46, 0
  %v373 = vsel %vm272, %v47, 0
  %v376 = vsel %vm272, %v48, 0
  %v379 = vsel %vm272, %v49, 0
  %v382 = vsel %vm272, %v50, 0
  %v385 = vsel %vm272, %v51, 0
  %v388 = vsel %vm272, %v52, 0
  %v391 = vsel %vm272, %v53, 0
  %v394 = vsel %vm272, %v54, 0
  %v397 = vsel %vm272, %v55, 0
  %v400 = vsel %vm272, %v56, 0
  %v403 = vsel %vm272, %v57, 0
  %v406 = vsel %vm272, %v58, 0
  %v409 = vsel %vm272, %v59, 0
  %v412 = vsel %vm272, %v60, 0
  %v415 = vsel %vm272, %v61, 0
  %v418 = vsel %vm272, %v62, 0
  %v421 = vsel %vm272, %v63, 0
  %v424 = vsel %vm272, %v64, 0
  %v427 = vsel %vm272, %v65, 0
  %v430 = vsel %vm272, %v66, 0
  %v433 = vsel %vm272, %v67, 0
  %v436 = vsel %vm272, %v68, 0
  %v439 = vsel %vm272, %v69, 0
  %v442 = vsel %vm272, %v70, 0
  %v445 = vsel %vm272, %v71, 0
  %v448 = vsel %vm272, %v72, 0
  %v451 = vsel %vm272, %v73, 0
  %v454 = vsel %vm272, %v74, 0
  %v457 = vsel %vm272, %v75, 0
  %v460 = vsel %vm272, %v76, 0
  %v463 = vsel %vm272, %v77, 0
  %v466 = vsel %vm272, %v78, 0
  %v469 = vsel %vm272, %v79, 0
  %v472 = vsel %vm272, %v80, 0
  %v475 = vsel %vm272, %v81, 0
  %v478 = vsel %vm272, %v82, 0
  %v481 = vsel %vm272, %v83, 0
  %v484 = vsel %vm272, %v84, 0
  %v487 = vsel %vm272, %v85, 0
  %v490 = vsel %vm272, %v86, 0
  %v493 = vsel %vm272, %v87, 0
  %v496 = vsel %vm272, %v88, 0
  %v499 = vsel %vm272, %v89, 0
  %v502 = vsel %vm272, %v90, 0
  %v505 = vsel %vm272, %v91, 0
  %v508 = vsel %vm272, %v92, 0
  %v511 = vsel %vm272, %v93, 0
  %v514 = vsel %vm272, %v94, 0
  %v517 = vsel %vm272, %v95, 0
  %v520 = vsel %vm272, %v96, 0
  %v523 = vsel %vm272, %v97, 0
  %v526 = vsel %vm272, %v98, 0
  %v529 = vsel %vm272, %v99, 0
  %v532 = vsel %vm272, %v100, 0
  %v535 = vsel %vm272, %v101, 0
  %v538 = vsel %vm272, %v102, 0
  %v541 = vsel %vm272, %v103, 0
  %v544 = vsel %vm272, %v104, 0
  %v547 = vsel %vm272, %v105, 0
  %v550 = vsel %vm272, %v106, 0
  %v553 = vsel %vm272, %v107, 0
  %v556 = vsel %vm272, %v108, 0
  %v559 = vsel %vm272, %v109, 0
  %v562 = vsel %vm272, %v110, 0
  %v565 = vsel %vm272, %v111, 0
  %v568 = vsel %vm272, %v112, 0
  %v571 = vsel %vm272, %v113, 0
  %v574 = vsel %vm272, %v114, 0
  %v577 = vsel %vm272, %v115, 0
  %v580 = vsel %vm272, %v116, 0
  %v583 = vsel %vm272, %v117, 0
  %v586 = vsel %vm272, %v118, 0
  %v589 = vsel %vm272, %v119, 0
  %v592 = vsel %vm272, %v120, 0
  %v595 = vsel %vm272, %v121, 0
  %v598 = vsel %vm272, %v122, 0
  %v601 = vsel %vm272, %v123, 0
  %v604 = vsel %vm272, %v124, 0
  %v607 = vsel %vm272, %v125, 0
  %v610 = vsel %vm272, %v126, 0
  %v613 = vsel %vm272, %v127, 0
  %v616 = vsel %vm272, %v128, 0
  %v619 = vsel %vm272, %v129, 0
  %v622 = vsel %vm272, %v130, 0
  %v625 = vsel %vm272, %v131, 0
  %v628 = vsel %vm272, %v132, 0
  %v631 = vsel %vm272, %v133, 0
  %v634 = vsel %vm272, %v134, 0
  %v637 = vsel %vm272, %v135, 0
  %v640 = vsel %vm272, %v136, 0
  %v643 = vsel %vm272, %v137, 0
  %v646 = vsel %vm272, %v138, 0
  %v649 = vsel %vm272, %v139, 0
  %v652 = vsel %vm272, %v140, 0
  %v655 = vsel %vm272, %v141, 0
  %v658 = vsel %vm272, %v142, 0
  %v661 = vsel %vm272, %v143, 0
  %v664 = vsel %vm272, %v144, 0
  %v667 = vsel %vm272, %v145, 0
  %v670 = vsel %vm272, %v146, 0
  %v673 = vsel %vm272, %v147, 0
  %v676 = vsel %vm272, %v148, 0
  %v679 = vsel %vm272, %v149, 0
  %v682 = vsel %vm272, %v150, 0
  %v685 = vsel %vm272, %v151, 0
  %v688 = vsel %vm272, %v152, 0
  %v691 = vsel %vm272, %v153, 0
  %v694 = vsel %vm272, %v154, 0
  %v697 = vsel %vm272, %v155, 0
  %v700 = vsel %vm272, %v156, 0
  %v703 = vsel %vm272, %v157, 0
  %v706 = vsel %vm272, %v158, 0
  %v709 = vsel %vm272, %v159, 0
  %v712 = vsel %vm272, %v160, 0
  %v715 = vsel %vm272, %v161, 0
  %v718 = vsel %vm272, %v162, 0
  %v721 = vsel %vm272, %v163, 0
  %v724 = vsel %vm272, %v164, 0
  %v727 = vsel %vm272, %v165, 0
  %v730 = vsel %vm272, %v166, 0
  %v733 = vsel %vm272, %v167, 0
  %v736 = vsel %vm272, %v168, 0
  %v739 = vsel %vm272, %v169, 0
  %v742 = vsel %vm272, %v170, 0
  %v745 = vsel %vm272, %v171, 0
  %v748 = vsel %vm272, %v172, 0
  %v751 = vsel %vm272, %v173, 0
  %v754 = vsel %vm272, %v174, 0
  %v757 = vsel %vm272, %v175, 0
  %v760 = vsel %vm272, %v176, 0
  %v763 = vsel %vm272, %v177, 0
  %v766 = vsel %vm272, %v178, 0
  %v769 = vsel %vm272, %v179, 0
  %v772 = vsel %vm272, %v180, 0
  %v775 = vsel %vm272, %v181, 0
  %v778 = vsel %vm272, %v182, 0
  %v781 = vsel %vm272, %v183, 0
  %v784 = vsel %vm272, %v184, 0
  %v787 = vsel %vm272, %v185, 0
  %v790 = vsel %vm272, %v186, 0
  %v793 = vsel %vm272, %v187, 0
  %v796 = vsel %vm272, %v188, 0
  %v799 = vsel %vm272, %v189, 0
  %v802 = vsel %vm272, %v190, 0
  %v805 = vsel %vm272, %v191, 0
  %v808 = vsel %vm272, %v192, 0
  %v811 = vsel %vm272, %v193, 0
  %v814 = vsel %vm272, %v194, 0
  %v817 = vsel %vm272, %v195, 0
  %v820 = vsel %vm272, %v196, 0
  %v823 = vsel %vm272, %v197, 0
  %v826 = vsel %vm272, %v198, 0
  %v829 = vsel %vm272, %v199, 0
  %v832 = vsel %vm272, %v200, 0
  %v835 = vsel %vm272, %v201, 0
  %v838 = vsel %vm272, %v202, 0
  %v841 = vsel %vm272, %v203, 0
  %v844 = vsel %vm272, %v204, 0
  %v847 = vsel %vm272, %v205, 0
  %v850 = vsel %vm272, %v206, 0
  %v853 = vsel %vm272, %v207, 0
  %v856 = vsel %vm272, %v208, 0
  %v859 = vsel %vm272, %v209, 0
  %v862 = vsel %vm272, %v210, 0
  %v865 = vsel %vm272, %v211, 0
  %v868 = vsel %vm272, %v212, 0
  %v871 = vsel %vm272, %v213, 0
  %v874 = vsel %vm272, %v214, 0
  %v877 = vsel %vm272, %v215, 0
  %v880 = vsel %vm272, %v216, 0
  %v883 = vsel %vm272, %v217, 0
  %v886 = vsel %vm272, %v218, 0
  %v889 = vsel %vm272, %v219, 0
  %v892 = vsel %vm272, %v220, 0
  %v895 = vsel %vm272, %v221, 0
  %v898 = vsel %vm272, %v222, 0
  %v901 = vsel %vm272, %v223, 0
  %v904 = vsel %vm272, %v224, 0
  %v907 = vsel %vm272, %v225, 0
  %v910 = vsel %vm272, %v226, 0
  %v913 = vsel %vm272, %v227, 0
  %v916 = vsel %vm272, %v228, 0
  %v919 = vsel %vm272, %v229, 0
  %v922 = vsel %vm272, %v230, 0
  %v925 = vsel %vm272, %v231, 0
  %v928 = vsel %vm272, %v232, 0
  %v931 = vsel %vm272, %v233, 0
  %v934 = vsel %vm272, %v234, 0
  %v937 = vsel %vm272, %v235, 0
  %v940 = vsel %vm272, %v236, 0
  %v943 = vsel %vm272, %v237, 0
  %v946 = vsel %vm272, %v238, 0
  %v949 = vsel %vm272, %v239, 0
  %v952 = vsel %vm272, %v240, 0
  %v955 = vsel %vm272, %v241, 0
  %v958 = vsel %vm272, %v242, 0
  %v961 = vsel %vm272, %v243, 0
  %v964 = vsel %vm272, %v244, 0
  %v967 = vsel %vm272, %v245, 0
  %v970 = vsel %vm272, %v246, 0
  %v973 = vsel %vm272, %v247, 0
  %v976 = vsel %vm272, %v248, 0
  %v979 = vsel %vm272, %v249, 0
  %v982 = vsel %vm272, %v250, 0
  %v985 = vsel %vm272, %v251, 0
  %v988 = vsel %vm272, %v252, 0
  %v991 = vsel %vm272, %v253, 0
  %v994 = vsel %vm272, %v254, 0
  %v997 = vsel %vm272, %v255, 0
  %v1000 = vsel %vm272, %v256, 0
  %v1003 = vsel %vm272, %v257, 0
  %v1006 = vsel %vm272, %v258, 0
  %v1009 = vsel %vm272, %v259, 0
  %v1012 = vsel %vm272, %v260, 0
  %v1015 = vsel %vm272, %v261, 0
  %v1018 = vsel %vm272, %v262, 0
  %v1021 = vsel %vm272, %v263, 0
  %v1024 = vsel %vm272, %v264, 0
  %v1027 = vsel %vm272, %v265, 0
  %v1030 = vsel %vm272, %v266, 0
  %v1033 = vsel %vm272, %v267, 0
  %v1036 = vsel %vm272, %v268, 0
  %v1039 = vsel %vm272, %v269, 0
  %vm1041 = vcmask 1040384
  %v1043 = vsel %vm1041, %v271, 0
  %1045 = vmatpush.msra.mxu0 0.0
  %1046 = vmatpush.msra.mxu0 0.0
  %1047 = vmatpush.msra.mxu0 0.0
  %1048 = vmatpush.msra.mxu0 0.0
  %1049 = vmatpush.msra.mxu0 0.0
  %1050 = vmatpush.msra.mxu0 0.0
  %1051 = vmatpush.msra.mxu0 0.0
  %1052 = vmatpush.msra.mxu0 0.0
  %1053 = vmatpush.msra.mxu0 0.0
  %1054 = vmatpush.msra.mxu0 0.0
  %1055 = vmatpush.msra.mxu0 0.0
  %1056 = vmatpush.msra.mxu0 0.0
  %1057 = vmatpush.msra.mxu0 0.0
  %1058 = vmatpush.msra.mxu0 0.0
  %1059 = vmatpush.msra.mxu0 %v1043
  %1060 = vmatpush.msra.mxu0 %v270
  %1061 = vmatmul.f32.gmra.mxu0 %v274
  %v1062 = vpop.f32.mrf.mxu0
  %v1063 = vadd.f32 0.0, %v1062
  %1064 = vmatmul.f32.gmra.mxu0 %v277
  %v1065 = vpop.f32.mrf.mxu0
  %v1066 = vadd.f32 0.0, %v1065
  %1067 = vmatmul.f32.gmra.mxu0 %v280
  %v1068 = vpop.f32.mrf.mxu0
  %v1069 = vadd.f32 0.0, %v1068
  %1070 = vmatmul.f32.gmra.mxu0 %v283
  %v1071 = vpop.f32.mrf.mxu0
  %v1072 = vadd.f32 0.0, %v1071
  %1073 = vmatmul.f32.gmra.mxu0 %v286
  %v1074 = vpop.f32.mrf.mxu0
  %v1075 = vadd.f32 0.0, %v1074
  %1076 = vmatmul.f32.gmra.mxu0 %v289
  %v1077 = vpop.f32.mrf.mxu0
  %v1078 = vadd.f32 0.0, %v1077
  %1079 = vmatmul.f32.gmra.mxu0 %v292
  %v1080 = vpop.f32.mrf.mxu0
  %v1081 = vadd.f32 0.0, %v1080
  %1082 = vmatmul.f32.gmra.mxu0 %v295
  %v1083 = vpop.f32.mrf.mxu0
  %v1084 = vadd.f32 0.0, %v1083
  %1085 = vmatmul.f32.gmra.mxu0 %v298
  %v1086 = vpop.f32.mrf.mxu0
  %v1087 = vadd.f32 0.0, %v1086
  %1088 = vmatmul.f32.gmra.mxu0 %v301
  %v1089 = vpop.f32.mrf.mxu0
  %v1090 = vadd.f32 0.0, %v1089
  %1091 = vmatmul.f32.gmra.mxu0 %v304
  %v1092 = vpop.f32.mrf.mxu0
  %v1093 = vadd.f32 0.0, %v1092
  %1094 = vmatmul.f32.gmra.mxu0 %v307
  %v1095 = vpop.f32.mrf.mxu0
  %v1096 = vadd.f32 0.0, %v1095
  %1097 = vmatmul.f32.gmra.mxu0 %v310
  %v1098 = vpop.f32.mrf.mxu0
  %v1099 = vadd.f32 0.0, %v1098
  %1100 = vmatmul.f32.gmra.mxu0 %v313
  %v1101 = vpop.f32.mrf.mxu0
  %v1102 = vadd.f32 0.0, %v1101
  %1103 = vmatmul.f32.gmra.mxu0 %v316
  %v1104 = vpop.f32.mrf.mxu0
  %v1105 = vadd.f32 0.0, %v1104
  %1106 = vmatmul.f32.gmra.mxu0 %v319
  %v1107 = vpop.f32.mrf.mxu0
  %v1108 = vadd.f32 0.0, %v1107
  %1109 = vmatmul.f32.gmra.mxu0 %v322
  %v1110 = vpop.f32.mrf.mxu0
  %v1111 = vadd.f32 0.0, %v1110
  %1112 = vmatmul.f32.gmra.mxu0 %v325
  %v1113 = vpop.f32.mrf.mxu0
  %v1114 = vadd.f32 0.0, %v1113
  %1115 = vmatmul.f32.gmra.mxu0 %v328
  %v1116 = vpop.f32.mrf.mxu0
  %v1117 = vadd.f32 0.0, %v1116
  %1118 = vmatmul.f32.gmra.mxu0 %v331
  %v1119 = vpop.f32.mrf.mxu0
  %v1120 = vadd.f32 0.0, %v1119
  %1121 = vmatmul.f32.gmra.mxu0 %v334
  %v1122 = vpop.f32.mrf.mxu0
  %v1123 = vadd.f32 0.0, %v1122
  %1124 = vmatmul.f32.gmra.mxu0 %v337
  %v1125 = vpop.f32.mrf.mxu0
  %v1126 = vadd.f32 0.0, %v1125
  %1127 = vmatmul.f32.gmra.mxu0 %v340
  %v1128 = vpop.f32.mrf.mxu0
  %v1129 = vadd.f32 0.0, %v1128
  %1130 = vmatmul.f32.gmra.mxu0 %v343
  %v1131 = vpop.f32.mrf.mxu0
  %v1132 = vadd.f32 0.0, %v1131
  %1133 = vmatmul.f32.gmra.mxu0 %v346
  %v1134 = vpop.f32.mrf.mxu0
  %v1135 = vadd.f32 0.0, %v1134
  %1136 = vmatmul.f32.gmra.mxu0 %v349
  %v1137 = vpop.f32.mrf.mxu0
  %v1138 = vadd.f32 0.0, %v1137
  %1139 = vmatmul.f32.gmra.mxu0 %v352
  %v1140 = vpop.f32.mrf.mxu0
  %v1141 = vadd.f32 0.0, %v1140
  %1142 = vmatmul.f32.gmra.mxu0 %v355
  %v1143 = vpop.f32.mrf.mxu0
  %v1144 = vadd.f32 0.0, %v1143
  %1145 = vmatmul.f32.gmra.mxu0 %v358
  %v1146 = vpop.f32.mrf.mxu0
  %v1147 = vadd.f32 0.0, %v1146
  %1148 = vmatmul.f32.gmra.mxu0 %v361
  %v1149 = vpop.f32.mrf.mxu0
  %v1150 = vadd.f32 0.0, %v1149
  %1151 = vmatmul.f32.gmra.mxu0 %v364
  %v1152 = vpop.f32.mrf.mxu0
  %v1153 = vadd.f32 0.0, %v1152
  %1154 = vmatmul.f32.gmra.mxu0 %v367
  %v1155 = vpop.f32.mrf.mxu0
  %v1156 = vadd.f32 0.0, %v1155
  %1157 = vmatmul.f32.gmra.mxu0 %v370
  %v1158 = vpop.f32.mrf.mxu0
  %v1159 = vadd.f32 0.0, %v1158
  %1160 = vmatmul.f32.gmra.mxu0 %v373
  %v1161 = vpop.f32.mrf.mxu0
  %v1162 = vadd.f32 0.0, %v1161
  %1163 = vmatmul.f32.gmra.mxu0 %v376
  %v1164 = vpop.f32.mrf.mxu0
  %v1165 = vadd.f32 0.0, %v1164
  %1166 = vmatmul.f32.gmra.mxu0 %v379
  %v1167 = vpop.f32.mrf.mxu0
  %v1168 = vadd.f32 0.0, %v1167
  %1169 = vmatmul.f32.gmra.mxu0 %v382
  %v1170 = vpop.f32.mrf.mxu0
  %v1171 = vadd.f32 0.0, %v1170
  %1172 = vmatmul.f32.gmra.mxu0 %v385
  %v1173 = vpop.f32.mrf.mxu0
  %v1174 = vadd.f32 0.0, %v1173
  %1175 = vmatmul.f32.gmra.mxu0 %v388
  %v1176 = vpop.f32.mrf.mxu0
  %v1177 = vadd.f32 0.0, %v1176
  %1178 = vmatmul.f32.gmra.mxu0 %v391
  %v1179 = vpop.f32.mrf.mxu0
  %v1180 = vadd.f32 0.0, %v1179
  %1181 = vmatmul.f32.gmra.mxu0 %v394
  %v1182 = vpop.f32.mrf.mxu0
  %v1183 = vadd.f32 0.0, %v1182
  %1184 = vmatmul.f32.gmra.mxu0 %v397
  %v1185 = vpop.f32.mrf.mxu0
  %v1186 = vadd.f32 0.0, %v1185
  %1187 = vmatmul.f32.gmra.mxu0 %v400
  %v1188 = vpop.f32.mrf.mxu0
  %v1189 = vadd.f32 0.0, %v1188
  %1190 = vmatmul.f32.gmra.mxu0 %v403
  %v1191 = vpop.f32.mrf.mxu0
  %v1192 = vadd.f32 0.0, %v1191
  %1193 = vmatmul.f32.gmra.mxu0 %v406
  %v1194 = vpop.f32.mrf.mxu0
  %v1195 = vadd.f32 0.0, %v1194
  %1196 = vmatmul.f32.gmra.mxu0 %v409
  %v1197 = vpop.f32.mrf.mxu0
  %v1198 = vadd.f32 0.0, %v1197
  %1199 = vmatmul.f32.gmra.mxu0 %v412
  %v1200 = vpop.f32.mrf.mxu0
  %v1201 = vadd.f32 0.0, %v1200
  %1202 = vmatmul.f32.gmra.mxu0 %v415
  %v1203 = vpop.f32.mrf.mxu0
  %v1204 = vadd.f32 0.0, %v1203
  %1205 = vmatmul.f32.gmra.mxu0 %v418
  %v1206 = vpop.f32.mrf.mxu0
  %v1207 = vadd.f32 0.0, %v1206
  %1208 = vmatmul.f32.gmra.mxu0 %v421
  %v1209 = vpop.f32.mrf.mxu0
  %v1210 = vadd.f32 0.0, %v1209
  %1211 = vmatmul.f32.gmra.mxu0 %v424
  %v1212 = vpop.f32.mrf.mxu0
  %v1213 = vadd.f32 0.0, %v1212
  %1214 = vmatmul.f32.gmra.mxu0 %v427
  %v1215 = vpop.f32.mrf.mxu0
  %v1216 = vadd.f32 0.0, %v1215
  %1217 = vmatmul.f32.gmra.mxu0 %v430
  %v1218 = vpop.f32.mrf.mxu0
  %v1219 = vadd.f32 0.0, %v1218
  %1220 = vmatmul.f32.gmra.mxu0 %v433
  %v1221 = vpop.f32.mrf.mxu0
  %v1222 = vadd.f32 0.0, %v1221
  %1223 = vmatmul.f32.gmra.mxu0 %v436
  %v1224 = vpop.f32.mrf.mxu0
  %v1225 = vadd.f32 0.0, %v1224
  %1226 = vmatmul.f32.gmra.mxu0 %v439
  %v1227 = vpop.f32.mrf.mxu0
  %v1228 = vadd.f32 0.0, %v1227
  %1229 = vmatmul.f32.gmra.mxu0 %v442
  %v1230 = vpop.f32.mrf.mxu0
  %v1231 = vadd.f32 0.0, %v1230
  %1232 = vmatmul.f32.gmra.mxu0 %v445
  %v1233 = vpop.f32.mrf.mxu0
  %v1234 = vadd.f32 0.0, %v1233
  %1235 = vmatmul.f32.gmra.mxu0 %v448
  %v1236 = vpop.f32.mrf.mxu0
  %v1237 = vadd.f32 0.0, %v1236
  %1238 = vmatmul.f32.gmra.mxu0 %v451
  %v1239 = vpop.f32.mrf.mxu0
  %v1240 = vadd.f32 0.0, %v1239
  %1241 = vmatmul.f32.gmra.mxu0 %v454
  %v1242 = vpop.f32.mrf.mxu0
  %v1243 = vadd.f32 0.0, %v1242
  %1244 = vmatmul.f32.gmra.mxu0 %v457
  %v1245 = vpop.f32.mrf.mxu0
  %v1246 = vadd.f32 0.0, %v1245
  %1247 = vmatmul.f32.gmra.mxu0 %v460
  %v1248 = vpop.f32.mrf.mxu0
  %v1249 = vadd.f32 0.0, %v1248
  %1250 = vmatmul.f32.gmra.mxu0 %v463
  %v1251 = vpop.f32.mrf.mxu0
  %v1252 = vadd.f32 0.0, %v1251
  %1253 = vmatmul.f32.gmra.mxu0 %v466
  %v1254 = vpop.f32.mrf.mxu0
  %v1255 = vadd.f32 0.0, %v1254
  %1256 = vmatmul.f32.gmra.mxu0 %v469
  %v1257 = vpop.f32.mrf.mxu0
  %v1258 = vadd.f32 0.0, %v1257
  %1259 = vmatmul.f32.gmra.mxu0 %v472
  %v1260 = vpop.f32.mrf.mxu0
  %v1261 = vadd.f32 0.0, %v1260
  %1262 = vmatmul.f32.gmra.mxu0 %v475
  %v1263 = vpop.f32.mrf.mxu0
  %v1264 = vadd.f32 0.0, %v1263
  %1265 = vmatmul.f32.gmra.mxu0 %v478
  %v1266 = vpop.f32.mrf.mxu0
  %v1267 = vadd.f32 0.0, %v1266
  %1268 = vmatmul.f32.gmra.mxu0 %v481
  %v1269 = vpop.f32.mrf.mxu0
  %v1270 = vadd.f32 0.0, %v1269
  %1271 = vmatmul.f32.gmra.mxu0 %v484
  %v1272 = vpop.f32.mrf.mxu0
  %v1273 = vadd.f32 0.0, %v1272
  %1274 = vmatmul.f32.gmra.mxu0 %v487
  %v1275 = vpop.f32.mrf.mxu0
  %v1276 = vadd.f32 0.0, %v1275
  %1277 = vmatmul.f32.gmra.mxu0 %v490
  %v1278 = vpop.f32.mrf.mxu0
  %v1279 = vadd.f32 0.0, %v1278
  %1280 = vmatmul.f32.gmra.mxu0 %v493
  %v1281 = vpop.f32.mrf.mxu0
  %v1282 = vadd.f32 0.0, %v1281
  %1283 = vmatmul.f32.gmra.mxu0 %v496
  %v1284 = vpop.f32.mrf.mxu0
  %v1285 = vadd.f32 0.0, %v1284
  %1286 = vmatmul.f32.gmra.mxu0 %v499
  %v1287 = vpop.f32.mrf.mxu0
  %v1288 = vadd.f32 0.0, %v1287
  %1289 = vmatmul.f32.gmra.mxu0 %v502
  %v1290 = vpop.f32.mrf.mxu0
  %v1291 = vadd.f32 0.0, %v1290
  %1292 = vmatmul.f32.gmra.mxu0 %v505
  %v1293 = vpop.f32.mrf.mxu0
  %v1294 = vadd.f32 0.0, %v1293
  %1295 = vmatmul.f32.gmra.mxu0 %v508
  %v1296 = vpop.f32.mrf.mxu0
  %v1297 = vadd.f32 0.0, %v1296
  %1298 = vmatmul.f32.gmra.mxu0 %v511
  %v1299 = vpop.f32.mrf.mxu0
  %v1300 = vadd.f32 0.0, %v1299
  %1301 = vmatmul.f32.gmra.mxu0 %v514
  %v1302 = vpop.f32.mrf.mxu0
  %v1303 = vadd.f32 0.0, %v1302
  %1304 = vmatmul.f32.gmra.mxu0 %v517
  %v1305 = vpop.f32.mrf.mxu0
  %v1306 = vadd.f32 0.0, %v1305
  %1307 = vmatmul.f32.gmra.mxu0 %v520
  %v1308 = vpop.f32.mrf.mxu0
  %v1309 = vadd.f32 0.0, %v1308
  %1310 = vmatmul.f32.gmra.mxu0 %v523
  %v1311 = vpop.f32.mrf.mxu0
  %v1312 = vadd.f32 0.0, %v1311
  %1313 = vmatmul.f32.gmra.mxu0 %v526
  %v1314 = vpop.f32.mrf.mxu0
  %v1315 = vadd.f32 0.0, %v1314
  %1316 = vmatmul.f32.gmra.mxu0 %v529
  %v1317 = vpop.f32.mrf.mxu0
  %v1318 = vadd.f32 0.0, %v1317
  %1319 = vmatmul.f32.gmra.mxu0 %v532
  %v1320 = vpop.f32.mrf.mxu0
  %v1321 = vadd.f32 0.0, %v1320
  %1322 = vmatmul.f32.gmra.mxu0 %v535
  %v1323 = vpop.f32.mrf.mxu0
  %v1324 = vadd.f32 0.0, %v1323
  %1325 = vmatmul.f32.gmra.mxu0 %v538
  %v1326 = vpop.f32.mrf.mxu0
  %v1327 = vadd.f32 0.0, %v1326
  %1328 = vmatmul.f32.gmra.mxu0 %v541
  %v1329 = vpop.f32.mrf.mxu0
  %v1330 = vadd.f32 0.0, %v1329
  %1331 = vmatmul.f32.gmra.mxu0 %v544
  %v1332 = vpop.f32.mrf.mxu0
  %v1333 = vadd.f32 0.0, %v1332
  %1334 = vmatmul.f32.gmra.mxu0 %v547
  %v1335 = vpop.f32.mrf.mxu0
  %v1336 = vadd.f32 0.0, %v1335
  %1337 = vmatmul.f32.gmra.mxu0 %v550
  %v1338 = vpop.f32.mrf.mxu0
  %v1339 = vadd.f32 0.0, %v1338
  %1340 = vmatmul.f32.gmra.mxu0 %v553
  %v1341 = vpop.f32.mrf.mxu0
  %v1342 = vadd.f32 0.0, %v1341
  %1343 = vmatmul.f32.gmra.mxu0 %v556
  %v1344 = vpop.f32.mrf.mxu0
  %v1345 = vadd.f32 0.0, %v1344
  %1346 = vmatmul.f32.gmra.mxu0 %v559
  %v1347 = vpop.f32.mrf.mxu0
  %v1348 = vadd.f32 0.0, %v1347
  %1349 = vmatmul.f32.gmra.mxu0 %v562
  %v1350 = vpop.f32.mrf.mxu0
  %v1351 = vadd.f32 0.0, %v1350
  %1352 = vmatmul.f32.gmra.mxu0 %v565
  %v1353 = vpop.f32.mrf.mxu0
  %v1354 = vadd.f32 0.0, %v1353
  %1355 = vmatmul.f32.gmra.mxu0 %v568
  %v1356 = vpop.f32.mrf.mxu0
  %v1357 = vadd.f32 0.0, %v1356
  %1358 = vmatmul.f32.gmra.mxu0 %v571
  %v1359 = vpop.f32.mrf.mxu0
  %v1360 = vadd.f32 0.0, %v1359
  %1361 = vmatmul.f32.gmra.mxu0 %v574
  %v1362 = vpop.f32.mrf.mxu0
  %v1363 = vadd.f32 0.0, %v1362
  %1364 = vmatmul.f32.gmra.mxu0 %v577
  %v1365 = vpop.f32.mrf.mxu0
  %v1366 = vadd.f32 0.0, %v1365
  %1367 = vmatmul.f32.gmra.mxu0 %v580
  %v1368 = vpop.f32.mrf.mxu0
  %v1369 = vadd.f32 0.0, %v1368
  %1370 = vmatmul.f32.gmra.mxu0 %v583
  %v1371 = vpop.f32.mrf.mxu0
  %v1372 = vadd.f32 0.0, %v1371
  %1373 = vmatmul.f32.gmra.mxu0 %v586
  %v1374 = vpop.f32.mrf.mxu0
  %v1375 = vadd.f32 0.0, %v1374
  %1376 = vmatmul.f32.gmra.mxu0 %v589
  %v1377 = vpop.f32.mrf.mxu0
  %v1378 = vadd.f32 0.0, %v1377
  %1379 = vmatmul.f32.gmra.mxu0 %v592
  %v1380 = vpop.f32.mrf.mxu0
  %v1381 = vadd.f32 0.0, %v1380
  %1382 = vmatmul.f32.gmra.mxu0 %v595
  %v1383 = vpop.f32.mrf.mxu0
  %v1384 = vadd.f32 0.0, %v1383
  %1385 = vmatmul.f32.gmra.mxu0 %v598
  %v1386 = vpop.f32.mrf.mxu0
  %v1387 = vadd.f32 0.0, %v1386
  %1388 = vmatmul.f32.gmra.mxu0 %v601
  %v1389 = vpop.f32.mrf.mxu0
  %v1390 = vadd.f32 0.0, %v1389
  %1391 = vmatmul.f32.gmra.mxu0 %v604
  %v1392 = vpop.f32.mrf.mxu0
  %v1393 = vadd.f32 0.0, %v1392
  %1394 = vmatmul.f32.gmra.mxu0 %v607
  %v1395 = vpop.f32.mrf.mxu0
  %v1396 = vadd.f32 0.0, %v1395
  %1397 = vmatmul.f32.gmra.mxu0 %v610
  %v1398 = vpop.f32.mrf.mxu0
  %v1399 = vadd.f32 0.0, %v1398
  %1400 = vmatmul.f32.gmra.mxu0 %v613
  %v1401 = vpop.f32.mrf.mxu0
  %v1402 = vadd.f32 0.0, %v1401
  %1403 = vmatmul.f32.gmra.mxu0 %v616
  %v1404 = vpop.f32.mrf.mxu0
  %v1405 = vadd.f32 0.0, %v1404
  %1406 = vmatmul.f32.gmra.mxu0 %v619
  %v1407 = vpop.f32.mrf.mxu0
  %v1408 = vadd.f32 0.0, %v1407
  %1409 = vmatmul.f32.gmra.mxu0 %v622
  %v1410 = vpop.f32.mrf.mxu0
  %v1411 = vadd.f32 0.0, %v1410
  %1412 = vmatmul.f32.gmra.mxu0 %v625
  %v1413 = vpop.f32.mrf.mxu0
  %v1414 = vadd.f32 0.0, %v1413
  %1415 = vmatmul.f32.gmra.mxu0 %v628
  %v1416 = vpop.f32.mrf.mxu0
  %v1417 = vadd.f32 0.0, %v1416
  %1418 = vmatmul.f32.gmra.mxu0 %v631
  %v1419 = vpop.f32.mrf.mxu0
  %v1420 = vadd.f32 0.0, %v1419
  %1421 = vmatmul.f32.gmra.mxu0 %v634
  %v1422 = vpop.f32.mrf.mxu0
  %v1423 = vadd.f32 0.0, %v1422
  %1424 = vmatmul.f32.gmra.mxu0 %v637
  %v1425 = vpop.f32.mrf.mxu0
  %v1426 = vadd.f32 0.0, %v1425
  %1427 = vmatmul.f32.gmra.mxu0 %v640
  %v1428 = vpop.f32.mrf.mxu0
  %v1429 = vadd.f32 0.0, %v1428
  %1430 = vmatmul.f32.gmra.mxu0 %v643
  %v1431 = vpop.f32.mrf.mxu0
  %v1432 = vadd.f32 0.0, %v1431
  %1433 = vmatmul.f32.gmra.mxu0 %v646
  %v1434 = vpop.f32.mrf.mxu0
  %v1435 = vadd.f32 0.0, %v1434
  %1436 = vmatmul.f32.gmra.mxu0 %v649
  %v1437 = vpop.f32.mrf.mxu0
  %v1438 = vadd.f32 0.0, %v1437
  %1439 = vmatmul.f32.gmra.mxu0 %v652
  %v1440 = vpop.f32.mrf.mxu0
  %v1441 = vadd.f32 0.0, %v1440
  %1442 = vmatmul.f32.gmra.mxu0 %v655
  %v1443 = vpop.f32.mrf.mxu0
  %v1444 = vadd.f32 0.0, %v1443
  %1445 = vmatmul.f32.gmra.mxu0 %v658
  %v1446 = vpop.f32.mrf.mxu0
  %v1447 = vadd.f32 0.0, %v1446
  %1448 = vmatmul.f32.gmra.mxu0 %v661
  %v1449 = vpop.f32.mrf.mxu0
  %v1450 = vadd.f32 0.0, %v1449
  %1451 = vmatmul.f32.gmra.mxu0 %v664
  %v1452 = vpop.f32.mrf.mxu0
  %v1453 = vadd.f32 0.0, %v1452
  %1454 = vmatmul.f32.gmra.mxu0 %v667
  %v1455 = vpop.f32.mrf.mxu0
  %v1456 = vadd.f32 0.0, %v1455
  %1457 = vmatmul.f32.gmra.mxu0 %v670
  %v1458 = vpop.f32.mrf.mxu0
  %v1459 = vadd.f32 0.0, %v1458
  %1460 = vmatmul.f32.gmra.mxu0 %v673
  %v1461 = vpop.f32.mrf.mxu0
  %v1462 = vadd.f32 0.0, %v1461
  %1463 = vmatmul.f32.gmra.mxu0 %v676
  %v1464 = vpop.f32.mrf.mxu0
  %v1465 = vadd.f32 0.0, %v1464
  %1466 = vmatmul.f32.gmra.mxu0 %v679
  %v1467 = vpop.f32.mrf.mxu0
  %v1468 = vadd.f32 0.0, %v1467
  %1469 = vmatmul.f32.gmra.mxu0 %v682
  %v1470 = vpop.f32.mrf.mxu0
  %v1471 = vadd.f32 0.0, %v1470
  %1472 = vmatmul.f32.gmra.mxu0 %v685
  %v1473 = vpop.f32.mrf.mxu0
  %v1474 = vadd.f32 0.0, %v1473
  %1475 = vmatmul.f32.gmra.mxu0 %v688
  %v1476 = vpop.f32.mrf.mxu0
  %v1477 = vadd.f32 0.0, %v1476
  %1478 = vmatmul.f32.gmra.mxu0 %v691
  %v1479 = vpop.f32.mrf.mxu0
  %v1480 = vadd.f32 0.0, %v1479
  %1481 = vmatmul.f32.gmra.mxu0 %v694
  %v1482 = vpop.f32.mrf.mxu0
  %v1483 = vadd.f32 0.0, %v1482
  %1484 = vmatmul.f32.gmra.mxu0 %v697
  %v1485 = vpop.f32.mrf.mxu0
  %v1486 = vadd.f32 0.0, %v1485
  %1487 = vmatmul.f32.gmra.mxu0 %v700
  %v1488 = vpop.f32.mrf.mxu0
  %v1489 = vadd.f32 0.0, %v1488
  %1490 = vmatmul.f32.gmra.mxu0 %v703
  %v1491 = vpop.f32.mrf.mxu0
  %v1492 = vadd.f32 0.0, %v1491
  %1493 = vmatmul.f32.gmra.mxu0 %v706
  %v1494 = vpop.f32.mrf.mxu0
  %v1495 = vadd.f32 0.0, %v1494
  %1496 = vmatmul.f32.gmra.mxu0 %v709
  %v1497 = vpop.f32.mrf.mxu0
  %v1498 = vadd.f32 0.0, %v1497
  %1499 = vmatmul.f32.gmra.mxu0 %v712
  %v1500 = vpop.f32.mrf.mxu0
  %v1501 = vadd.f32 0.0, %v1500
  %1502 = vmatmul.f32.gmra.mxu0 %v715
  %v1503 = vpop.f32.mrf.mxu0
  %v1504 = vadd.f32 0.0, %v1503
  %1505 = vmatmul.f32.gmra.mxu0 %v718
  %v1506 = vpop.f32.mrf.mxu0
  %v1507 = vadd.f32 0.0, %v1506
  %1508 = vmatmul.f32.gmra.mxu0 %v721
  %v1509 = vpop.f32.mrf.mxu0
  %v1510 = vadd.f32 0.0, %v1509
  %1511 = vmatmul.f32.gmra.mxu0 %v724
  %v1512 = vpop.f32.mrf.mxu0
  %v1513 = vadd.f32 0.0, %v1512
  %1514 = vmatmul.f32.gmra.mxu0 %v727
  %v1515 = vpop.f32.mrf.mxu0
  %v1516 = vadd.f32 0.0, %v1515
  %1517 = vmatmul.f32.gmra.mxu0 %v730
  %v1518 = vpop.f32.mrf.mxu0
  %v1519 = vadd.f32 0.0, %v1518
  %1520 = vmatmul.f32.gmra.mxu0 %v733
  %v1521 = vpop.f32.mrf.mxu0
  %v1522 = vadd.f32 0.0, %v1521
  %1523 = vmatmul.f32.gmra.mxu0 %v736
  %v1524 = vpop.f32.mrf.mxu0
  %v1525 = vadd.f32 0.0, %v1524
  %1526 = vmatmul.f32.gmra.mxu0 %v739
  %v1527 = vpop.f32.mrf.mxu0
  %v1528 = vadd.f32 0.0, %v1527
  %1529 = vmatmul.f32.gmra.mxu0 %v742
  %v1530 = vpop.f32.mrf.mxu0
  %v1531 = vadd.f32 0.0, %v1530
  %1532 = vmatmul.f32.gmra.mxu0 %v745
  %v1533 = vpop.f32.mrf.mxu0
  %v1534 = vadd.f32 0.0, %v1533
  %1535 = vmatmul.f32.gmra.mxu0 %v748
  %v1536 = vpop.f32.mrf.mxu0
  %v1537 = vadd.f32 0.0, %v1536
  %1538 = vmatmul.f32.gmra.mxu0 %v751
  %v1539 = vpop.f32.mrf.mxu0
  %v1540 = vadd.f32 0.0, %v1539
  %1541 = vmatmul.f32.gmra.mxu0 %v754
  %v1542 = vpop.f32.mrf.mxu0
  %v1543 = vadd.f32 0.0, %v1542
  %1544 = vmatmul.f32.gmra.mxu0 %v757
  %v1545 = vpop.f32.mrf.mxu0
  %v1546 = vadd.f32 0.0, %v1545
  %1547 = vmatmul.f32.gmra.mxu0 %v760
  %v1548 = vpop.f32.mrf.mxu0
  %v1549 = vadd.f32 0.0, %v1548
  %1550 = vmatmul.f32.gmra.mxu0 %v763
  %v1551 = vpop.f32.mrf.mxu0
  %v1552 = vadd.f32 0.0, %v1551
  %1553 = vmatmul.f32.gmra.mxu0 %v766
  %v1554 = vpop.f32.mrf.mxu0
  %v1555 = vadd.f32 0.0, %v1554
  %1556 = vmatmul.f32.gmra.mxu0 %v769
  %v1557 = vpop.f32.mrf.mxu0
  %v1558 = vadd.f32 0.0, %v1557
  %1559 = vmatmul.f32.gmra.mxu0 %v772
  %v1560 = vpop.f32.mrf.mxu0
  %v1561 = vadd.f32 0.0, %v1560
  %1562 = vmatmul.f32.gmra.mxu0 %v775
  %v1563 = vpop.f32.mrf.mxu0
  %v1564 = vadd.f32 0.0, %v1563
  %1565 = vmatmul.f32.gmra.mxu0 %v778
  %v1566 = vpop.f32.mrf.mxu0
  %v1567 = vadd.f32 0.0, %v1566
  %1568 = vmatmul.f32.gmra.mxu0 %v781
  %v1569 = vpop.f32.mrf.mxu0
  %v1570 = vadd.f32 0.0, %v1569
  %1571 = vmatmul.f32.gmra.mxu0 %v784
  %v1572 = vpop.f32.mrf.mxu0
  %v1573 = vadd.f32 0.0, %v1572
  %1574 = vmatmul.f32.gmra.mxu0 %v787
  %v1575 = vpop.f32.mrf.mxu0
  %v1576 = vadd.f32 0.0, %v1575
  %1577 = vmatmul.f32.gmra.mxu0 %v790
  %v1578 = vpop.f32.mrf.mxu0
  %v1579 = vadd.f32 0.0, %v1578
  %1580 = vmatmul.f32.gmra.mxu0 %v793
  %v1581 = vpop.f32.mrf.mxu0
  %v1582 = vadd.f32 0.0, %v1581
  %1583 = vmatmul.f32.gmra.mxu0 %v796
  %v1584 = vpop.f32.mrf.mxu0
  %v1585 = vadd.f32 0.0, %v1584
  %1586 = vmatmul.f32.gmra.mxu0 %v799
  %v1587 = vpop.f32.mrf.mxu0
  %v1588 = vadd.f32 0.0, %v1587
  %1589 = vmatmul.f32.gmra.mxu0 %v802
  %v1590 = vpop.f32.mrf.mxu0
  %v1591 = vadd.f32 0.0, %v1590
  %1592 = vmatmul.f32.gmra.mxu0 %v805
  %v1593 = vpop.f32.mrf.mxu0
  %v1594 = vadd.f32 0.0, %v1593
  %1595 = vmatmul.f32.gmra.mxu0 %v808
  %v1596 = vpop.f32.mrf.mxu0
  %v1597 = vadd.f32 0.0, %v1596
  %1598 = vmatmul.f32.gmra.mxu0 %v811
  %v1599 = vpop.f32.mrf.mxu0
  %v1600 = vadd.f32 0.0, %v1599
  %1601 = vmatmul.f32.gmra.mxu0 %v814
  %v1602 = vpop.f32.mrf.mxu0
  %v1603 = vadd.f32 0.0, %v1602
  %1604 = vmatmul.f32.gmra.mxu0 %v817
  %v1605 = vpop.f32.mrf.mxu0
  %v1606 = vadd.f32 0.0, %v1605
  %1607 = vmatmul.f32.gmra.mxu0 %v820
  %v1608 = vpop.f32.mrf.mxu0
  %v1609 = vadd.f32 0.0, %v1608
  %1610 = vmatmul.f32.gmra.mxu0 %v823
  %v1611 = vpop.f32.mrf.mxu0
  %v1612 = vadd.f32 0.0, %v1611
  %1613 = vmatmul.f32.gmra.mxu0 %v826
  %v1614 = vpop.f32.mrf.mxu0
  %v1615 = vadd.f32 0.0, %v1614
  %1616 = vmatmul.f32.gmra.mxu0 %v829
  %v1617 = vpop.f32.mrf.mxu0
  %v1618 = vadd.f32 0.0, %v1617
  %1619 = vmatmul.f32.gmra.mxu0 %v832
  %v1620 = vpop.f32.mrf.mxu0
  %v1621 = vadd.f32 0.0, %v1620
  %1622 = vmatmul.f32.gmra.mxu0 %v835
  %v1623 = vpop.f32.mrf.mxu0
  %v1624 = vadd.f32 0.0, %v1623
  %1625 = vmatmul.f32.gmra.mxu0 %v838
  %v1626 = vpop.f32.mrf.mxu0
  %v1627 = vadd.f32 0.0, %v1626
  %1628 = vmatmul.f32.gmra.mxu0 %v841
  %v1629 = vpop.f32.mrf.mxu0
  %v1630 = vadd.f32 0.0, %v1629
  %1631 = vmatmul.f32.gmra.mxu0 %v844
  %v1632 = vpop.f32.mrf.mxu0
  %v1633 = vadd.f32 0.0, %v1632
  %1634 = vmatmul.f32.gmra.mxu0 %v847
  %v1635 = vpop.f32.mrf.mxu0
  %v1636 = vadd.f32 0.0, %v1635
  %1637 = vmatmul.f32.gmra.mxu0 %v850
  %v1638 = vpop.f32.mrf.mxu0
  %v1639 = vadd.f32 0.0, %v1638
  %1640 = vmatmul.f32.gmra.mxu0 %v853
  %v1641 = vpop.f32.mrf.mxu0
  %v1642 = vadd.f32 0.0, %v1641
  %1643 = vmatmul.f32.gmra.mxu0 %v856
  %v1644 = vpop.f32.mrf.mxu0
  %v1645 = vadd.f32 0.0, %v1644
  %1646 = vmatmul.f32.gmra.mxu0 %v859
  %v1647 = vpop.f32.mrf.mxu0
  %v1648 = vadd.f32 0.0, %v1647
  %1649 = vmatmul.f32.gmra.mxu0 %v862
  %v1650 = vpop.f32.mrf.mxu0
  %v1651 = vadd.f32 0.0, %v1650
  %1652 = vmatmul.f32.gmra.mxu0 %v865
  %v1653 = vpop.f32.mrf.mxu0
  %v1654 = vadd.f32 0.0, %v1653
  %1655 = vmatmul.f32.gmra.mxu0 %v868
  %v1656 = vpop.f32.mrf.mxu0
  %v1657 = vadd.f32 0.0, %v1656
  %1658 = vmatmul.f32.gmra.mxu0 %v871
  %v1659 = vpop.f32.mrf.mxu0
  %v1660 = vadd.f32 0.0, %v1659
  %1661 = vmatmul.f32.gmra.mxu0 %v874
  %v1662 = vpop.f32.mrf.mxu0
  %v1663 = vadd.f32 0.0, %v1662
  %1664 = vmatmul.f32.gmra.mxu0 %v877
  %v1665 = vpop.f32.mrf.mxu0
  %v1666 = vadd.f32 0.0, %v1665
  %1667 = vmatmul.f32.gmra.mxu0 %v880
  %v1668 = vpop.f32.mrf.mxu0
  %v1669 = vadd.f32 0.0, %v1668
  %1670 = vmatmul.f32.gmra.mxu0 %v883
  %v1671 = vpop.f32.mrf.mxu0
  %v1672 = vadd.f32 0.0, %v1671
  %1673 = vmatmul.f32.gmra.mxu0 %v886
  %v1674 = vpop.f32.mrf.mxu0
  %v1675 = vadd.f32 0.0, %v1674
  %1676 = vmatmul.f32.gmra.mxu0 %v889
  %v1677 = vpop.f32.mrf.mxu0
  %v1678 = vadd.f32 0.0, %v1677
  %1679 = vmatmul.f32.gmra.mxu0 %v892
  %v1680 = vpop.f32.mrf.mxu0
  %v1681 = vadd.f32 0.0, %v1680
  %1682 = vmatmul.f32.gmra.mxu0 %v895
  %v1683 = vpop.f32.mrf.mxu0
  %v1684 = vadd.f32 0.0, %v1683
  %1685 = vmatmul.f32.gmra.mxu0 %v898
  %v1686 = vpop.f32.mrf.mxu0
  %v1687 = vadd.f32 0.0, %v1686
  %1688 = vmatmul.f32.gmra.mxu0 %v901
  %v1689 = vpop.f32.mrf.mxu0
  %v1690 = vadd.f32 0.0, %v1689
  %1691 = vmatmul.f32.gmra.mxu0 %v904
  %v1692 = vpop.f32.mrf.mxu0
  %v1693 = vadd.f32 0.0, %v1692
  %1694 = vmatmul.f32.gmra.mxu0 %v907
  %v1695 = vpop.f32.mrf.mxu0
  %v1696 = vadd.f32 0.0, %v1695
  %1697 = vmatmul.f32.gmra.mxu0 %v910
  %v1698 = vpop.f32.mrf.mxu0
  %v1699 = vadd.f32 0.0, %v1698
  %1700 = vmatmul.f32.gmra.mxu0 %v913
  %v1701 = vpop.f32.mrf.mxu0
  %v1702 = vadd.f32 0.0, %v1701
  %1703 = vmatmul.f32.gmra.mxu0 %v916
  %v1704 = vpop.f32.mrf.mxu0
  %v1705 = vadd.f32 0.0, %v1704
  %1706 = vmatmul.f32.gmra.mxu0 %v919
  %v1707 = vpop.f32.mrf.mxu0
  %v1708 = vadd.f32 0.0, %v1707
  %1709 = vmatmul.f32.gmra.mxu0 %v922
  %v1710 = vpop.f32.mrf.mxu0
  %v1711 = vadd.f32 0.0, %v1710
  %1712 = vmatmul.f32.gmra.mxu0 %v925
  %v1713 = vpop.f32.mrf.mxu0
  %v1714 = vadd.f32 0.0, %v1713
  %1715 = vmatmul.f32.gmra.mxu0 %v928
  %v1716 = vpop.f32.mrf.mxu0
  %v1717 = vadd.f32 0.0, %v1716
  %1718 = vmatmul.f32.gmra.mxu0 %v931
  %v1719 = vpop.f32.mrf.mxu0
  %v1720 = vadd.f32 0.0, %v1719
  %1721 = vmatmul.f32.gmra.mxu0 %v934
  %v1722 = vpop.f32.mrf.mxu0
  %v1723 = vadd.f32 0.0, %v1722
  %1724 = vmatmul.f32.gmra.mxu0 %v937
  %v1725 = vpop.f32.mrf.mxu0
  %v1726 = vadd.f32 0.0, %v1725
  %1727 = vmatmul.f32.gmra.mxu0 %v940
  %v1728 = vpop.f32.mrf.mxu0
  %v1729 = vadd.f32 0.0, %v1728
  %1730 = vmatmul.f32.gmra.mxu0 %v943
  %v1731 = vpop.f32.mrf.mxu0
  %v1732 = vadd.f32 0.0, %v1731
  %1733 = vmatmul.f32.gmra.mxu0 %v946
  %v1734 = vpop.f32.mrf.mxu0
  %v1735 = vadd.f32 0.0, %v1734
  %1736 = vmatmul.f32.gmra.mxu0 %v949
  %v1737 = vpop.f32.mrf.mxu0
  %v1738 = vadd.f32 0.0, %v1737
  %1739 = vmatmul.f32.gmra.mxu0 %v952
  %v1740 = vpop.f32.mrf.mxu0
  %v1741 = vadd.f32 0.0, %v1740
  %1742 = vmatmul.f32.gmra.mxu0 %v955
  %v1743 = vpop.f32.mrf.mxu0
  %v1744 = vadd.f32 0.0, %v1743
  %1745 = vmatmul.f32.gmra.mxu0 %v958
  %v1746 = vpop.f32.mrf.mxu0
  %v1747 = vadd.f32 0.0, %v1746
  %1748 = vmatmul.f32.gmra.mxu0 %v961
  %v1749 = vpop.f32.mrf.mxu0
  %v1750 = vadd.f32 0.0, %v1749
  %1751 = vmatmul.f32.gmra.mxu0 %v964
  %v1752 = vpop.f32.mrf.mxu0
  %v1753 = vadd.f32 0.0, %v1752
  %1754 = vmatmul.f32.gmra.mxu0 %v967
  %v1755 = vpop.f32.mrf.mxu0
  %v1756 = vadd.f32 0.0, %v1755
  %1757 = vmatmul.f32.gmra.mxu0 %v970
  %v1758 = vpop.f32.mrf.mxu0
  %v1759 = vadd.f32 0.0, %v1758
  %1760 = vmatmul.f32.gmra.mxu0 %v973
  %v1761 = vpop.f32.mrf.mxu0
  %v1762 = vadd.f32 0.0, %v1761
  %1763 = vmatmul.f32.gmra.mxu0 %v976
  %v1764 = vpop.f32.mrf.mxu0
  %v1765 = vadd.f32 0.0, %v1764
  %1766 = vmatmul.f32.gmra.mxu0 %v979
  %v1767 = vpop.f32.mrf.mxu0
  %v1768 = vadd.f32 0.0, %v1767
  %1769 = vmatmul.f32.gmra.mxu0 %v982
  %v1770 = vpop.f32.mrf.mxu0
  %v1771 = vadd.f32 0.0, %v1770
  %1772 = vmatmul.f32.gmra.mxu0 %v985
  %v1773 = vpop.f32.mrf.mxu0
  %v1774 = vadd.f32 0.0, %v1773
  %1775 = vmatmul.f32.gmra.mxu0 %v988
  %v1776 = vpop.f32.mrf.mxu0
  %v1777 = vadd.f32 0.0, %v1776
  %1778 = vmatmul.f32.gmra.mxu0 %v991
  %v1779 = vpop.f32.mrf.mxu0
  %v1780 = vadd.f32 0.0, %v1779
  %1781 = vmatmul.f32.gmra.mxu0 %v994
  %v1782 = vpop.f32.mrf.mxu0
  %v1783 = vadd.f32 0.0, %v1782
  %1784 = vmatmul.f32.gmra.mxu0 %v997
  %v1785 = vpop.f32.mrf.mxu0
  %v1786 = vadd.f32 0.0, %v1785
  %1787 = vmatmul.f32.gmra.mxu0 %v1000
  %v1788 = vpop.f32.mrf.mxu0
  %v1789 = vadd.f32 0.0, %v1788
  %1790 = vmatmul.f32.gmra.mxu0 %v1003
  %v1791 = vpop.f32.mrf.mxu0
  %v1792 = vadd.f32 0.0, %v1791
  %1793 = vmatmul.f32.gmra.mxu0 %v1006
  %v1794 = vpop.f32.mrf.mxu0
  %v1795 = vadd.f32 0.0, %v1794
  %1796 = vmatmul.f32.gmra.mxu0 %v1009
  %v1797 = vpop.f32.mrf.mxu0
  %v1798 = vadd.f32 0.0, %v1797
  %1799 = vmatmul.f32.gmra.mxu0 %v1012
  %v1800 = vpop.f32.mrf.mxu0
  %v1801 = vadd.f32 0.0, %v1800
  %1802 = vmatmul.f32.gmra.mxu0 %v1015
  %v1803 = vpop.f32.mrf.mxu0
  %v1804 = vadd.f32 0.0, %v1803
  %1805 = vmatmul.f32.gmra.mxu0 %v1018
  %v1806 = vpop.f32.mrf.mxu0
  %v1807 = vadd.f32 0.0, %v1806
  %1808 = vmatmul.f32.gmra.mxu0 %v1021
  %v1809 = vpop.f32.mrf.mxu0
  %v1810 = vadd.f32 0.0, %v1809
  %1811 = vmatmul.f32.gmra.mxu0 %v1024
  %v1812 = vpop.f32.mrf.mxu0
  %v1813 = vadd.f32 0.0, %v1812
  %1814 = vmatmul.f32.gmra.mxu0 %v1027
  %v1815 = vpop.f32.mrf.mxu0
  %v1816 = vadd.f32 0.0, %v1815
  %1817 = vmatmul.f32.gmra.mxu0 %v1030
  %v1818 = vpop.f32.mrf.mxu0
  %v1819 = vadd.f32 0.0, %v1818
  %1820 = vmatmul.f32.gmra.mxu0 %v1033
  %v1821 = vpop.f32.mrf.mxu0
  %v1822 = vadd.f32 0.0, %v1821
  %1823 = vmatmul.f32.gmra.mxu0 %v1036
  %v1824 = vpop.f32.mrf.mxu0
  %v1825 = vadd.f32 0.0, %v1824
  %1826 = vmatmul.f32.gmra.mxu0 %v1039
  %v1827 = vpop.f32.mrf.mxu0
  %v1828 = vadd.f32 0.0, %v1827
  %1829 = vdwg.mxu0
  %v1830 = vmax.f32 %v1063, %v1255
  %v1831 = vmax.f32 %v1066, %v1258
  %v1832 = vmax.f32 %v1069, %v1261
  %v1833 = vmax.f32 %v1072, %v1264
  %v1834 = vmax.f32 %v1075, %v1267
  %v1835 = vmax.f32 %v1078, %v1270
  %v1836 = vmax.f32 %v1081, %v1273
  %v1837 = vmax.f32 %v1084, %v1276
  %v1838 = vmax.f32 %v1087, %v1279
  %v1839 = vmax.f32 %v1090, %v1282
  %v1840 = vmax.f32 %v1093, %v1285
  %v1841 = vmax.f32 %v1096, %v1288
  %v1842 = vmax.f32 %v1099, %v1291
  %v1843 = vmax.f32 %v1102, %v1294
  %v1844 = vmax.f32 %v1105, %v1297
  %v1845 = vmax.f32 %v1108, %v1300
  %v1846 = vmax.f32 %v1111, %v1303
  %v1847 = vmax.f32 %v1114, %v1306
  %v1848 = vmax.f32 %v1117, %v1309
  %v1849 = vmax.f32 %v1120, %v1312
  %v1850 = vmax.f32 %v1123, %v1315
  %v1851 = vmax.f32 %v1126, %v1318
  %v1852 = vmax.f32 %v1129, %v1321
  %v1853 = vmax.f32 %v1132, %v1324
  %v1854 = vmax.f32 %v1135, %v1327
  %v1855 = vmax.f32 %v1138, %v1330
  %v1856 = vmax.f32 %v1141, %v1333
  %v1857 = vmax.f32 %v1144, %v1336
  %v1858 = vmax.f32 %v1147, %v1339
  %v1859 = vmax.f32 %v1150, %v1342
  %v1860 = vmax.f32 %v1153, %v1345
  %v1861 = vmax.f32 %v1156, %v1348
  %v1862 = vmax.f32 %v1159, %v1351
  %v1863 = vmax.f32 %v1162, %v1354
  %v1864 = vmax.f32 %v1165, %v1357
  %v1865 = vmax.f32 %v1168, %v1360
  %v1866 = vmax.f32 %v1171, %v1363
  %v1867 = vmax.f32 %v1174, %v1366
  %v1868 = vmax.f32 %v1177, %v1369
  %v1869 = vmax.f32 %v1180, %v1372
  %v1870 = vmax.f32 %v1183, %v1375
  %v1871 = vmax.f32 %v1186, %v1378
  %v1872 = vmax.f32 %v1189, %v1381
  %v1873 = vmax.f32 %v1192, %v1384
  %v1874 = vmax.f32 %v1195, %v1387
  %v1875 = vmax.f32 %v1198, %v1390
  %v1876 = vmax.f32 %v1201, %v1393
  %v1877 = vmax.f32 %v1204, %v1396
  %v1878 = vmax.f32 %v1207, %v1399
  %v1879 = vmax.f32 %v1210, %v1402
  %v1880 = vmax.f32 %v1213, %v1405
  %v1881 = vmax.f32 %v1216, %v1408
  %v1882 = vmax.f32 %v1219, %v1411
  %v1883 = vmax.f32 %v1222, %v1414
  %v1884 = vmax.f32 %v1225, %v1417
  %v1885 = vmax.f32 %v1228, %v1420
  %v1886 = vmax.f32 %v1231, %v1423
  %v1887 = vmax.f32 %v1234, %v1426
  %v1888 = vmax.f32 %v1237, %v1429
  %v1889 = vmax.f32 %v1240, %v1432
  %v1890 = vmax.f32 %v1243, %v1435
  %v1891 = vmax.f32 %v1246, %v1438
  %v1892 = vmax.f32 %v1249, %v1441
  %v1893 = vmax.f32 %v1252, %v1444
  %v1894 = vmax.f32 %v1447, %v1639
  %v1895 = vmax.f32 %v1450, %v1642
  %v1896 = vmax.f32 %v1453, %v1645
  %v1897 = vmax.f32 %v1456, %v1648
  %v1898 = vmax.f32 %v1459, %v1651
  %v1899 = vmax.f32 %v1462, %v1654
  %v1900 = vmax.f32 %v1465, %v1657
  %v1901 = vmax.f32 %v1468, %v1660
  %v1902 = vmax.f32 %v1471, %v1663
  %v1903 = vmax.f32 %v1474, %v1666
  %v1904 = vmax.f32 %v1477, %v1669
  %v1905 = vmax.f32 %v1480, %v1672
  %v1906 = vmax.f32 %v1483, %v1675
  %v1907 = vmax.f32 %v1486, %v1678
  %v1908 = vmax.f32 %v1489, %v1681
  %v1909 = vmax.f32 %v1492, %v1684
  %v1910 = vmax.f32 %v1495, %v1687
  %v1911 = vmax.f32 %v1498, %v1690
  %v1912 = vmax.f32 %v1501, %v1693
  %v1913 = vmax.f32 %v1504, %v1696
  %v1914 = vmax.f32 %v1507, %v1699
  %v1915 = vmax.f32 %v1510, %v1702
  %v1916 = vmax.f32 %v1513, %v1705
  %v1917 = vmax.f32 %v1516, %v1708
  %v1918 = vmax.f32 %v1519, %v1711
  %v1919 = vmax.f32 %v1522, %v1714
  %v1920 = vmax.f32 %v1525, %v1717
  %v1921 = vmax.f32 %v1528, %v1720
  %v1922 = vmax.f32 %v1531, %v1723
  %v1923 = vmax.f32 %v1534, %v1726
  %v1924 = vmax.f32 %v1537, %v1729
  %v1925 = vmax.f32 %v1540, %v1732
  %v1926 = vmax.f32 %v1543, %v1735
  %v1927 = vmax.f32 %v1546, %v1738
  %v1928 = vmax.f32 %v1549, %v1741
  %v1929 = vmax.f32 %v1552, %v1744
  %v1930 = vmax.f32 %v1555, %v1747
  %v1931 = vmax.f32 %v1558, %v1750
  %v1932 = vmax.f32 %v1561, %v1753
  %v1933 = vmax.f32 %v1564, %v1756
  %v1934 = vmax.f32 %v1567, %v1759
  %v1935 = vmax.f32 %v1570, %v1762
  %v1936 = vmax.f32 %v1573, %v1765
  %v1937 = vmax.f32 %v1576, %v1768
  %v1938 = vmax.f32 %v1579, %v1771
  %v1939 = vmax.f32 %v1582, %v1774
  %v1940 = vmax.f32 %v1585, %v1777
  %v1941 = vmax.f32 %v1588, %v1780
  %v1942 = vmax.f32 %v1591, %v1783
  %v1943 = vmax.f32 %v1594, %v1786
  %v1944 = vmax.f32 %v1597, %v1789
  %v1945 = vmax.f32 %v1600, %v1792
  %v1946 = vmax.f32 %v1603, %v1795
  %v1947 = vmax.f32 %v1606, %v1798
  %v1948 = vmax.f32 %v1609, %v1801
  %v1949 = vmax.f32 %v1612, %v1804
  %v1950 = vmax.f32 %v1615, %v1807
  %v1951 = vmax.f32 %v1618, %v1810
  %v1952 = vmax.f32 %v1621, %v1813
  %v1953 = vmax.f32 %v1624, %v1816
  %v1954 = vmax.f32 %v1627, %v1819
  %v1955 = vmax.f32 %v1630, %v1822
  %v1956 = vmax.f32 %v1633, %v1825
  %v1957 = vmax.f32 %v1636, %v1828
  %v1958 = vmax.f32 %v1830, %v1894
  %v1959 = vmax.f32 %v1831, %v1895
  %v1960 = vmax.f32 %v1832, %v1896
  %v1961 = vmax.f32 %v1833, %v1897
  %v1962 = vmax.f32 %v1834, %v1898
  %v1963 = vmax.f32 %v1835, %v1899
  %v1964 = vmax.f32 %v1836, %v1900
  %v1965 = vmax.f32 %v1837, %v1901
  %v1966 = vmax.f32 %v1838, %v1902
  %v1967 = vmax.f32 %v1839, %v1903
  %v1968 = vmax.f32 %v1840, %v1904
  %v1969 = vmax.f32 %v1841, %v1905
  %v1970 = vmax.f32 %v1842, %v1906
  %v1971 = vmax.f32 %v1843, %v1907
  %v1972 = vmax.f32 %v1844, %v1908
  %v1973 = vmax.f32 %v1845, %v1909
  %v1974 = vmax.f32 %v1846, %v1910
  %v1975 = vmax.f32 %v1847, %v1911
  %v1976 = vmax.f32 %v1848, %v1912
  %v1977 = vmax.f32 %v1849, %v1913
  %v1978 = vmax.f32 %v1850, %v1914
  %v1979 = vmax.f32 %v1851, %v1915
  %v1980 = vmax.f32 %v1852, %v1916
  %v1981 = vmax.f32 %v1853, %v1917
  %v1982 = vmax.f32 %v1854, %v1918
  %v1983 = vmax.f32 %v1855, %v1919
  %v1984 = vmax.f32 %v1856, %v1920
  %v1985 = vmax.f32 %v1857, %v1921
  %v1986 = vmax.f32 %v1858, %v1922
  %v1987 = vmax.f32 %v1859, %v1923
  %v1988 = vmax.f32 %v1860, %v1924
  %v1989 = vmax.f32 %v1861, %v1925
  %v1990 = vmax.f32 %v1862, %v1926
  %v1991 = vmax.f32 %v1863, %v1927
  %v1992 = vmax.f32 %v1864, %v1928
  %v1993 = vmax.f32 %v1865, %v1929
  %v1994 = vmax.f32 %v1866, %v1930
  %v1995 = vmax.f32 %v1867, %v1931
  %v1996 = vmax.f32 %v1868, %v1932
  %v1997 = vmax.f32 %v1869, %v1933
  %v1998 = vmax.f32 %v1870, %v1934
  %v1999 = vmax.f32 %v1871, %v1935
  %v2000 = vmax.f32 %v1872, %v1936
  %v2001 = vmax.f32 %v1873, %v1937
  %v2002 = vmax.f32 %v1874, %v1938
  %v2003 = vmax.f32 %v1875, %v1939
  %v2004 = vmax.f32 %v1876, %v1940
  %v2005 = vmax.f32 %v1877, %v1941
  %v2006 = vmax.f32 %v1878, %v1942
  %v2007 = vmax.f32 %v1879, %v1943
  %v2008 = vmax.f32 %v1880, %v1944
  %v2009 = vmax.f32 %v1881, %v1945
  %v2010 = vmax.f32 %v1882, %v1946
  %v2011 = vmax.f32 %v1883, %v1947
  %v2012 = vmax.f32 %v1884, %v1948
  %v2013 = vmax.f32 %v1885, %v1949
  %v2014 = vmax.f32 %v1886, %v1950
  %v2015 = vmax.f32 %v1887, %v1951
  %v2016 = vmax.f32 %v1888, %v1952
  %v2017 = vmax.f32 %v1889, %v1953
  %v2018 = vmax.f32 %v1890, %v1954
  %v2019 = vmax.f32 %v1891, %v1955
  %v2020 = vmax.f32 %v1892, %v1956
  %v2021 = vmax.f32 %v1893, %v1957
  %v2022 = vld [vmem:[%s2] sm:$0x1]
  %v2024 = vperm.slane %v2022, 0
  %v2026 = vadd.f32 %v1958, %v2024
  %v2027 = vadd.f32 %v1959, %v2024
  %v2028 = vadd.f32 %v1960, %v2024
  %v2029 = vadd.f32 %v1961, %v2024
  %v2030 = vadd.f32 %v1962, %v2024
  %v2031 = vadd.f32 %v1963, %v2024
  %v2032 = vadd.f32 %v1964, %v2024
  %v2033 = vadd.f32 %v1965, %v2024
  %v2034 = vadd.f32 %v1966, %v2024
  %v2035 = vadd.f32 %v1967, %v2024
  %v2036 = vadd.f32 %v1968, %v2024
  %v2037 = vadd.f32 %v1969, %v2024
  %v2038 = vadd.f32 %v1970, %v2024
  %v2039 = vadd.f32 %v1971, %v2024
  %v2040 = vadd.f32 %v1972, %v2024
  %v2041 = vadd.f32 %v1973, %v2024
  %v2042 = vadd.f32 %v1974, %v2024
  %v2043 = vadd.f32 %v1975, %v2024
  %v2044 = vadd.f32 %v1976, %v2024
  %v2045 = vadd.f32 %v1977, %v2024
  %v2046 = vadd.f32 %v1978, %v2024
  %v2047 = vadd.f32 %v1979, %v2024
  %v2048 = vadd.f32 %v1980, %v2024
  %v2049 = vadd.f32 %v1981, %v2024
  %v2050 = vadd.f32 %v1982, %v2024
  %v2051 = vadd.f32 %v1983, %v2024
  %v2052 = vadd.f32 %v1984, %v2024
  %v2053 = vadd.f32 %v1985, %v2024
  %v2054 = vadd.f32 %v1986, %v2024
  %v2055 = vadd.f32 %v1987, %v2024
  %v2056 = vadd.f32 %v1988, %v2024
  %v2057 = vadd.f32 %v1989, %v2024
  %v2058 = vadd.f32 %v1990, %v2024
  %v2059 = vadd.f32 %v1991, %v2024
  %v2060 = vadd.f32 %v1992, %v2024
  %v2061 = vadd.f32 %v1993, %v2024
  %v2062 = vadd.f32 %v1994, %v2024
  %v2063 = vadd.f32 %v1995, %v2024
  %v2064 = vadd.f32 %v1996, %v2024
  %v2065 = vadd.f32 %v1997, %v2024
  %v2066 = vadd.f32 %v1998, %v2024
  %v2067 = vadd.f32 %v1999, %v2024
  %v2068 = vadd.f32 %v2000, %v2024
  %v2069 = vadd.f32 %v2001, %v2024
  %v2070 = vadd.f32 %v2002, %v2024
  %v2071 = vadd.f32 %v2003, %v2024
  %v2072 = vadd.f32 %v2004, %v2024
  %v2073 = vadd.f32 %v2005, %v2024
  %v2074 = vadd.f32 %v2006, %v2024
  %v2075 = vadd.f32 %v2007, %v2024
  %v2076 = vadd.f32 %v2008, %v2024
  %v2077 = vadd.f32 %v2009, %v2024
  %v2078 = vadd.f32 %v2010, %v2024
  %v2079 = vadd.f32 %v2011, %v2024
  %v2080 = vadd.f32 %v2012, %v2024
  %v2081 = vadd.f32 %v2013, %v2024
  %v2082 = vadd.f32 %v2014, %v2024
  %v2083 = vadd.f32 %v2015, %v2024
  %v2084 = vadd.f32 %v2016, %v2024
  %v2085 = vadd.f32 %v2017, %v2024
  %v2086 = vadd.f32 %v2018, %v2024
  %v2087 = vadd.f32 %v2019, %v2024
  %v2088 = vadd.f32 %v2020, %v2024
  %v2089 = vadd.f32 %v2021, %v2024
  %v2090 = vmax.f32 %v2026, 0.0
  %v2091 = vmax.f32 %v2027, 0.0
  %v2092 = vmax.f32 %v2028, 0.0
  %v2093 = vmax.f32 %v2029, 0.0
  %v2094 = vmax.f32 %v2030, 0.0
  %v2095 = vmax.f32 %v2031, 0.0
  %v2096 = vmax.f32 %v2032, 0.0
  %v2097 = vmax.f32 %v2033, 0.0
  %v2098 = vmax.f32 %v2034, 0.0
  %v2099 = vmax.f32 %v2035, 0.0
  %v2100 = vmax.f32 %v2036, 0.0
  %v2101 = vmax.f32 %v2037, 0.0
  %v2102 = vmax.f32 %v2038, 0.0
  %v2103 = vmax.f32 %v2039, 0.0
  %v2104 = vmax.f32 %v2040, 0.0
  %v2105 = vmax.f32 %v2041, 0.0
  %v2106 = vmax.f32 %v2042, 0.0
  %v2107 = vmax.f32 %v2043, 0.0
  %v2108 = vmax.f32 %v2044, 0.0
  %v2109 = vmax.f32 %v2045, 0.0
  %v2110 = vmax.f32 %v2046, 0.0
  %v2111 = vmax.f32 %v2047, 0.0
  %v2112 = vmax.f32 %v2048, 0.0
  %v2113 = vmax.f32 %v2049, 0.0
  %v2114 = vmax.f32 %v2050, 0.0
  %v2115 = vmax.f32 %v2051, 0.0
  %v2116 = vmax.f32 %v2052, 0.0
  %v2117 = vmax.f32 %v2053, 0.0
  %v2118 = vmax.f32 %v2054, 0.0
  %v2119 = vmax.f32 %v2055, 0.0
  %v2120 = vmax.f32 %v2056, 0.0
  %v2121 = vmax.f32 %v2057, 0.0
  %v2122 = vmax.f32 %v2058, 0.0
  %v2123 = vmax.f32 %v2059, 0.0
  %v2124 = vmax.f32 %v2060, 0.0
  %v2125 = vmax.f32 %v2061, 0.0
  %v2126 = vmax.f32 %v2062, 0.0
  %v2127 = vmax.f32 %v2063, 0.0
  %v2128 = vmax.f32 %v2064, 0.0
  %v2129 = vmax.f32 %v2065, 0.0
  %v2130 = vmax.f32 %v2066, 0.0
  %v2131 = vmax.f32 %v2067, 0.0
  %v2132 = vmax.f32 %v2068, 0.0
  %v2133 = vmax.f32 %v2069, 0.0
  %v2134 = vmax.f32 %v2070, 0.0
  %v2135 = vmax.f32 %v2071, 0.0
  %v2136 = vmax.f32 %v2072, 0.0
  %v2137 = vmax.f32 %v2073, 0.0
  %v2138 = vmax.f32 %v2074, 0.0
  %v2139 = vmax.f32 %v2075, 0.0
  %v2140 = vmax.f32 %v2076, 0.0
  %v2141 = vmax.f32 %v2077, 0.0
  %v2142 = vmax.f32 %v2078, 0.0
  %v2143 = vmax.f32 %v2079, 0.0
  %v2144 = vmax.f32 %v2080, 0.0
  %v2145 = vmax.f32 %v2081, 0.0
  %v2146 = vmax.f32 %v2082, 0.0
  %v2147 = vmax.f32 %v2083, 0.0
  %v2148 = vmax.f32 %v2084, 0.0
  %v2149 = vmax.f32 %v2085, 0.0
  %v2150 = vmax.f32 %v2086, 0.0
  %v2151 = vmax.f32 %v2087, 0.0
  %v2152 = vmax.f32 %v2088, 0.0
  %v2153 = vmax.f32 %v2089, 0.0
  %vm2154 = vcmask 261120
  %2155 = vst.msk [vmem:[%s3] sm:$0xff] %vm2154, %v2090
  %2156 = vst.msk [vmem:[%s3 + $0x8] sm:$0xff] %vm2154, %v2091
  %2157 = vst.msk [vmem:[%s3 + $0x10] sm:$0xff] %vm2154, %v2092
  %2158 = vst.msk [vmem:[%s3 + $0x18] sm:$0xff] %vm2154, %v2093
  %2159 = vst.msk [vmem:[%s3 + $0x20] sm:$0xff] %vm2154, %v2094
  %2160 = vst.msk [vmem:[%s3 + $0x28] sm:$0xff] %vm2154, %v2095
  %2161 = vst.msk [vmem:[%s3 + $0x30] sm:$0xff] %vm2154, %v2096
  %2162 = vst.msk [vmem:[%s3 + $0x38] sm:$0xff] %vm2154, %v2097
  %2163 = vst.msk [vmem:[%s3 + $0x40] sm:$0xff] %vm2154, %v2098
  %2164 = vst.msk [vmem:[%s3 + $0x48] sm:$0xff] %vm2154, %v2099
  %2165 = vst.msk [vmem:[%s3 + $0x50] sm:$0xff] %vm2154, %v2100
  %2166 = vst.msk [vmem:[%s3 + $0x58] sm:$0xff] %vm2154, %v2101
  %2167 = vst.msk [vmem:[%s3 + $0x60] sm:$0xff] %vm2154, %v2102
  %2168 = vst.msk [vmem:[%s3 + $0x68] sm:$0xff] %vm2154, %v2103
  %2169 = vst.msk [vmem:[%s3 + $0x70] sm:$0xff] %vm2154, %v2104
  %2170 = vst.msk [vmem:[%s3 + $0x78] sm:$0xff] %vm2154, %v2105
  %2171 = vst.msk [vmem:[%s3 + $0x80] sm:$0xff] %vm2154, %v2106
  %2172 = vst.msk [vmem:[%s3 + $0x88] sm:$0xff] %vm2154, %v2107
  %2173 = vst.msk [vmem:[%s3 + $0x90] sm:$0xff] %vm2154, %v2108
  %2174 = vst.msk [vmem:[%s3 + $0x98] sm:$0xff] %vm2154, %v2109
  %2175 = vst.msk [vmem:[%s3 + $0xa0] sm:$0xff] %vm2154, %v2110
  %2176 = vst.msk [vmem:[%s3 + $0xa8] sm:$0xff] %vm2154, %v2111
  %2177 = vst.msk [vmem:[%s3 + $0xb0] sm:$0xff] %vm2154, %v2112
  %2178 = vst.msk [vmem:[%s3 + $0xb8] sm:$0xff] %vm2154, %v2113
  %2179 = vst.msk [vmem:[%s3 + $0xc0] sm:$0xff] %vm2154, %v2114
  %2180 = vst.msk [vmem:[%s3 + $0xc8] sm:$0xff] %vm2154, %v2115
  %2181 = vst.msk [vmem:[%s3 + $0xd0] sm:$0xff] %vm2154, %v2116
  %2182 = vst.msk [vmem:[%s3 + $0xd8] sm:$0xff] %vm2154, %v2117
  %2183 = vst.msk [vmem:[%s3 + $0xe0] sm:$0xff] %vm2154, %v2118
  %2184 = vst.msk [vmem:[%s3 + $0xe8] sm:$0xff] %vm2154, %v2119
  %2185 = vst.msk [vmem:[%s3 + $0xf0] sm:$0xff] %vm2154, %v2120
  %2186 = vst.msk [vmem:[%s3 + $0xf8] sm:$0xff] %vm2154, %v2121
  %2187 = vst.msk [vmem:[%s3 + $0x100] sm:$0xff] %vm2154, %v2122
  %2188 = vst.msk [vmem:[%s3 + $0x108] sm:$0xff] %vm2154, %v2123
  %2189 = vst.msk [vmem:[%s3 + $0x110] sm:$0xff] %vm2154, %v2124
  %2190 = vst.msk [vmem:[%s3 + $0x118] sm:$0xff] %vm2154, %v2125
  %2191 = vst.msk [vmem:[%s3 + $0x120] sm:$0xff] %vm2154, %v2126
  %2192 = vst.msk [vmem:[%s3 + $0x128] sm:$0xff] %vm2154, %v2127
  %2193 = vst.msk [vmem:[%s3 + $0x130] sm:$0xff] %vm2154, %v2128
  %2194 = vst.msk [vmem:[%s3 + $0x138] sm:$0xff] %vm2154, %v2129
  %2195 = vst.msk [vmem:[%s3 + $0x140] sm:$0xff] %vm2154, %v2130
  %2196 = vst.msk [vmem:[%s3 + $0x148] sm:$0xff] %vm2154, %v2131
  %2197 = vst.msk [vmem:[%s3 + $0x150] sm:$0xff] %vm2154, %v2132
  %2198 = vst.msk [vmem:[%s3 + $0x158] sm:$0xff] %vm2154, %v2133
  %2199 = vst.msk [vmem:[%s3 + $0x160] sm:$0xff] %vm2154, %v2134
  %2200 = vst.msk [vmem:[%s3 + $0x168] sm:$0xff] %vm2154, %v2135
  %2201 = vst.msk [vmem:[%s3 + $0x170] sm:$0xff] %vm2154, %v2136
  %2202 = vst.msk [vmem:[%s3 + $0x178] sm:$0xff] %vm2154, %v2137
  %2203 = vst.msk [vmem:[%s3 + $0x180] sm:$0xff] %vm2154, %v2138
  %2204 = vst.msk [vmem:[%s3 + $0x188] sm:$0xff] %vm2154, %v2139
  %2205 = vst.msk [vmem:[%s3 + $0x190] sm:$0xff] %vm2154, %v2140
  %2206 = vst.msk [vmem:[%s3 + $0x198] sm:$0xff] %vm2154, %v2141
  %2207 = vst.msk [vmem:[%s3 + $0x1a0] sm:$0xff] %vm2154, %v2142
  %2208 = vst.msk [vmem:[%s3 + $0x1a8] sm:$0xff] %vm2154, %v2143
  %2209 = vst.msk [vmem:[%s3 + $0x1b0] sm:$0xff] %vm2154, %v2144
  %2210 = vst.msk [vmem:[%s3 + $0x1b8] sm:$0xff] %vm2154, %v2145
  %2211 = vst.msk [vmem:[%s3 + $0x1c0] sm:$0xff] %vm2154, %v2146
  %2212 = vst.msk [vmem:[%s3 + $0x1c8] sm:$0xff] %vm2154, %v2147
  %2213 = vst.msk [vmem:[%s3 + $0x1d0] sm:$0xff] %vm2154, %v2148
  %2214 = vst.msk [vmem:[%s3 + $0x1d8] sm:$0xff] %vm2154, %v2149
  %2215 = vst.msk [vmem:[%s3 + $0x1e0] sm:$0xff] %vm2154, %v2150
  %2216 = vst.msk [vmem:[%s3 + $0x1e8] sm:$0xff] %vm2154, %v2151
  %2217 = vst.msk [vmem:[%s3 + $0x1f0] sm:$0xff] %vm2154, %v2152
  %2218 = vst.msk [vmem:[%s3 + $0x1f8] sm:$0xff] %vm2154, %v2153
  // Predicated region
  $region14: #{cnn_forward.3} parent=0 // pred_check
    _
  $region15: #{cnn_forward.3} parent=0 // pred_check_branch
    %2220 = sbr.rel (0) target = $region17
  $region16: #{cnn_forward.3} parent=0 // pred_region
    _
  $region17: #{cnn_forward.3} parent=0 // pred_fallthru
    _
  // Predicated region
  $region18: #{cnn_forward.3} parent=0 // pred_check
    _
  $region19: #{cnn_forward.3} parent=0 // pred_check_branch
    %2222 = sbr.rel (0) target = $region21
  $region20: #{cnn_forward.3} parent=0 // pred_region
    _
  $region21: #{cnn_forward.3} parent=0 // pred_fallthru
    _

// kernel: cnn_forward.4
$region0: #{cnn_forward.4}
  #allocation0 [shape = 'u32[]', space=smem, size = 0x4, offset = 0x4, fixed_abs, tag = 'smem constant byte address 0x4 - core index']
  #allocation1 [shape = 'u32[72,128]{1,0:T(1,128)}', space=vmem, size = 0x9000, scoped, tag = 'internal scratch']
  %s0 = inlined_call_operand.vmem [shape: f32[128,288], index: 0, kind: input, shape index: {}]
  %s1 = inlined_call_operand.vmem [shape: f32[288,64], index: 1, kind: input, shape index: {}]
  %s2 = inlined_call_operand.vmem [shape: f32[1,64], index: 2, kind: input, shape index: {}]
  %s3 = inlined_call_operand.vmem [shape: f32[32,64], index: 3, kind: output, shape index: {}]
  %s4 = sld [smem:[#allocation0]]
  $region22: #{cnn_forward.4} parent=0
    _
  %s6 = ssub.s32 1, %s4
  %s7 = scalar_select 0, %s6, %s4
  // Predicated region
  $region2: #{cnn_forward.4} parent=0 // pred_check
    _
  $region3: #{cnn_forward.4} parent=0 // pred_check_branch
    %9 = sbr.rel (0) target = $region5
  $region4: #{cnn_forward.4} parent=0 // pred_region
    _
  $region5: #{cnn_forward.4} parent=0 // pred_fallthru
    _
  // Predicated region
  $region6: #{cnn_forward.4} parent=0 // pred_check
    _
  $region7: #{cnn_forward.4} parent=0 // pred_check_branch
    %11 = sbr.rel (0) target = $region9
  $region8: #{cnn_forward.4} parent=0 // pred_region
    _
  $region9: #{cnn_forward.4} parent=0 // pred_fallthru
    _
  // Predicated region
  $region10: #{cnn_forward.4} parent=0 // pred_check
    _
  $region11: #{cnn_forward.4} parent=0 // pred_check_branch
    %13 = sbr.rel (0) target = $region13
  $region12: #{cnn_forward.4} parent=0 // pred_region
    _
  $region13: #{cnn_forward.4} parent=0 // pred_fallthru
    _
  %v14 = vld [vmem:[%s0] sm:$0xff]
  %v15 = vld [vmem:[%s0 + $0x8] sm:$0xff]
  %v16 = vld [vmem:[%s0 + $0x10] sm:$0xff]
  %v17 = vld [vmem:[%s0 + $0x18] sm:$0xff]
  %v18 = vld [vmem:[%s0 + $0x20] sm:$0xff]
  %v19 = vld [vmem:[%s0 + $0x28] sm:$0xff]
  %v20 = vld [vmem:[%s0 + $0x30] sm:$0xff]
  %v21 = vld [vmem:[%s0 + $0x38] sm:$0xff]
  %v22 = vld [vmem:[%s0 + $0x40] sm:$0xff]
  %v23 = vld [vmem:[%s0 + $0x48] sm:$0xff]
  %v24 = vld [vmem:[%s0 + $0x50] sm:$0xff]
  %v25 = vld [vmem:[%s0 + $0x58] sm:$0xff]
  %v26 = vld [vmem:[%s0 + $0x60] sm:$0xff]
  %v27 = vld [vmem:[%s0 + $0x68] sm:$0xff]
  %v28 = vld [vmem:[%s0 + $0x70] sm:$0xff]
  %v29 = vld [vmem:[%s0 + $0x78] sm:$0xff]
  %v30 = vld [vmem:[%s0 + $0x80] sm:$0xff]
  %v31 = vld [vmem:[%s0 + $0x88] sm:$0xff]
  %v32 = vld [vmem:[%s0 + $0x90] sm:$0xff]
  %v33 = vld [vmem:[%s0 + $0x98] sm:$0xff]
  %v34 = vld [vmem:[%s0 + $0xa0] sm:$0xff]
  %v35 = vld [vmem:[%s0 + $0xa8] sm:$0xff]
  %v36 = vld [vmem:[%s0 + $0xb0] sm:$0xff]
  %v37 = vld [vmem:[%s0 + $0xb8] sm:$0xff]
  %v38 = vld [vmem:[%s0 + $0xc0] sm:$0xff]
  %v39 = vld [vmem:[%s0 + $0xc8] sm:$0xff]
  %v40 = vld [vmem:[%s0 + $0xd0] sm:$0xff]
  %v41 = vld [vmem:[%s0 + $0xd8] sm:$0xff]
  %v42 = vld [vmem:[%s0 + $0xe0] sm:$0xff]
  %v43 = vld [vmem:[%s0 + $0xe8] sm:$0xff]
  %v44 = vld [vmem:[%s0 + $0xf0] sm:$0xff]
  %v45 = vld [vmem:[%s0 + $0xf8] sm:$0xff]
  %v46 = vld [vmem:[%s0 + $0x100] sm:$0xff]
  %v47 = vld [vmem:[%s0 + $0x108] sm:$0xff]
  %v48 = vld [vmem:[%s0 + $0x110] sm:$0xff]
  %v49 = vld [vmem:[%s0 + $0x118] sm:$0xff]
  %v50 = vld [vmem:[%s0 + $0x120] sm:$0xff]
  %v51 = vld [vmem:[%s0 + $0x128] sm:$0xff]
  %v52 = vld [vmem:[%s0 + $0x130] sm:$0xff]
  %v53 = vld [vmem:[%s0 + $0x138] sm:$0xff]
  %v54 = vld [vmem:[%s0 + $0x140] sm:$0xff]
  %v55 = vld [vmem:[%s0 + $0x148] sm:$0xff]
  %v56 = vld [vmem:[%s0 + $0x150] sm:$0xff]
  %v57 = vld [vmem:[%s0 + $0x158] sm:$0xff]
  %v58 = vld [vmem:[%s0 + $0x160] sm:$0xff]
  %v59 = vld [vmem:[%s0 + $0x168] sm:$0xff]
  %v60 = vld [vmem:[%s0 + $0x170] sm:$0xff]
  %v61 = vld [vmem:[%s0 + $0x178] sm:$0xff]
  %v62 = vld [vmem:[%s1] sm:$0xff]
  %v63 = vld [vmem:[%s1 + $0x8] sm:$0xff]
  %v64 = vld [vmem:[%s1 + $0x10] sm:$0xff]
  %v65 = vld [vmem:[%s1 + $0x18] sm:$0xff]
  %v66 = vld [vmem:[%s1 + $0x20] sm:$0xff]
  %v67 = vld [vmem:[%s1 + $0x28] sm:$0xff]
  %v68 = vld [vmem:[%s1 + $0x30] sm:$0xff]
  %v69 = vld [vmem:[%s1 + $0x38] sm:$0xff]
  %v70 = vld [vmem:[%s1 + $0x40] sm:$0xff]
  %v71 = vld [vmem:[%s1 + $0x48] sm:$0xff]
  %v72 = vld [vmem:[%s1 + $0x50] sm:$0xff]
  %v73 = vld [vmem:[%s1 + $0x58] sm:$0xff]
  %v74 = vld [vmem:[%s1 + $0x60] sm:$0xff]
  %v75 = vld [vmem:[%s1 + $0x68] sm:$0xff]
  %v76 = vld [vmem:[%s1 + $0x70] sm:$0xff]
  %v77 = vld [vmem:[%s1 + $0x78] sm:$0xff]
  %v78 = vld [vmem:[%s1 + $0x80] sm:$0xff]
  %v79 = vld [vmem:[%s1 + $0x88] sm:$0xff]
  %v80 = vld [vmem:[%s1 + $0x90] sm:$0xff]
  %v81 = vld [vmem:[%s1 + $0x98] sm:$0xff]
  %v82 = vld [vmem:[%s1 + $0xa0] sm:$0xff]
  %v83 = vld [vmem:[%s1 + $0xa8] sm:$0xff]
  %v84 = vld [vmem:[%s1 + $0xb0] sm:$0xff]
  %v85 = vld [vmem:[%s1 + $0xb8] sm:$0xff]
  %v86 = vld [vmem:[%s1 + $0xc0] sm:$0xff]
  %v87 = vld [vmem:[%s1 + $0xc8] sm:$0xff]
  %v88 = vld [vmem:[%s1 + $0xd0] sm:$0xff]
  %v89 = vld [vmem:[%s1 + $0xd8] sm:$0xff]
  %v90 = vld [vmem:[%s1 + $0xe0] sm:$0xff]
  %v91 = vld [vmem:[%s1 + $0xe8] sm:$0xff]
  %v92 = vld [vmem:[%s1 + $0xf0] sm:$0xff]
  %v93 = vld [vmem:[%s1 + $0xf8] sm:$0xff]
  %v94 = vld [vmem:[%s1 + $0x100] sm:$0xff]
  %v95 = vld [vmem:[%s1 + $0x108] sm:$0xff]
  %v96 = vld [vmem:[%s1 + $0x110] sm:$0xff]
  %v97 = vld [vmem:[%s1 + $0x118] sm:$0xff]
  %vm98 = vcmask 261120
  %v100 = vsel %vm98, %v16, 0
  %v103 = vsel %vm98, %v19, 0
  %v106 = vsel %vm98, %v22, 0
  %v109 = vsel %vm98, %v25, 0
  %v112 = vsel %vm98, %v28, 0
  %v115 = vsel %vm98, %v31, 0
  %v118 = vsel %vm98, %v34, 0
  %v121 = vsel %vm98, %v37, 0
  %v124 = vsel %vm98, %v40, 0
  %v127 = vsel %vm98, %v43, 0
  %v130 = vsel %vm98, %v46, 0
  %v133 = vsel %vm98, %v49, 0
  %v136 = vsel %vm98, %v52, 0
  %v139 = vsel %vm98, %v55, 0
  %v142 = vsel %vm98, %v58, 0
  %v145 = vsel %vm98, %v61, 0
  %147 = vmatpush.msra.mxu0 %v77
  %148 = vmatpush.msra.mxu0 %v76
  %149 = vmatpush.msra.mxu0 %v75
  %150 = vmatpush.msra.mxu0 %v74
  %151 = vmatpush.msra.mxu0 %v73
  %152 = vmatpush.msra.mxu0 %v72
  %153 = vmatpush.msra.mxu0 %v71
  %154 = vmatpush.msra.mxu0 %v70
  %155 = vmatpush.msra.mxu0 %v69
  %156 = vmatpush.msra.mxu0 %v68
  %157 = vmatpush.msra.mxu0 %v67
  %158 = vmatpush.msra.mxu0 %v66
  %159 = vmatpush.msra.mxu0 %v65
  %160 = vmatpush.msra.mxu0 %v64
  %161 = vmatpush.msra.mxu0 %v63
  %162 = vmatpush.msra.mxu0 %v62
  %163 = vmatmul.f32.gmra.mxu0 %v14
  %v164 = vpop.f32.mrf.mxu0
  %v165 = vadd.f32 0.0, %v164
  %166 = vmatmul.f32.gmra.mxu0 %v17
  %v167 = vpop.f32.mrf.mxu0
  %v168 = vadd.f32 0.0, %v167
  %169 = vmatmul.f32.gmra.mxu0 %v20
  %v170 = vpop.f32.mrf.mxu0
  %v171 = vadd.f32 0.0, %v170
  %172 = vmatmul.f32.gmra.mxu0 %v23
  %v173 = vpop.f32.mrf.mxu0
  %v174 = vadd.f32 0.0, %v173
  %175 = vmatmul.f32.gmra.mxu0 %v26
  %v176 = vpop.f32.mrf.mxu0
  %v177 = vadd.f32 0.0, %v176
  %178 = vmatmul.f32.gmra.mxu0 %v29
  %v179 = vpop.f32.mrf.mxu0
  %v180 = vadd.f32 0.0, %v179
  %181 = vmatmul.f32.gmra.mxu0 %v32
  %v182 = vpop.f32.mrf.mxu0
  %v183 = vadd.f32 0.0, %v182
  %184 = vmatmul.f32.gmra.mxu0 %v35
  %v185 = vpop.f32.mrf.mxu0
  %v186 = vadd.f32 0.0, %v185
  %187 = vmatmul.f32.gmra.mxu0 %v38
  %v188 = vpop.f32.mrf.mxu0
  %v189 = vadd.f32 0.0, %v188
  %190 = vmatmul.f32.gmra.mxu0 %v41
  %v191 = vpop.f32.mrf.mxu0
  %v192 = vadd.f32 0.0, %v191
  %193 = vmatmul.f32.gmra.mxu0 %v44
  %v194 = vpop.f32.mrf.mxu0
  %v195 = vadd.f32 0.0, %v194
  %196 = vmatmul.f32.gmra.mxu0 %v47
  %v197 = vpop.f32.mrf.mxu0
  %v198 = vadd.f32 0.0, %v197
  %199 = vmatmul.f32.gmra.mxu0 %v50
  %v200 = vpop.f32.mrf.mxu0
  %v201 = vadd.f32 0.0, %v200
  %202 = vmatmul.f32.gmra.mxu0 %v53
  %v203 = vpop.f32.mrf.mxu0
  %v204 = vadd.f32 0.0, %v203
  %205 = vmatmul.f32.gmra.mxu0 %v56
  %v206 = vpop.f32.mrf.mxu0
  %v207 = vadd.f32 0.0, %v206
  %208 = vmatmul.f32.gmra.mxu0 %v59
  %v209 = vpop.f32.mrf.mxu0
  %v210 = vadd.f32 0.0, %v209
  %211 = vdwg.mxu0
  %212 = vmatpush.msra.mxu0 %v93
  %213 = vmatpush.msra.mxu0 %v92
  %214 = vmatpush.msra.mxu0 %v91
  %215 = vmatpush.msra.mxu0 %v90
  %216 = vmatpush.msra.mxu0 %v89
  %217 = vmatpush.msra.mxu0 %v88
  %218 = vmatpush.msra.mxu0 %v87
  %219 = vmatpush.msra.mxu0 %v86
  %220 = vmatpush.msra.mxu0 %v85
  %221 = vmatpush.msra.mxu0 %v84
  %222 = vmatpush.msra.mxu0 %v83
  %223 = vmatpush.msra.mxu0 %v82
  %224 = vmatpush.msra.mxu0 %v81
  %225 = vmatpush.msra.mxu0 %v80
  %226 = vmatpush.msra.mxu0 %v79
  %227 = vmatpush.msra.mxu0 %v78
  %228 = vmatmul.f32.gmra.mxu0 %v15
  %v229 = vpop.f32.mrf.mxu0
  %v230 = vadd.f32 %v165, %v229
  %231 = vmatmul.f32.gmra.mxu0 %v18
  %v232 = vpop.f32.mrf.mxu0
  %v233 = vadd.f32 %v168, %v232
  %234 = vmatmul.f32.gmra.mxu0 %v21
  %v235 = vpop.f32.mrf.mxu0
  %v236 = vadd.f32 %v171, %v235
  %237 = vmatmul.f32.gmra.mxu0 %v24
  %v238 = vpop.f32.mrf.mxu0
  %v239 = vadd.f32 %v174, %v238
  %240 = vmatmul.f32.gmra.mxu0 %v27
  %v241 = vpop.f32.mrf.mxu0
  %v242 = vadd.f32 %v177, %v241
  %243 = vmatmul.f32.gmra.mxu0 %v30
  %v244 = vpop.f32.mrf.mxu0
  %v245 = vadd.f32 %v180, %v244
  %246 = vmatmul.f32.gmra.mxu0 %v33
  %v247 = vpop.f32.mrf.mxu0
  %v248 = vadd.f32 %v183, %v247
  %249 = vmatmul.f32.gmra.mxu0 %v36
  %v250 = vpop.f32.mrf.mxu0
  %v251 = vadd.f32 %v186, %v250
  %252 = vmatmul.f32.gmra.mxu0 %v39
  %v253 = vpop.f32.mrf.mxu0
  %v254 = vadd.f32 %v189, %v253
  %255 = vmatmul.f32.gmra.mxu0 %v42
  %v256 = vpop.f32.mrf.mxu0
  %v257 = vadd.f32 %v192, %v256
  %258 = vmatmul.f32.gmra.mxu0 %v45
  %v259 = vpop.f32.mrf.mxu0
  %v260 = vadd.f32 %v195, %v259
  %261 = vmatmul.f32.gmra.mxu0 %v48
  %v262 = vpop.f32.mrf.mxu0
  %v263 = vadd.f32 %v198, %v262
  %264 = vmatmul.f32.gmra.mxu0 %v51
  %v265 = vpop.f32.mrf.mxu0
  %v266 = vadd.f32 %v201, %v265
  %267 = vmatmul.f32.gmra.mxu0 %v54
  %v268 = vpop.f32.mrf.mxu0
  %v269 = vadd.f32 %v204, %v268
  %270 = vmatmul.f32.gmra.mxu0 %v57
  %v271 = vpop.f32.mrf.mxu0
  %v272 = vadd.f32 %v207, %v271
  %273 = vmatmul.f32.gmra.mxu0 %v60
  %v274 = vpop.f32.mrf.mxu0
  %v275 = vadd.f32 %v210, %v274
  %276 = vdwg.mxu0
  %277 = vmatpush.msra.mxu0 0.0
  %278 = vmatpush.msra.mxu0 0.0
  %279 = vmatpush.msra.mxu0 0.0
  %280 = vmatpush.msra.mxu0 0.0
  %281 = vmatpush.msra.mxu0 0.0
  %282 = vmatpush.msra.mxu0 0.0
  %283 = vmatpush.msra.mxu0 0.0
  %284 = vmatpush.msra.mxu0 0.0
  %285 = vmatpush.msra.mxu0 0.0
  %286 = vmatpush.msra.mxu0 0.0
  %287 = vmatpush.msra.mxu0 0.0
  %288 = vmatpush.msra.mxu0 0.0
  %289 = vmatpush.msra.mxu0 %v97
  %290 = vmatpush.msra.mxu0 %v96
  %291 = vmatpush.msra.mxu0 %v95
  %292 = vmatpush.msra.mxu0 %v94
  %293 = vmatmul.f32.gmra.mxu0 %v100
  %v294 = vpop.f32.mrf.mxu0
  %v295 = vadd.f32 %v230, %v294
  %296 = vmatmul.f32.gmra.mxu0 %v103
  %v297 = vpop.f32.mrf.mxu0
  %v298 = vadd.f32 %v233, %v297
  %299 = vmatmul.f32.gmra.mxu0 %v106
  %v300 = vpop.f32.mrf.mxu0
  %v301 = vadd.f32 %v236, %v300
  %302 = vmatmul.f32.gmra.mxu0 %v109
  %v303 = vpop.f32.mrf.mxu0
  %v304 = vadd.f32 %v239, %v303
  %305 = vmatmul.f32.gmra.mxu0 %v112
  %v306 = vpop.f32.mrf.mxu0
  %v307 = vadd.f32 %v242, %v306
  %308 = vmatmul.f32.gmra.mxu0 %v115
  %v309 = vpop.f32.mrf.mxu0
  %v310 = vadd.f32 %v245, %v309
  %311 = vmatmul.f32.gmra.mxu0 %v118
  %v312 = vpop.f32.mrf.mxu0
  %v313 = vadd.f32 %v248, %v312
  %314 = vmatmul.f32.gmra.mxu0 %v121
  %v315 = vpop.f32.mrf.mxu0
  %v316 = vadd.f32 %v251, %v315
  %317 = vmatmul.f32.gmra.mxu0 %v124
  %v318 = vpop.f32.mrf.mxu0
  %v319 = vadd.f32 %v254, %v318
  %320 = vmatmul.f32.gmra.mxu0 %v127
  %v321 = vpop.f32.mrf.mxu0
  %v322 = vadd.f32 %v257, %v321
  %323 = vmatmul.f32.gmra.mxu0 %v130
  %v324 = vpop.f32.mrf.mxu0
  %v325 = vadd.f32 %v260, %v324
  %326 = vmatmul.f32.gmra.mxu0 %v133
  %v327 = vpop.f32.mrf.mxu0
  %v328 = vadd.f32 %v263, %v327
  %329 = vmatmul.f32.gmra.mxu0 %v136
  %v330 = vpop.f32.mrf.mxu0
  %v331 = vadd.f32 %v266, %v330
  %332 = vmatmul.f32.gmra.mxu0 %v139
  %v333 = vpop.f32.mrf.mxu0
  %v334 = vadd.f32 %v269, %v333
  %335 = vmatmul.f32.gmra.mxu0 %v142
  %v336 = vpop.f32.mrf.mxu0
  %v337 = vadd.f32 %v272, %v336
  %338 = vmatmul.f32.gmra.mxu0 %v145
  %v339 = vpop.f32.mrf.mxu0
  %v340 = vadd.f32 %v275, %v339
  %341 = vdwg.mxu0
  %v342 = vmax.f32 %v295, %v307
  %v343 = vmax.f32 %v298, %v310
  %v344 = vmax.f32 %v301, %v313
  %v345 = vmax.f32 %v304, %v316
  %v346 = vmax.f32 %v319, %v331
  %v347 = vmax.f32 %v322, %v334
  %v348 = vmax.f32 %v325, %v337
  %v349 = vmax.f32 %v328, %v340
  %v350 = vmax.f32 %v342, %v346
  %v351 = vmax.f32 %v343, %v347
  %v352 = vmax.f32 %v344, %v348
  %v353 = vmax.f32 %v345, %v349
  %v354 = vld [vmem:[%s2] sm:$0x1]
  %v356 = vperm.slane %v354, 0
  %v358 = vadd.f32 %v350, %v356
  %v359 = vadd.f32 %v351, %v356
  %v360 = vadd.f32 %v352, %v356
  %v361 = vadd.f32 %v353, %v356
  %v362 = vmax.f32 %v358, 0.0
  %v363 = vmax.f32 %v359, 0.0
  %v364 = vmax.f32 %v360, 0.0
  %v365 = vmax.f32 %v361, 0.0
  %vm366 = vcmask 523264
  %367 = vst.msk [vmem:[%s3] sm:$0xff] %vm366, %v362
  %368 = vst.msk [vmem:[%s3 + $0x8] sm:$0xff] %vm366, %v363
  %369 = vst.msk [vmem:[%s3 + $0x10] sm:$0xff] %vm366, %v364
  %370 = vst.msk [vmem:[%s3 + $0x18] sm:$0xff] %vm366, %v365
  // Predicated region
  $region14: #{cnn_forward.4} parent=0 // pred_check
    _
  $region15: #{cnn_forward.4} parent=0 // pred_check_branch
    %372 = sbr.rel (0) target = $region17
  $region16: #{cnn_forward.4} parent=0 // pred_region
    _
  $region17: #{cnn_forward.4} parent=0 // pred_fallthru
    _
  // Predicated region
  $region18: #{cnn_forward.4} parent=0 // pred_check
    _
  $region19: #{cnn_forward.4} parent=0 // pred_check_branch
    %374 = sbr.rel (0) target = $region21
  $region20: #{cnn_forward.4} parent=0 // pred_region
    _
  $region21: #{cnn_forward.4} parent=0 // pred_fallthru
    _

// kernel: cnn_forward.5
$region0: #{cnn_forward.5}
  #allocation0 [shape = 'u32[]', space=smem, size = 0x4, offset = 0x4, fixed_abs, tag = 'smem constant byte address 0x4 - core index']
  #allocation1 [shape = 'u32[72,128]{1,0:T(1,128)}', space=vmem, size = 0x9000, scoped, tag = 'internal scratch']
  %s0 = inlined_call_operand.vmem [shape: f32[2,1024], index: 0, kind: input, shape index: {}]
  %s1 = inlined_call_operand.vmem [shape: f32[1024,625], index: 1, kind: input, shape index: {}]
  %s2 = inlined_call_operand.vmem [shape: f32[1,625], index: 2, kind: input, shape index: {}]
  %s3 = inlined_call_operand.vmem [shape: f32[625,10], index: 3, kind: input, shape index: {}]
  %s4 = inlined_call_operand.vmem [shape: f32[1,10], index: 4, kind: input, shape index: {}]
  %s5 = inlined_call_operand.hbm [shape: f32[2,10], index: 5, kind: output, shape index: {}]
  %s6 = sld [smem:[#allocation0]]
  $region30: #{cnn_forward.5} parent=0
    _
  %s8 = ssub.s32 1, %s6
  %s9 = scalar_select 0, %s8, %s6
  $region1: #{cnn_forward.5} parent=0
    #allocation2 [shape = 'u8[1024]{0}', space=vmem, size = 0x400, scoped, tag = 'output window, operand 0, single buffered']
    #allocation3 [shape = 's32[1]{0}', space=sflag, size = 0x4, scoped, tag = 'scoped memory for cnn_forward.5']
    %10 = vsyncpa [#allocation3], 0
    // Predicated region
    $region2: #{cnn_forward.5} parent=1 // pred_check
      _
    $region3: #{cnn_forward.5} parent=1 // pred_check_branch
      %12 = sbr.rel (0) target = $region5
    $region4: #{cnn_forward.5} parent=1 // pred_region
      _
    $region5: #{cnn_forward.5} parent=1 // pred_fallthru
      _
    // Predicated region
    $region6: #{cnn_forward.5} parent=1 // pred_check
      _
    $region7: #{cnn_forward.5} parent=1 // pred_check_branch
      %14 = sbr.rel (0) target = $region9
    $region8: #{cnn_forward.5} parent=1 // pred_region
      _
    $region9: #{cnn_forward.5} parent=1 // pred_fallthru
      _
    // Predicated region
    $region10: #{cnn_forward.5} parent=1 // pred_check
      _
    $region11: #{cnn_forward.5} parent=1 // pred_check_branch
      %16 = sbr.rel (0) target = $region13
    $region12: #{cnn_forward.5} parent=1 // pred_region
      _
    $region13: #{cnn_forward.5} parent=1 // pred_fallthru
      _
    // Predicated region
    $region14: #{cnn_forward.5} parent=1 // pred_check
      _
    $region15: #{cnn_forward.5} parent=1 // pred_check_branch
      %18 = sbr.rel (0) target = $region17
    $region16: #{cnn_forward.5} parent=1 // pred_region
      _
    $region17: #{cnn_forward.5} parent=1 // pred_fallthru
      _
    // Predicated region
    $region18: #{cnn_forward.5} parent=1 // pred_check
      _
    $region19: #{cnn_forward.5} parent=1 // pred_check_branch
      %20 = sbr.rel (0) target = $region21
    $region20: #{cnn_forward.5} parent=1 // pred_region
      _
    $region21: #{cnn_forward.5} parent=1 // pred_fallthru
      _
    %v21 = vld [vmem:[%s0] sm:$0xff]
    %v22 = vld [vmem:[%s0 + $0x8] sm:$0xff]
    %v23 = vld [vmem:[%s1] sm:$0xff]
    %v24 = vld [vmem:[%s1 + $0x8] sm:$0xff]
    %v25 = vld [vmem:[%s1 + $0x10] sm:$0xff]
    %v26 = vld [vmem:[%s1 + $0x18] sm:$0xff]
    %v27 = vld [vmem:[%s1 + $0x20] sm:$0xff]
    %v28 = vld [vmem:[%s1 + $0x28] sm:$0xff]
    %v29 = vld [vmem:[%s1 + $0x30] sm:$0xff]
    %v30 = vld [vmem:[%s1 + $0x38] sm:$0xff]
    %v31 = vld [vmem:[%s1 + $0x40] sm:$0xff]
    %v32 = vld [vmem:[%s1 + $0x48] sm:$0xff]
    %v33 = vld [vmem:[%s1 + $0x50] sm:$0xff]
    %v34 = vld [vmem:[%s1 + $0x58] sm:$0xff]
    %v35 = vld [vmem:[%s1 + $0x60] sm:$0xff]
    %v36 = vld [vmem:[%s1 + $0x68] sm:$0xff]
    %v37 = vld [vmem:[%s1 + $0x70] sm:$0xff]
    %v38 = vld [vmem:[%s1 + $0x78] sm:$0xff]
    %v39 = vld [vmem:[%s1 + $0x80] sm:$0xff]
    %v40 = vld [vmem:[%s1 + $0x88] sm:$0xff]
    %v41 = vld [vmem:[%s1 + $0x90] sm:$0xff]
    %v42 = vld [vmem:[%s1 + $0x98] sm:$0xff]
    %v43 = vld [vmem:[%s1 + $0xa0] sm:$0xff]
    %v44 = vld [vmem:[%s1 + $0xa8] sm:$0xff]
    %v45 = vld [vmem:[%s1 + $0xb0] sm:$0xff]
    %v46 = vld [vmem:[%s1 + $0xb8] sm:$0xff]
    %v47 = vld [vmem:[%s1 + $0xc0] sm:$0xff]
    %v48 = vld [vmem:[%s1 + $0xc8] sm:$0xff]
    %v49 = vld [vmem:[%s1 + $0xd0] sm:$0xff]
    %v50 = vld [vmem:[%s1 + $0xd8] sm:$0xff]
    %v51 = vld [vmem:[%s1 + $0xe0] sm:$0xff]
    %v52 = vld [vmem:[%s1 + $0xe8] sm:$0xff]
    %v53 = vld [vmem:[%s1 + $0xf0] sm:$0xff]
    %v54 = vld [vmem:[%s1 + $0xf8] sm:$0xff]
    %v55 = vld [vmem:[%s1 + $0x100] sm:$0xff]
    %v56 = vld [vmem:[%s1 + $0x108] sm:$0xff]
    %v57 = vld [vmem:[%s1 + $0x110] sm:$0xff]
    %v58 = vld [vmem:[%s1 + $0x118] sm:$0xff]
    %v59 = vld [vmem:[%s1 + $0x120] sm:$0xff]
    %v60 = vld [vmem:[%s1 + $0x128] sm:$0xff]
    %v61 = vld [vmem:[%s1 + $0x130] sm:$0xff]
    %v62 = vld [vmem:[%s1 + $0x138] sm:$0xff]
    %v63 = vld [vmem:[%s1 + $0x140] sm:$0xff]
    %v64 = vld [vmem:[%s1 + $0x148] sm:$0xff]
    %v65 = vld [vmem:[%s1 + $0x150] sm:$0xff]
    %v66 = vld [vmem:[%s1 + $0x158] sm:$0xff]
    %v67 = vld [vmem:[%s1 + $0x160] sm:$0xff]
    %v68 = vld [vmem:[%s1 + $0x168] sm:$0xff]
    %v69 = vld [vmem:[%s1 + $0x170] sm:$0xff]
    %v70 = vld [vmem:[%s1 + $0x178] sm:$0xff]
    %v71 = vld [vmem:[%s1 + $0x180] sm:$0xff]
    %v72 = vld [vmem:[%s1 + $0x188] sm:$0xff]
    %v73 = vld [vmem:[%s1 + $0x190] sm:$0xff]
    %v74 = vld [vmem:[%s1 + $0x198] sm:$0xff]
    %v75 = vld [vmem:[%s1 + $0x1a0] sm:$0xff]
    %v76 = vld [vmem:[%s1 + $0x1a8] sm:$0xff]
    %v77 = vld [vmem:[%s1 + $0x1b0] sm:$0xff]
    %v78 = vld [vmem:[%s1 + $0x1b8] sm:$0xff]
    %v79 = vld [vmem:[%s1 + $0x1c0] sm:$0xff]
    %v80 = vld [vmem:[%s1 + $0x1c8] sm:$0xff]
    %v81 = vld [vmem:[%s1 + $0x1d0] sm:$0xff]
    %v82 = vld [vmem:[%s1 + $0x1d8] sm:$0xff]
    %v83 = vld [vmem:[%s1 + $0x1e0] sm:$0xff]
    %v84 = vld [vmem:[%s1 + $0x1e8] sm:$0xff]
    %v85 = vld [vmem:[%s1 + $0x1f0] sm:$0xff]
    %v86 = vld [vmem:[%s1 + $0x1f8] sm:$0xff]
    %v87 = vld [vmem:[%s1 + $0x200] sm:$0xff]
    %v88 = vld [vmem:[%s1 + $0x208] sm:$0xff]
    %v89 = vld [vmem:[%s1 + $0x210] sm:$0xff]
    %v90 = vld [vmem:[%s1 + $0x218] sm:$0xff]
    %v91 = vld [vmem:[%s1 + $0x220] sm:$0xff]
    %v92 = vld [vmem:[%s1 + $0x228] sm:$0xff]
    %v93 = vld [vmem:[%s1 + $0x230] sm:$0xff]
    %v94 = vld [vmem:[%s1 + $0x238] sm:$0xff]
    %v95 = vld [vmem:[%s1 + $0x240] sm:$0xff]
    %v96 = vld [vmem:[%s1 + $0x248] sm:$0xff]
    %v97 = vld [vmem:[%s1 + $0x250] sm:$0xff]
    %v98 = vld [vmem:[%s1 + $0x258] sm:$0xff]
    %v99 = vld [vmem:[%s1 + $0x260] sm:$0xff]
    %v100 = vld [vmem:[%s1 + $0x268] sm:$0xff]
    %v101 = vld [vmem:[%s1 + $0x270] sm:$0xff]
    %v102 = vld [vmem:[%s1 + $0x278] sm:$0xff]
    %v103 = vld [vmem:[%s1 + $0x280] sm:$0xff]
    %v104 = vld [vmem:[%s1 + $0x288] sm:$0xff]
    %v105 = vld [vmem:[%s1 + $0x290] sm:$0xff]
    %v106 = vld [vmem:[%s1 + $0x298] sm:$0xff]
    %v107 = vld [vmem:[%s1 + $0x2a0] sm:$0xff]
    %v108 = vld [vmem:[%s1 + $0x2a8] sm:$0xff]
    %v109 = vld [vmem:[%s1 + $0x2b0] sm:$0xff]
    %v110 = vld [vmem:[%s1 + $0x2b8] sm:$0xff]
    %v111 = vld [vmem:[%s1 + $0x2c0] sm:$0xff]
    %v112 = vld [vmem:[%s1 + $0x2c8] sm:$0xff]
    %v113 = vld [vmem:[%s1 + $0x2d0] sm:$0xff]
    %v114 = vld [vmem:[%s1 + $0x2d8] sm:$0xff]
    %v115 = vld [vmem:[%s1 + $0x2e0] sm:$0xff]
    %v116 = vld [vmem:[%s1 + $0x2e8] sm:$0xff]
    %v117 = vld [vmem:[%s1 + $0x2f0] sm:$0xff]
    %v118 = vld [vmem:[%s1 + $0x2f8] sm:$0xff]
    %v119 = vld [vmem:[%s1 + $0x300] sm:$0xff]
    %v120 = vld [vmem:[%s1 + $0x308] sm:$0xff]
    %v121 = vld [vmem:[%s1 + $0x310] sm:$0xff]
    %v122 = vld [vmem:[%s1 + $0x318] sm:$0xff]
    %v123 = vld [vmem:[%s1 + $0x320] sm:$0xff]
    %v124 = vld [vmem:[%s1 + $0x328] sm:$0xff]
    %v125 = vld [vmem:[%s1 + $0x330] sm:$0xff]
    %v126 = vld [vmem:[%s1 + $0x338] sm:$0xff]
    %v127 = vld [vmem:[%s1 + $0x340] sm:$0xff]
    %v128 = vld [vmem:[%s1 + $0x348] sm:$0xff]
    %v129 = vld [vmem:[%s1 + $0x350] sm:$0xff]
    %v130 = vld [vmem:[%s1 + $0x358] sm:$0xff]
    %v131 = vld [vmem:[%s1 + $0x360] sm:$0xff]
    %v132 = vld [vmem:[%s1 + $0x368] sm:$0xff]
    %v133 = vld [vmem:[%s1 + $0x370] sm:$0xff]
    %v134 = vld [vmem:[%s1 + $0x378] sm:$0xff]
    %v135 = vld [vmem:[%s1 + $0x380] sm:$0xff]
    %v136 = vld [vmem:[%s1 + $0x388] sm:$0xff]
    %v137 = vld [vmem:[%s1 + $0x390] sm:$0xff]
    %v138 = vld [vmem:[%s1 + $0x398] sm:$0xff]
    %v139 = vld [vmem:[%s1 + $0x3a0] sm:$0xff]
    %v140 = vld [vmem:[%s1 + $0x3a8] sm:$0xff]
    %v141 = vld [vmem:[%s1 + $0x3b0] sm:$0xff]
    %v142 = vld [vmem:[%s1 + $0x3b8] sm:$0xff]
    %v143 = vld [vmem:[%s1 + $0x3c0] sm:$0xff]
    %v144 = vld [vmem:[%s1 + $0x3c8] sm:$0xff]
    %v145 = vld [vmem:[%s1 + $0x3d0] sm:$0xff]
    %v146 = vld [vmem:[%s1 + $0x3d8] sm:$0xff]
    %v147 = vld [vmem:[%s1 + $0x3e0] sm:$0xff]
    %v148 = vld [vmem:[%s1 + $0x3e8] sm:$0xff]
    %v149 = vld [vmem:[%s1 + $0x3f0] sm:$0xff]
    %v150 = vld [vmem:[%s1 + $0x3f8] sm:$0xff]
    %v151 = vld [vmem:[%s1 + $0x400] sm:$0xff]
    %v152 = vld [vmem:[%s1 + $0x408] sm:$0xff]
    %v153 = vld [vmem:[%s1 + $0x410] sm:$0xff]
    %v154 = vld [vmem:[%s1 + $0x418] sm:$0xff]
    %v155 = vld [vmem:[%s1 + $0x420] sm:$0xff]
    %v156 = vld [vmem:[%s1 + $0x428] sm:$0xff]
    %v157 = vld [vmem:[%s1 + $0x430] sm:$0xff]
    %v158 = vld [vmem:[%s1 + $0x438] sm:$0xff]
    %v159 = vld [vmem:[%s1 + $0x440] sm:$0xff]
    %v160 = vld [vmem:[%s1 + $0x448] sm:$0xff]
    %v161 = vld [vmem:[%s1 + $0x450] sm:$0xff]
    %v162 = vld [vmem:[%s1 + $0x458] sm:$0xff]
    %v163 = vld [vmem:[%s1 + $0x460] sm:$0xff]
    %v164 = vld [vmem:[%s1 + $0x468] sm:$0xff]
    %v165 = vld [vmem:[%s1 + $0x470] sm:$0xff]
    %v166 = vld [vmem:[%s1 + $0x478] sm:$0xff]
    %v167 = vld [vmem:[%s1 + $0x480] sm:$0xff]
    %v168 = vld [vmem:[%s1 + $0x488] sm:$0xff]
    %v169 = vld [vmem:[%s1 + $0x490] sm:$0xff]
    %v170 = vld [vmem:[%s1 + $0x498] sm:$0xff]
    %v171 = vld [vmem:[%s1 + $0x4a0] sm:$0xff]
    %v172 = vld [vmem:[%s1 + $0x4a8] sm:$0xff]
    %v173 = vld [vmem:[%s1 + $0x4b0] sm:$0xff]
    %v174 = vld [vmem:[%s1 + $0x4b8] sm:$0xff]
    %v175 = vld [vmem:[%s1 + $0x4c0] sm:$0xff]
    %v176 = vld [vmem:[%s1 + $0x4c8] sm:$0xff]
    %v177 = vld [vmem:[%s1 + $0x4d0] sm:$0xff]
    %v178 = vld [vmem:[%s1 + $0x4d8] sm:$0xff]
    %v179 = vld [vmem:[%s1 + $0x4e0] sm:$0xff]
    %v180 = vld [vmem:[%s1 + $0x4e8] sm:$0xff]
    %v181 = vld [vmem:[%s1 + $0x4f0] sm:$0xff]
    %v182 = vld [vmem:[%s1 + $0x4f8] sm:$0xff]
    %v183 = vld [vmem:[%s1 + $0x500] sm:$0xff]
    %v184 = vld [vmem:[%s1 + $0x508] sm:$0xff]
    %v185 = vld [vmem:[%s1 + $0x510] sm:$0xff]
    %v186 = vld [vmem:[%s1 + $0x518] sm:$0xff]
    %v187 = vld [vmem:[%s1 + $0x520] sm:$0xff]
    %v188 = vld [vmem:[%s1 + $0x528] sm:$0xff]
    %v189 = vld [vmem:[%s1 + $0x530] sm:$0xff]
    %v190 = vld [vmem:[%s1 + $0x538] sm:$0xff]
    %v191 = vld [vmem:[%s1 + $0x540] sm:$0xff]
    %v192 = vld [vmem:[%s1 + $0x548] sm:$0xff]
    %v193 = vld [vmem:[%s1 + $0x550] sm:$0xff]
    %v194 = vld [vmem:[%s1 + $0x558] sm:$0xff]
    %v195 = vld [vmem:[%s1 + $0x560] sm:$0xff]
    %v196 = vld [vmem:[%s1 + $0x568] sm:$0xff]
    %v197 = vld [vmem:[%s1 + $0x570] sm:$0xff]
    %v198 = vld [vmem:[%s1 + $0x578] sm:$0xff]
    %v199 = vld [vmem:[%s1 + $0x580] sm:$0xff]
    %v200 = vld [vmem:[%s1 + $0x588] sm:$0xff]
    %v201 = vld [vmem:[%s1 + $0x590] sm:$0xff]
    %v202 = vld [vmem:[%s1 + $0x598] sm:$0xff]
    %v203 = vld [vmem:[%s1 + $0x5a0] sm:$0xff]
    %v204 = vld [vmem:[%s1 + $0x5a8] sm:$0xff]
    %v205 = vld [vmem:[%s1 + $0x5b0] sm:$0xff]
    %v206 = vld [vmem:[%s1 + $0x5b8] sm:$0xff]
    %v207 = vld [vmem:[%s1 + $0x5c0] sm:$0xff]
    %v208 = vld [vmem:[%s1 + $0x5c8] sm:$0xff]
    %v209 = vld [vmem:[%s1 + $0x5d0] sm:$0xff]
    %v210 = vld [vmem:[%s1 + $0x5d8] sm:$0xff]
    %v211 = vld [vmem:[%s1 + $0x5e0] sm:$0xff]
    %v212 = vld [vmem:[%s1 + $0x5e8] sm:$0xff]
    %v213 = vld [vmem:[%s1 + $0x5f0] sm:$0xff]
    %v214 = vld [vmem:[%s1 + $0x5f8] sm:$0xff]
    %v215 = vld [vmem:[%s1 + $0x600] sm:$0xff]
    %v216 = vld [vmem:[%s1 + $0x608] sm:$0xff]
    %v217 = vld [vmem:[%s1 + $0x610] sm:$0xff]
    %v218 = vld [vmem:[%s1 + $0x618] sm:$0xff]
    %v219 = vld [vmem:[%s1 + $0x620] sm:$0xff]
    %v220 = vld [vmem:[%s1 + $0x628] sm:$0xff]
    %v221 = vld [vmem:[%s1 + $0x630] sm:$0xff]
    %v222 = vld [vmem:[%s1 + $0x638] sm:$0xff]
    %v223 = vld [vmem:[%s1 + $0x640] sm:$0xff]
    %v224 = vld [vmem:[%s1 + $0x648] sm:$0xff]
    %v225 = vld [vmem:[%s1 + $0x650] sm:$0xff]
    %v226 = vld [vmem:[%s1 + $0x658] sm:$0xff]
    %v227 = vld [vmem:[%s1 + $0x660] sm:$0xff]
    %v228 = vld [vmem:[%s1 + $0x668] sm:$0xff]
    %v229 = vld [vmem:[%s1 + $0x670] sm:$0xff]
    %v230 = vld [vmem:[%s1 + $0x678] sm:$0xff]
    %v231 = vld [vmem:[%s1 + $0x680] sm:$0xff]
    %v232 = vld [vmem:[%s1 + $0x688] sm:$0xff]
    %v233 = vld [vmem:[%s1 + $0x690] sm:$0xff]
    %v234 = vld [vmem:[%s1 + $0x698] sm:$0xff]
    %v235 = vld [vmem:[%s1 + $0x6a0] sm:$0xff]
    %v236 = vld [vmem:[%s1 + $0x6a8] sm:$0xff]
    %v237 = vld [vmem:[%s1 + $0x6b0] sm:$0xff]
    %v238 = vld [vmem:[%s1 + $0x6b8] sm:$0xff]
    %v239 = vld [vmem:[%s1 + $0x6c0] sm:$0xff]
    %v240 = vld [vmem:[%s1 + $0x6c8] sm:$0xff]
    %v241 = vld [vmem:[%s1 + $0x6d0] sm:$0xff]
    %v242 = vld [vmem:[%s1 + $0x6d8] sm:$0xff]
    %v243 = vld [vmem:[%s1 + $0x6e0] sm:$0xff]
    %v244 = vld [vmem:[%s1 + $0x6e8] sm:$0xff]
    %v245 = vld [vmem:[%s1 + $0x6f0] sm:$0xff]
    %v246 = vld [vmem:[%s1 + $0x6f8] sm:$0xff]
    %v247 = vld [vmem:[%s1 + $0x700] sm:$0xff]
    %v248 = vld [vmem:[%s1 + $0x708] sm:$0xff]
    %v249 = vld [vmem:[%s1 + $0x710] sm:$0xff]
    %v250 = vld [vmem:[%s1 + $0x718] sm:$0xff]
    %v251 = vld [vmem:[%s1 + $0x720] sm:$0xff]
    %v252 = vld [vmem:[%s1 + $0x728] sm:$0xff]
    %v253 = vld [vmem:[%s1 + $0x730] sm:$0xff]
    %v254 = vld [vmem:[%s1 + $0x738] sm:$0xff]
    %v255 = vld [vmem:[%s1 + $0x740] sm:$0xff]
    %v256 = vld [vmem:[%s1 + $0x748] sm:$0xff]
    %v257 = vld [vmem:[%s1 + $0x750] sm:$0xff]
    %v258 = vld [vmem:[%s1 + $0x758] sm:$0xff]
    %v259 = vld [vmem:[%s1 + $0x760] sm:$0xff]
    %v260 = vld [vmem:[%s1 + $0x768] sm:$0xff]
    %v261 = vld [vmem:[%s1 + $0x770] sm:$0xff]
    %v262 = vld [vmem:[%s1 + $0x778] sm:$0xff]
    %v263 = vld [vmem:[%s1 + $0x780] sm:$0xff]
    %v264 = vld [vmem:[%s1 + $0x788] sm:$0xff]
    %v265 = vld [vmem:[%s1 + $0x790] sm:$0xff]
    %v266 = vld [vmem:[%s1 + $0x798] sm:$0xff]
    %v267 = vld [vmem:[%s1 + $0x7a0] sm:$0xff]
    %v268 = vld [vmem:[%s1 + $0x7a8] sm:$0xff]
    %v269 = vld [vmem:[%s1 + $0x7b0] sm:$0xff]
    %v270 = vld [vmem:[%s1 + $0x7b8] sm:$0xff]
    %v271 = vld [vmem:[%s1 + $0x7c0] sm:$0xff]
    %v272 = vld [vmem:[%s1 + $0x7c8] sm:$0xff]
    %v273 = vld [vmem:[%s1 + $0x7d0] sm:$0xff]
    %v274 = vld [vmem:[%s1 + $0x7d8] sm:$0xff]
    %v275 = vld [vmem:[%s1 + $0x7e0] sm:$0xff]
    %v276 = vld [vmem:[%s1 + $0x7e8] sm:$0xff]
    %v277 = vld [vmem:[%s1 + $0x7f0] sm:$0xff]
    %v278 = vld [vmem:[%s1 + $0x7f8] sm:$0xff]
    %v279 = vld [vmem:[%s1 + $0x800] sm:$0xff]
    %v280 = vld [vmem:[%s1 + $0x808] sm:$0xff]
    %v281 = vld [vmem:[%s1 + $0x810] sm:$0xff]
    %v282 = vld [vmem:[%s1 + $0x818] sm:$0xff]
    %v283 = vld [vmem:[%s1 + $0x820] sm:$0xff]
    %v284 = vld [vmem:[%s1 + $0x828] sm:$0xff]
    %v285 = vld [vmem:[%s1 + $0x830] sm:$0xff]
    %v286 = vld [vmem:[%s1 + $0x838] sm:$0xff]
    %v287 = vld [vmem:[%s1 + $0x840] sm:$0xff]
    %v288 = vld [vmem:[%s1 + $0x848] sm:$0xff]
    %v289 = vld [vmem:[%s1 + $0x850] sm:$0xff]
    %v290 = vld [vmem:[%s1 + $0x858] sm:$0xff]
    %v291 = vld [vmem:[%s1 + $0x860] sm:$0xff]
    %v292 = vld [vmem:[%s1 + $0x868] sm:$0xff]
    %v293 = vld [vmem:[%s1 + $0x870] sm:$0xff]
    %v294 = vld [vmem:[%s1 + $0x878] sm:$0xff]
    %v295 = vld [vmem:[%s1 + $0x880] sm:$0xff]
    %v296 = vld [vmem:[%s1 + $0x888] sm:$0xff]
    %v297 = vld [vmem:[%s1 + $0x890] sm:$0xff]
    %v298 = vld [vmem:[%s1 + $0x898] sm:$0xff]
    %v299 = vld [vmem:[%s1 + $0x8a0] sm:$0xff]
    %v300 = vld [vmem:[%s1 + $0x8a8] sm:$0xff]
    %v301 = vld [vmem:[%s1 + $0x8b0] sm:$0xff]
    %v302 = vld [vmem:[%s1 + $0x8b8] sm:$0xff]
    %v303 = vld [vmem:[%s1 + $0x8c0] sm:$0xff]
    %v304 = vld [vmem:[%s1 + $0x8c8] sm:$0xff]
    %v305 = vld [vmem:[%s1 + $0x8d0] sm:$0xff]
    %v306 = vld [vmem:[%s1 + $0x8d8] sm:$0xff]
    %v307 = vld [vmem:[%s1 + $0x8e0] sm:$0xff]
    %v308 = vld [vmem:[%s1 + $0x8e8] sm:$0xff]
    %v309 = vld [vmem:[%s1 + $0x8f0] sm:$0xff]
    %v310 = vld [vmem:[%s1 + $0x8f8] sm:$0xff]
    %v311 = vld [vmem:[%s1 + $0x900] sm:$0xff]
    %v312 = vld [vmem:[%s1 + $0x908] sm:$0xff]
    %v313 = vld [vmem:[%s1 + $0x910] sm:$0xff]
    %v314 = vld [vmem:[%s1 + $0x918] sm:$0xff]
    %v315 = vld [vmem:[%s1 + $0x920] sm:$0xff]
    %v316 = vld [vmem:[%s1 + $0x928] sm:$0xff]
    %v317 = vld [vmem:[%s1 + $0x930] sm:$0xff]
    %v318 = vld [vmem:[%s1 + $0x938] sm:$0xff]
    %v319 = vld [vmem:[%s1 + $0x940] sm:$0xff]
    %v320 = vld [vmem:[%s1 + $0x948] sm:$0xff]
    %v321 = vld [vmem:[%s1 + $0x950] sm:$0xff]
    %v322 = vld [vmem:[%s1 + $0x958] sm:$0xff]
    %v323 = vld [vmem:[%s1 + $0x960] sm:$0xff]
    %v324 = vld [vmem:[%s1 + $0x968] sm:$0xff]
    %v325 = vld [vmem:[%s1 + $0x970] sm:$0xff]
    %v326 = vld [vmem:[%s1 + $0x978] sm:$0xff]
    %v327 = vld [vmem:[%s1 + $0x980] sm:$0xff]
    %v328 = vld [vmem:[%s1 + $0x988] sm:$0xff]
    %v329 = vld [vmem:[%s1 + $0x990] sm:$0xff]
    %v330 = vld [vmem:[%s1 + $0x998] sm:$0xff]
    %v331 = vld [vmem:[%s1 + $0x9a0] sm:$0xff]
    %v332 = vld [vmem:[%s1 + $0x9a8] sm:$0xff]
    %v333 = vld [vmem:[%s1 + $0x9b0] sm:$0xff]
    %v334 = vld [vmem:[%s1 + $0x9b8] sm:$0xff]
    %v335 = vld [vmem:[%s1 + $0x9c0] sm:$0xff]
    %v336 = vld [vmem:[%s1 + $0x9c8] sm:$0xff]
    %v337 = vld [vmem:[%s1 + $0x9d0] sm:$0xff]
    %v338 = vld [vmem:[%s1 + $0x9d8] sm:$0xff]
    %v339 = vld [vmem:[%s1 + $0x9e0] sm:$0xff]
    %v340 = vld [vmem:[%s1 + $0x9e8] sm:$0xff]
    %v341 = vld [vmem:[%s1 + $0x9f0] sm:$0xff]
    %v342 = vld [vmem:[%s1 + $0x9f8] sm:$0xff]
    %v343 = vld [vmem:[%s1 + $0xa00] sm:$0xff]
    %v344 = vld [vmem:[%s1 + $0xa08] sm:$0xff]
    %v345 = vld [vmem:[%s1 + $0xa10] sm:$0xff]
    %v346 = vld [vmem:[%s1 + $0xa18] sm:$0xff]
    %v347 = vld [vmem:[%s1 + $0xa20] sm:$0xff]
    %v348 = vld [vmem:[%s1 + $0xa28] sm:$0xff]
    %v349 = vld [vmem:[%s1 + $0xa30] sm:$0xff]
    %v350 = vld [vmem:[%s1 + $0xa38] sm:$0xff]
    %v351 = vld [vmem:[%s1 + $0xa40] sm:$0xff]
    %v352 = vld [vmem:[%s1 + $0xa48] sm:$0xff]
    %v353 = vld [vmem:[%s1 + $0xa50] sm:$0xff]
    %v354 = vld [vmem:[%s1 + $0xa58] sm:$0xff]
    %v355 = vld [vmem:[%s1 + $0xa60] sm:$0xff]
    %v356 = vld [vmem:[%s1 + $0xa68] sm:$0xff]
    %v357 = vld [vmem:[%s1 + $0xa70] sm:$0xff]
    %v358 = vld [vmem:[%s1 + $0xa78] sm:$0xff]
    %v359 = vld [vmem:[%s1 + $0xa80] sm:$0xff]
    %v360 = vld [vmem:[%s1 + $0xa88] sm:$0xff]
    %v361 = vld [vmem:[%s1 + $0xa90] sm:$0xff]
    %v362 = vld [vmem:[%s1 + $0xa98] sm:$0xff]
    %v363 = vld [vmem:[%s1 + $0xaa0] sm:$0xff]
    %v364 = vld [vmem:[%s1 + $0xaa8] sm:$0xff]
    %v365 = vld [vmem:[%s1 + $0xab0] sm:$0xff]
    %v366 = vld [vmem:[%s1 + $0xab8] sm:$0xff]
    %v367 = vld [vmem:[%s1 + $0xac0] sm:$0xff]
    %v368 = vld [vmem:[%s1 + $0xac8] sm:$0xff]
    %v369 = vld [vmem:[%s1 + $0xad0] sm:$0xff]
    %v370 = vld [vmem:[%s1 + $0xad8] sm:$0xff]
    %v371 = vld [vmem:[%s1 + $0xae0] sm:$0xff]
    %v372 = vld [vmem:[%s1 + $0xae8] sm:$0xff]
    %v373 = vld [vmem:[%s1 + $0xaf0] sm:$0xff]
    %v374 = vld [vmem:[%s1 + $0xaf8] sm:$0xff]
    %v375 = vld [vmem:[%s1 + $0xb00] sm:$0xff]
    %v376 = vld [vmem:[%s1 + $0xb08] sm:$0xff]
    %v377 = vld [vmem:[%s1 + $0xb10] sm:$0xff]
    %v378 = vld [vmem:[%s1 + $0xb18] sm:$0xff]
    %v379 = vld [vmem:[%s1 + $0xb20] sm:$0xff]
    %v380 = vld [vmem:[%s1 + $0xb28] sm:$0xff]
    %v381 = vld [vmem:[%s1 + $0xb30] sm:$0xff]
    %v382 = vld [vmem:[%s1 + $0xb38] sm:$0xff]
    %v383 = vld [vmem:[%s1 + $0xb40] sm:$0xff]
    %v384 = vld [vmem:[%s1 + $0xb48] sm:$0xff]
    %v385 = vld [vmem:[%s1 + $0xb50] sm:$0xff]
    %v386 = vld [vmem:[%s1 + $0xb58] sm:$0xff]
    %v387 = vld [vmem:[%s1 + $0xb60] sm:$0xff]
    %v388 = vld [vmem:[%s1 + $0xb68] sm:$0xff]
    %v389 = vld [vmem:[%s1 + $0xb70] sm:$0xff]
    %v390 = vld [vmem:[%s1 + $0xb78] sm:$0xff]
    %v391 = vld [vmem:[%s1 + $0xb80] sm:$0xff]
    %v392 = vld [vmem:[%s1 + $0xb88] sm:$0xff]
    %v393 = vld [vmem:[%s1 + $0xb90] sm:$0xff]
    %v394 = vld [vmem:[%s1 + $0xb98] sm:$0xff]
    %v395 = vld [vmem:[%s1 + $0xba0] sm:$0xff]
    %v396 = vld [vmem:[%s1 + $0xba8] sm:$0xff]
    %v397 = vld [vmem:[%s1 + $0xbb0] sm:$0xff]
    %v398 = vld [vmem:[%s1 + $0xbb8] sm:$0xff]
    %v399 = vld [vmem:[%s1 + $0xbc0] sm:$0xff]
    %v400 = vld [vmem:[%s1 + $0xbc8] sm:$0xff]
    %v401 = vld [vmem:[%s1 + $0xbd0] sm:$0xff]
    %v402 = vld [vmem:[%s1 + $0xbd8] sm:$0xff]
    %v403 = vld [vmem:[%s1 + $0xbe0] sm:$0xff]
    %v404 = vld [vmem:[%s1 + $0xbe8] sm:$0xff]
    %v405 = vld [vmem:[%s1 + $0xbf0] sm:$0xff]
    %v406 = vld [vmem:[%s1 + $0xbf8] sm:$0xff]
    %v407 = vld [vmem:[%s1 + $0xc00] sm:$0xff]
    %v408 = vld [vmem:[%s1 + $0xc08] sm:$0xff]
    %v409 = vld [vmem:[%s1 + $0xc10] sm:$0xff]
    %v410 = vld [vmem:[%s1 + $0xc18] sm:$0xff]
    %v411 = vld [vmem:[%s1 + $0xc20] sm:$0xff]
    %v412 = vld [vmem:[%s1 + $0xc28] sm:$0xff]
    %v413 = vld [vmem:[%s1 + $0xc30] sm:$0xff]
    %v414 = vld [vmem:[%s1 + $0xc38] sm:$0xff]
    %v415 = vld [vmem:[%s1 + $0xc40] sm:$0xff]
    %v416 = vld [vmem:[%s1 + $0xc48] sm:$0xff]
    %v417 = vld [vmem:[%s1 + $0xc50] sm:$0xff]
    %v418 = vld [vmem:[%s1 + $0xc58] sm:$0xff]
    %v419 = vld [vmem:[%s1 + $0xc60] sm:$0xff]
    %v420 = vld [vmem:[%s1 + $0xc68] sm:$0xff]
    %v421 = vld [vmem:[%s1 + $0xc70] sm:$0xff]
    %v422 = vld [vmem:[%s1 + $0xc78] sm:$0xff]
    %v423 = vld [vmem:[%s1 + $0xc80] sm:$0xff]
    %v424 = vld [vmem:[%s1 + $0xc88] sm:$0xff]
    %v425 = vld [vmem:[%s1 + $0xc90] sm:$0xff]
    %v426 = vld [vmem:[%s1 + $0xc98] sm:$0xff]
    %v427 = vld [vmem:[%s1 + $0xca0] sm:$0xff]
    %v428 = vld [vmem:[%s1 + $0xca8] sm:$0xff]
    %v429 = vld [vmem:[%s1 + $0xcb0] sm:$0xff]
    %v430 = vld [vmem:[%s1 + $0xcb8] sm:$0xff]
    %v431 = vld [vmem:[%s1 + $0xcc0] sm:$0xff]
    %v432 = vld [vmem:[%s1 + $0xcc8] sm:$0xff]
    %v433 = vld [vmem:[%s1 + $0xcd0] sm:$0xff]
    %v434 = vld [vmem:[%s1 + $0xcd8] sm:$0xff]
    %v435 = vld [vmem:[%s1 + $0xce0] sm:$0xff]
    %v436 = vld [vmem:[%s1 + $0xce8] sm:$0xff]
    %v437 = vld [vmem:[%s1 + $0xcf0] sm:$0xff]
    %v438 = vld [vmem:[%s1 + $0xcf8] sm:$0xff]
    %v439 = vld [vmem:[%s1 + $0xd00] sm:$0xff]
    %v440 = vld [vmem:[%s1 + $0xd08] sm:$0xff]
    %v441 = vld [vmem:[%s1 + $0xd10] sm:$0xff]
    %v442 = vld [vmem:[%s1 + $0xd18] sm:$0xff]
    %v443 = vld [vmem:[%s1 + $0xd20] sm:$0xff]
    %v444 = vld [vmem:[%s1 + $0xd28] sm:$0xff]
    %v445 = vld [vmem:[%s1 + $0xd30] sm:$0xff]
    %v446 = vld [vmem:[%s1 + $0xd38] sm:$0xff]
    %v447 = vld [vmem:[%s1 + $0xd40] sm:$0xff]
    %v448 = vld [vmem:[%s1 + $0xd48] sm:$0xff]
    %v449 = vld [vmem:[%s1 + $0xd50] sm:$0xff]
    %v450 = vld [vmem:[%s1 + $0xd58] sm:$0xff]
    %v451 = vld [vmem:[%s1 + $0xd60] sm:$0xff]
    %v452 = vld [vmem:[%s1 + $0xd68] sm:$0xff]
    %v453 = vld [vmem:[%s1 + $0xd70] sm:$0xff]
    %v454 = vld [vmem:[%s1 + $0xd78] sm:$0xff]
    %v455 = vld [vmem:[%s1 + $0xd80] sm:$0xff]
    %v456 = vld [vmem:[%s1 + $0xd88] sm:$0xff]
    %v457 = vld [vmem:[%s1 + $0xd90] sm:$0xff]
    %v458 = vld [vmem:[%s1 + $0xd98] sm:$0xff]
    %v459 = vld [vmem:[%s1 + $0xda0] sm:$0xff]
    %v460 = vld [vmem:[%s1 + $0xda8] sm:$0xff]
    %v461 = vld [vmem:[%s1 + $0xdb0] sm:$0xff]
    %v462 = vld [vmem:[%s1 + $0xdb8] sm:$0xff]
    %v463 = vld [vmem:[%s1 + $0xdc0] sm:$0xff]
    %v464 = vld [vmem:[%s1 + $0xdc8] sm:$0xff]
    %v465 = vld [vmem:[%s1 + $0xdd0] sm:$0xff]
    %v466 = vld [vmem:[%s1 + $0xdd8] sm:$0xff]
    %v467 = vld [vmem:[%s1 + $0xde0] sm:$0xff]
    %v468 = vld [vmem:[%s1 + $0xde8] sm:$0xff]
    %v469 = vld [vmem:[%s1 + $0xdf0] sm:$0xff]
    %v470 = vld [vmem:[%s1 + $0xdf8] sm:$0xff]
    %v471 = vld [vmem:[%s1 + $0xe00] sm:$0xff]
    %v472 = vld [vmem:[%s1 + $0xe08] sm:$0xff]
    %v473 = vld [vmem:[%s1 + $0xe10] sm:$0xff]
    %v474 = vld [vmem:[%s1 + $0xe18] sm:$0xff]
    %v475 = vld [vmem:[%s1 + $0xe20] sm:$0xff]
    %v476 = vld [vmem:[%s1 + $0xe28] sm:$0xff]
    %v477 = vld [vmem:[%s1 + $0xe30] sm:$0xff]
    %v478 = vld [vmem:[%s1 + $0xe38] sm:$0xff]
    %v479 = vld [vmem:[%s1 + $0xe40] sm:$0xff]
    %v480 = vld [vmem:[%s1 + $0xe48] sm:$0xff]
    %v481 = vld [vmem:[%s1 + $0xe50] sm:$0xff]
    %v482 = vld [vmem:[%s1 + $0xe58] sm:$0xff]
    %v483 = vld [vmem:[%s1 + $0xe60] sm:$0xff]
    %v484 = vld [vmem:[%s1 + $0xe68] sm:$0xff]
    %v485 = vld [vmem:[%s1 + $0xe70] sm:$0xff]
    %v486 = vld [vmem:[%s1 + $0xe78] sm:$0xff]
    %v487 = vld [vmem:[%s1 + $0xe80] sm:$0xff]
    %v488 = vld [vmem:[%s1 + $0xe88] sm:$0xff]
    %v489 = vld [vmem:[%s1 + $0xe90] sm:$0xff]
    %v490 = vld [vmem:[%s1 + $0xe98] sm:$0xff]
    %v491 = vld [vmem:[%s1 + $0xea0] sm:$0xff]
    %v492 = vld [vmem:[%s1 + $0xea8] sm:$0xff]
    %v493 = vld [vmem:[%s1 + $0xeb0] sm:$0xff]
    %v494 = vld [vmem:[%s1 + $0xeb8] sm:$0xff]
    %v495 = vld [vmem:[%s1 + $0xec0] sm:$0xff]
    %v496 = vld [vmem:[%s1 + $0xec8] sm:$0xff]
    %v497 = vld [vmem:[%s1 + $0xed0] sm:$0xff]
    %v498 = vld [vmem:[%s1 + $0xed8] sm:$0xff]
    %v499 = vld [vmem:[%s1 + $0xee0] sm:$0xff]
    %v500 = vld [vmem:[%s1 + $0xee8] sm:$0xff]
    %v501 = vld [vmem:[%s1 + $0xef0] sm:$0xff]
    %v502 = vld [vmem:[%s1 + $0xef8] sm:$0xff]
    %v503 = vld [vmem:[%s1 + $0xf00] sm:$0xff]
    %v504 = vld [vmem:[%s1 + $0xf08] sm:$0xff]
    %v505 = vld [vmem:[%s1 + $0xf10] sm:$0xff]
    %v506 = vld [vmem:[%s1 + $0xf18] sm:$0xff]
    %v507 = vld [vmem:[%s1 + $0xf20] sm:$0xff]
    %v508 = vld [vmem:[%s1 + $0xf28] sm:$0xff]
    %v509 = vld [vmem:[%s1 + $0xf30] sm:$0xff]
    %v510 = vld [vmem:[%s1 + $0xf38] sm:$0xff]
    %v511 = vld [vmem:[%s1 + $0xf40] sm:$0xff]
    %v512 = vld [vmem:[%s1 + $0xf48] sm:$0xff]
    %v513 = vld [vmem:[%s1 + $0xf50] sm:$0xff]
    %v514 = vld [vmem:[%s1 + $0xf58] sm:$0xff]
    %v515 = vld [vmem:[%s1 + $0xf60] sm:$0xff]
    %v516 = vld [vmem:[%s1 + $0xf68] sm:$0xff]
    %v517 = vld [vmem:[%s1 + $0xf70] sm:$0xff]
    %v518 = vld [vmem:[%s1 + $0xf78] sm:$0xff]
    %v519 = vld [vmem:[%s1 + $0xf80] sm:$0xff]
    %v520 = vld [vmem:[%s1 + $0xf88] sm:$0xff]
    %v521 = vld [vmem:[%s1 + $0xf90] sm:$0xff]
    %v522 = vld [vmem:[%s1 + $0xf98] sm:$0xff]
    %v523 = vld [vmem:[%s1 + $0xfa0] sm:$0xff]
    %v524 = vld [vmem:[%s1 + $0xfa8] sm:$0xff]
    %v525 = vld [vmem:[%s1 + $0xfb0] sm:$0xff]
    %v526 = vld [vmem:[%s1 + $0xfb8] sm:$0xff]
    %v527 = vld [vmem:[%s1 + $0xfc0] sm:$0xff]
    %v528 = vld [vmem:[%s1 + $0xfc8] sm:$0xff]
    %v529 = vld [vmem:[%s1 + $0xfd0] sm:$0xff]
    %v530 = vld [vmem:[%s1 + $0xfd8] sm:$0xff]
    %v531 = vld [vmem:[%s1 + $0xfe0] sm:$0xff]
    %v532 = vld [vmem:[%s1 + $0xfe8] sm:$0xff]
    %v533 = vld [vmem:[%s1 + $0xff0] sm:$0xff]
    %v534 = vld [vmem:[%s1 + $0xff8] sm:$0xff]
    %v535 = vld [vmem:[%s1 + $0x1000] sm:$0xff]
    %v536 = vld [vmem:[%s1 + $0x1008] sm:$0xff]
    %v537 = vld [vmem:[%s1 + $0x1010] sm:$0xff]
    %v538 = vld [vmem:[%s1 + $0x1018] sm:$0xff]
    %v539 = vld [vmem:[%s1 + $0x1020] sm:$0xff]
    %v540 = vld [vmem:[%s1 + $0x1028] sm:$0xff]
    %v541 = vld [vmem:[%s1 + $0x1030] sm:$0xff]
    %v542 = vld [vmem:[%s1 + $0x1038] sm:$0xff]
    %v543 = vld [vmem:[%s1 + $0x1040] sm:$0xff]
    %v544 = vld [vmem:[%s1 + $0x1048] sm:$0xff]
    %v545 = vld [vmem:[%s1 + $0x1050] sm:$0xff]
    %v546 = vld [vmem:[%s1 + $0x1058] sm:$0xff]
    %v547 = vld [vmem:[%s1 + $0x1060] sm:$0xff]
    %v548 = vld [vmem:[%s1 + $0x1068] sm:$0xff]
    %v549 = vld [vmem:[%s1 + $0x1070] sm:$0xff]
    %v550 = vld [vmem:[%s1 + $0x1078] sm:$0xff]
    %v551 = vld [vmem:[%s1 + $0x1080] sm:$0xff]
    %v552 = vld [vmem:[%s1 + $0x1088] sm:$0xff]
    %v553 = vld [vmem:[%s1 + $0x1090] sm:$0xff]
    %v554 = vld [vmem:[%s1 + $0x1098] sm:$0xff]
    %v555 = vld [vmem:[%s1 + $0x10a0] sm:$0xff]
    %v556 = vld [vmem:[%s1 + $0x10a8] sm:$0xff]
    %v557 = vld [vmem:[%s1 + $0x10b0] sm:$0xff]
    %v558 = vld [vmem:[%s1 + $0x10b8] sm:$0xff]
    %v559 = vld [vmem:[%s1 + $0x10c0] sm:$0xff]
    %v560 = vld [vmem:[%s1 + $0x10c8] sm:$0xff]
    %v561 = vld [vmem:[%s1 + $0x10d0] sm:$0xff]
    %v562 = vld [vmem:[%s1 + $0x10d8] sm:$0xff]
    %v563 = vld [vmem:[%s1 + $0x10e0] sm:$0xff]
    %v564 = vld [vmem:[%s1 + $0x10e8] sm:$0xff]
    %v565 = vld [vmem:[%s1 + $0x10f0] sm:$0xff]
    %v566 = vld [vmem:[%s1 + $0x10f8] sm:$0xff]
    %v567 = vld [vmem:[%s1 + $0x1100] sm:$0xff]
    %v568 = vld [vmem:[%s1 + $0x1108] sm:$0xff]
    %v569 = vld [vmem:[%s1 + $0x1110] sm:$0xff]
    %v570 = vld [vmem:[%s1 + $0x1118] sm:$0xff]
    %v571 = vld [vmem:[%s1 + $0x1120] sm:$0xff]
    %v572 = vld [vmem:[%s1 + $0x1128] sm:$0xff]
    %v573 = vld [vmem:[%s1 + $0x1130] sm:$0xff]
    %v574 = vld [vmem:[%s1 + $0x1138] sm:$0xff]
    %v575 = vld [vmem:[%s1 + $0x1140] sm:$0xff]
    %v576 = vld [vmem:[%s1 + $0x1148] sm:$0xff]
    %v577 = vld [vmem:[%s1 + $0x1150] sm:$0xff]
    %v578 = vld [vmem:[%s1 + $0x1158] sm:$0xff]
    %v579 = vld [vmem:[%s1 + $0x1160] sm:$0xff]
    %v580 = vld [vmem:[%s1 + $0x1168] sm:$0xff]
    %v581 = vld [vmem:[%s1 + $0x1170] sm:$0xff]
    %v582 = vld [vmem:[%s1 + $0x1178] sm:$0xff]
    %v583 = vld [vmem:[%s1 + $0x1180] sm:$0xff]
    %v584 = vld [vmem:[%s1 + $0x1188] sm:$0xff]
    %v585 = vld [vmem:[%s1 + $0x1190] sm:$0xff]
    %v586 = vld [vmem:[%s1 + $0x1198] sm:$0xff]
    %v587 = vld [vmem:[%s1 + $0x11a0] sm:$0xff]
    %v588 = vld [vmem:[%s1 + $0x11a8] sm:$0xff]
    %v589 = vld [vmem:[%s1 + $0x11b0] sm:$0xff]
    %v590 = vld [vmem:[%s1 + $0x11b8] sm:$0xff]
    %v591 = vld [vmem:[%s1 + $0x11c0] sm:$0xff]
    %v592 = vld [vmem:[%s1 + $0x11c8] sm:$0xff]
    %v593 = vld [vmem:[%s1 + $0x11d0] sm:$0xff]
    %v594 = vld [vmem:[%s1 + $0x11d8] sm:$0xff]
    %v595 = vld [vmem:[%s1 + $0x11e0] sm:$0xff]
    %v596 = vld [vmem:[%s1 + $0x11e8] sm:$0xff]
    %v597 = vld [vmem:[%s1 + $0x11f0] sm:$0xff]
    %v598 = vld [vmem:[%s1 + $0x11f8] sm:$0xff]
    %v599 = vld [vmem:[%s1 + $0x1200] sm:$0xff]
    %v600 = vld [vmem:[%s1 + $0x1208] sm:$0xff]
    %v601 = vld [vmem:[%s1 + $0x1210] sm:$0xff]
    %v602 = vld [vmem:[%s1 + $0x1218] sm:$0xff]
    %v603 = vld [vmem:[%s1 + $0x1220] sm:$0xff]
    %v604 = vld [vmem:[%s1 + $0x1228] sm:$0xff]
    %v605 = vld [vmem:[%s1 + $0x1230] sm:$0xff]
    %v606 = vld [vmem:[%s1 + $0x1238] sm:$0xff]
    %v607 = vld [vmem:[%s1 + $0x1240] sm:$0xff]
    %v608 = vld [vmem:[%s1 + $0x1248] sm:$0xff]
    %v609 = vld [vmem:[%s1 + $0x1250] sm:$0xff]
    %v610 = vld [vmem:[%s1 + $0x1258] sm:$0xff]
    %v611 = vld [vmem:[%s1 + $0x1260] sm:$0xff]
    %v612 = vld [vmem:[%s1 + $0x1268] sm:$0xff]
    %v613 = vld [vmem:[%s1 + $0x1270] sm:$0xff]
    %v614 = vld [vmem:[%s1 + $0x1278] sm:$0xff]
    %v615 = vld [vmem:[%s1 + $0x1280] sm:$0xff]
    %v616 = vld [vmem:[%s1 + $0x1288] sm:$0xff]
    %v617 = vld [vmem:[%s1 + $0x1290] sm:$0xff]
    %v618 = vld [vmem:[%s1 + $0x1298] sm:$0xff]
    %v619 = vld [vmem:[%s1 + $0x12a0] sm:$0xff]
    %v620 = vld [vmem:[%s1 + $0x12a8] sm:$0xff]
    %v621 = vld [vmem:[%s1 + $0x12b0] sm:$0xff]
    %v622 = vld [vmem:[%s1 + $0x12b8] sm:$0xff]
    %v623 = vld [vmem:[%s1 + $0x12c0] sm:$0xff]
    %v624 = vld [vmem:[%s1 + $0x12c8] sm:$0xff]
    %v625 = vld [vmem:[%s1 + $0x12d0] sm:$0xff]
    %v626 = vld [vmem:[%s1 + $0x12d8] sm:$0xff]
    %v627 = vld [vmem:[%s1 + $0x12e0] sm:$0xff]
    %v628 = vld [vmem:[%s1 + $0x12e8] sm:$0xff]
    %v629 = vld [vmem:[%s1 + $0x12f0] sm:$0xff]
    %v630 = vld [vmem:[%s1 + $0x12f8] sm:$0xff]
    %v631 = vld [vmem:[%s1 + $0x1300] sm:$0xff]
    %v632 = vld [vmem:[%s1 + $0x1308] sm:$0xff]
    %v633 = vld [vmem:[%s1 + $0x1310] sm:$0xff]
    %v634 = vld [vmem:[%s1 + $0x1318] sm:$0xff]
    %v635 = vld [vmem:[%s1 + $0x1320] sm:$0xff]
    %v636 = vld [vmem:[%s1 + $0x1328] sm:$0xff]
    %v637 = vld [vmem:[%s1 + $0x1330] sm:$0xff]
    %v638 = vld [vmem:[%s1 + $0x1338] sm:$0xff]
    %v639 = vld [vmem:[%s1 + $0x1340] sm:$0xff]
    %v640 = vld [vmem:[%s1 + $0x1348] sm:$0xff]
    %v641 = vld [vmem:[%s1 + $0x1350] sm:$0xff]
    %v642 = vld [vmem:[%s1 + $0x1358] sm:$0xff]
    %v643 = vld [vmem:[%s1 + $0x1360] sm:$0xff]
    %v644 = vld [vmem:[%s1 + $0x1368] sm:$0xff]
    %v645 = vld [vmem:[%s1 + $0x1370] sm:$0xff]
    %v646 = vld [vmem:[%s1 + $0x1378] sm:$0xff]
    %v647 = vld [vmem:[%s1 + $0x1380] sm:$0xff]
    %v648 = vld [vmem:[%s1 + $0x1388] sm:$0xff]
    %v649 = vld [vmem:[%s1 + $0x1390] sm:$0xff]
    %v650 = vld [vmem:[%s1 + $0x1398] sm:$0xff]
    %v651 = vld [vmem:[%s1 + $0x13a0] sm:$0xff]
    %v652 = vld [vmem:[%s1 + $0x13a8] sm:$0xff]
    %v653 = vld [vmem:[%s1 + $0x13b0] sm:$0xff]
    %v654 = vld [vmem:[%s1 + $0x13b8] sm:$0xff]
    %v655 = vld [vmem:[%s1 + $0x13c0] sm:$0xff]
    %v656 = vld [vmem:[%s1 + $0x13c8] sm:$0xff]
    %v657 = vld [vmem:[%s1 + $0x13d0] sm:$0xff]
    %v658 = vld [vmem:[%s1 + $0x13d8] sm:$0xff]
    %v659 = vld [vmem:[%s1 + $0x13e0] sm:$0xff]
    %v660 = vld [vmem:[%s1 + $0x13e8] sm:$0xff]
    %v661 = vld [vmem:[%s1 + $0x13f0] sm:$0xff]
    %v662 = vld [vmem:[%s1 + $0x13f8] sm:$0xff]
    %v663 = vld [vmem:[%s2] sm:$0x1f]
    %v665 = vperm.slane %v663, 0
    %v666 = vperm.slane %v663, 1
    %v667 = vperm.slane %v663, 2
    %v668 = vperm.slane %v663, 3
    %v669 = vperm.slane %v663, 4
    %677 = vst [vmem:[#allocation1] ss:$4 sm:$0xff] %v21
    %s678 = scalar_lea.vmem [#allocation1], 32
    %679 = vst [vmem:[%s678] ss:$4 sm:$0xff] %v22
    %v680 = vld.sshfl [vmem:[#allocation1] sm:$0xff pattern:$0x73625140]
    %v681 = vld.sshfl [vmem:[#allocation1 + $0x8] sm:$0xff pattern:$0x73625140]
    %v682 = vld.sshfl [vmem:[#allocation1 + $0x10] sm:$0xff pattern:$0x73625140]
    %v683 = vld.sshfl [vmem:[#allocation1 + $0x18] sm:$0xff pattern:$0x73625140]
    %v684 = vld.sshfl [vmem:[#allocation1 + $0x20] sm:$0xff pattern:$0x73625140]
    %v685 = vld.sshfl [vmem:[#allocation1 + $0x28] sm:$0xff pattern:$0x73625140]
    %v686 = vld.sshfl [vmem:[#allocation1 + $0x30] sm:$0xff pattern:$0x73625140]
    %v687 = vld.sshfl [vmem:[#allocation1 + $0x38] sm:$0xff pattern:$0x73625140]
    %696 = vmatpush.msra.mxu0 %v98
    %697 = vmatpush.msra.mxu0 %v93
    %698 = vmatpush.msra.mxu0 %v88
    %699 = vmatpush.msra.mxu0 %v83
    %700 = vmatpush.msra.mxu0 %v78
    %701 = vmatpush.msra.mxu0 %v73
    %702 = vmatpush.msra.mxu0 %v68
    %703 = vmatpush.msra.mxu0 %v63
    %704 = vmatpush.msra.mxu0 %v58
    %705 = vmatpush.msra.mxu0 %v53
    %706 = vmatpush.msra.mxu0 %v48
    %707 = vmatpush.msra.mxu0 %v43
    %708 = vmatpush.msra.mxu0 %v38
    %709 = vmatpush.msra.mxu0 %v33
    %710 = vmatpush.msra.mxu0 %v28
    %711 = vmatpush.msra.mxu0 %v23
    %712 = vmatmul.f32.gmra.mxu0 %v680
    %v713 = vpop.f32.mrf.mxu0
    %v714 = vadd.f32 %v665, %v713
    %715 = vdwg.mxu0
    %716 = vmatpush.msra.mxu0 %v178
    %717 = vmatpush.msra.mxu0 %v173
    %718 = vmatpush.msra.mxu0 %v168
    %719 = vmatpush.msra.mxu0 %v163
    %720 = vmatpush.msra.mxu0 %v158
    %721 = vmatpush.msra.mxu0 %v153
    %722 = vmatpush.msra.mxu0 %v148
    %723 = vmatpush.msra.mxu0 %v143
    %724 = vmatpush.msra.mxu0 %v138
    %725 = vmatpush.msra.mxu0 %v133
    %726 = vmatpush.msra.mxu0 %v128
    %727 = vmatpush.msra.mxu0 %v123
    %728 = vmatpush.msra.mxu0 %v118
    %729 = vmatpush.msra.mxu0 %v113
    %730 = vmatpush.msra.mxu0 %v108
    %731 = vmatpush.msra.mxu0 %v103
    %732 = vmatmul.f32.gmra.mxu0 %v681
    %v733 = vpop.f32.mrf.mxu0
    %v734 = vadd.f32 %v714, %v733
    %735 = vdwg.mxu0
    %736 = vmatpush.msra.mxu0 %v258
    %737 = vmatpush.msra.mxu0 %v253
    %738 = vmatpush.msra.mxu0 %v248
    %739 = vmatpush.msra.mxu0 %v243
    %740 = vmatpush.msra.mxu0 %v238
    %741 = vmatpush.msra.mxu0 %v233
    %742 = vmatpush.msra.mxu0 %v228
    %743 = vmatpush.msra.mxu0 %v223
    %744 = vmatpush.msra.mxu0 %v218
    %745 = vmatpush.msra.mxu0 %v213
    %746 = vmatpush.msra.mxu0 %v208
    %747 = vmatpush.msra.mxu0 %v203
    %748 = vmatpush.msra.mxu0 %v198
    %749 = vmatpush.msra.mxu0 %v193
    %750 = vmatpush.msra.mxu0 %v188
    %751 = vmatpush.msra.mxu0 %v183
    %752 = vmatmul.f32.gmra.mxu0 %v682
    %v753 = vpop.f32.mrf.mxu0
    %v754 = vadd.f32 %v734, %v753
    %755 = vdwg.mxu0
    %756 = vmatpush.msra.mxu0 %v338
    %757 = vmatpush.msra.mxu0 %v333
    %758 = vmatpush.msra.mxu0 %v328
    %759 = vmatpush.msra.mxu0 %v323
    %760 = vmatpush.msra.mxu0 %v318
    %761 = vmatpush.msra.mxu0 %v313
    %762 = vmatpush.msra.mxu0 %v308
    %763 = vmatpush.msra.mxu0 %v303
    %764 = vmatpush.msra.mxu0 %v298
    %765 = vmatpush.msra.mxu0 %v293
    %766 = vmatpush.msra.mxu0 %v288
    %767 = vmatpush.msra.mxu0 %v283
    %768 = vmatpush.msra.mxu0 %v278
    %769 = vmatpush.msra.mxu0 %v273
    %770 = vmatpush.msra.mxu0 %v268
    %771 = vmatpush.msra.mxu0 %v263
    %772 = vmatmul.f32.gmra.mxu0 %v683
    %v773 = vpop.f32.mrf.mxu0
    %v774 = vadd.f32 %v754, %v773
    %775 = vdwg.mxu0
    %776 = vmatpush.msra.mxu0 %v418
    %777 = vmatpush.msra.mxu0 %v413
    %778 = vmatpush.msra.mxu0 %v408
    %779 = vmatpush.msra.mxu0 %v403
    %780 = vmatpush.msra.mxu0 %v398
    %781 = vmatpush.msra.mxu0 %v393
    %782 = vmatpush.msra.mxu0 %v388
    %783 = vmatpush.msra.mxu0 %v383
    %784 = vmatpush.msra.mxu0 %v378
    %785 = vmatpush.msra.mxu0 %v373
    %786 = vmatpush.msra.mxu0 %v368
    %787 = vmatpush.msra.mxu0 %v363
    %788 = vmatpush.msra.mxu0 %v358
    %789 = vmatpush.msra.mxu0 %v353
    %790 = vmatpush.msra.mxu0 %v348
    %791 = vmatpush.msra.mxu0 %v343
    %792 = vmatmul.f32.gmra.mxu0 %v684
    %v793 = vpop.f32.mrf.mxu0
    %v794 = vadd.f32 %v774, %v793
    %795 = vdwg.mxu0
    %796 = vmatpush.msra.mxu0 %v498
    %797 = vmatpush.msra.mxu0 %v493
    %798 = vmatpush.msra.mxu0 %v488
    %799 = vmatpush.msra.mxu0 %v483
    %800 = vmatpush.msra.mxu0 %v478
    %801 = vmatpush.msra.mxu0 %v473
    %802 = vmatpush.msra.mxu0 %v468
    %803 = vmatpush.msra.mxu0 %v463
    %804 = vmatpush.msra.mxu0 %v458
    %805 = vmatpush.msra.mxu0 %v453
    %806 = vmatpush.msra.mxu0 %v448
    %807 = vmatpush.msra.mxu0 %v443
    %808 = vmatpush.msra.mxu0 %v438
    %809 = vmatpush.msra.mxu0 %v433
    %810 = vmatpush.msra.mxu0 %v428
    %811 = vmatpush.msra.mxu0 %v423
    %812 = vmatmul.f32.gmra.mxu0 %v685
    %v813 = vpop.f32.mrf.mxu0
    %v814 = vadd.f32 %v794, %v813
    %815 = vdwg.mxu0
    %816 = vmatpush.msra.mxu0 %v578
    %817 = vmatpush.msra.mxu0 %v573
    %818 = vmatpush.msra.mxu0 %v568
    %819 = vmatpush.msra.mxu0 %v563
    %820 = vmatpush.msra.mxu0 %v558
    %821 = vmatpush.msra.mxu0 %v553
    %822 = vmatpush.msra.mxu0 %v548
    %823 = vmatpush.msra.mxu0 %v543
    %824 = vmatpush.msra.mxu0 %v538
    %825 = vmatpush.msra.mxu0 %v533
    %826 = vmatpush.msra.mxu0 %v528
    %827 = vmatpush.msra.mxu0 %v523
    %828 = vmatpush.msra.mxu0 %v518
    %829 = vmatpush.msra.mxu0 %v513
    %830 = vmatpush.msra.mxu0 %v508
    %831 = vmatpush.msra.mxu0 %v503
    %832 = vmatmul.f32.gmra.mxu0 %v686
    %v833 = vpop.f32.mrf.mxu0
    %v834 = vadd.f32 %v814, %v833
    %835 = vdwg.mxu0
    %836 = vmatpush.msra.mxu0 %v658
    %837 = vmatpush.msra.mxu0 %v653
    %838 = vmatpush.msra.mxu0 %v648
    %839 = vmatpush.msra.mxu0 %v643
    %840 = vmatpush.msra.mxu0 %v638
    %841 = vmatpush.msra.mxu0 %v633
    %842 = vmatpush.msra.mxu0 %v628
    %843 = vmatpush.msra.mxu0 %v623
    %844 = vmatpush.msra.mxu0 %v618
    %845 = vmatpush.msra.mxu0 %v613
    %846 = vmatpush.msra.mxu0 %v608
    %847 = vmatpush.msra.mxu0 %v603
    %848 = vmatpush.msra.mxu0 %v598
    %849 = vmatpush.msra.mxu0 %v593
    %850 = vmatpush.msra.mxu0 %v588
    %851 = vmatpush.msra.mxu0 %v583
    %852 = vmatmul.f32.gmra.mxu0 %v687
    %v853 = vpop.f32.mrf.mxu0
    %v854 = vadd.f32 %v834, %v853
    %855 = vdwg.mxu0
    %856 = vmatpush.msra.mxu0 %v99
    %857 = vmatpush.msra.mxu0 %v94
    %858 = vmatpush.msra.mxu0 %v89
    %859 = vmatpush.msra.mxu0 %v84
    %860 = vmatpush.msra.mxu0 %v79
    %861 = vmatpush.msra.mxu0 %v74
    %862 = vmatpush.msra.mxu0 %v69
    %863 = vmatpush.msra.mxu0 %v64
    %864 = vmatpush.msra.mxu0 %v59
    %865 = vmatpush.msra.mxu0 %v54
    %866 = vmatpush.msra.mxu0 %v49
    %867 = vmatpush.msra.mxu0 %v44
    %868 = vmatpush.msra.mxu0 %v39
    %869 = vmatpush.msra.mxu0 %v34
    %870 = vmatpush.msra.mxu0 %v29
    %871 = vmatpush.msra.mxu0 %v24
    %872 = vmatmul.f32.gmra.mxu0 %v680
    %v873 = vpop.f32.mrf.mxu0
    %v874 = vadd.f32 %v666, %v873
    %875 = vdwg.mxu0
    %876 = vmatpush.msra.mxu0 %v179
    %877 = vmatpush.msra.mxu0 %v174
    %878 = vmatpush.msra.mxu0 %v169
    %879 = vmatpush.msra.mxu0 %v164
    %880 = vmatpush.msra.mxu0 %v159
    %881 = vmatpush.msra.mxu0 %v154
    %882 = vmatpush.msra.mxu0 %v149
    %883 = vmatpush.msra.mxu0 %v144
    %884 = vmatpush.msra.mxu0 %v139
    %885 = vmatpush.msra.mxu0 %v134
    %886 = vmatpush.msra.mxu0 %v129
    %887 = vmatpush.msra.mxu0 %v124
    %888 = vmatpush.msra.mxu0 %v119
    %889 = vmatpush.msra.mxu0 %v114
    %890 = vmatpush.msra.mxu0 %v109
    %891 = vmatpush.msra.mxu0 %v104
    %892 = vmatmul.f32.gmra.mxu0 %v681
    %v893 = vpop.f32.mrf.mxu0
    %v894 = vadd.f32 %v874, %v893
    %895 = vdwg.mxu0
    %896 = vmatpush.msra.mxu0 %v259
    %897 = vmatpush.msra.mxu0 %v254
    %898 = vmatpush.msra.mxu0 %v249
    %899 = vmatpush.msra.mxu0 %v244
    %900 = vmatpush.msra.mxu0 %v239
    %901 = vmatpush.msra.mxu0 %v234
    %902 = vmatpush.msra.mxu0 %v229
    %903 = vmatpush.msra.mxu0 %v224
    %904 = vmatpush.msra.mxu0 %v219
    %905 = vmatpush.msra.mxu0 %v214
    %906 = vmatpush.msra.mxu0 %v209
    %907 = vmatpush.msra.mxu0 %v204
    %908 = vmatpush.msra.mxu0 %v199
    %909 = vmatpush.msra.mxu0 %v194
    %910 = vmatpush.msra.mxu0 %v189
    %911 = vmatpush.msra.mxu0 %v184
    %912 = vmatmul.f32.gmra.mxu0 %v682
    %v913 = vpop.f32.mrf.mxu0
    %v914 = vadd.f32 %v894, %v913
    %915 = vdwg.mxu0
    %916 = vmatpush.msra.mxu0 %v339
    %917 = vmatpush.msra.mxu0 %v334
    %918 = vmatpush.msra.mxu0 %v329
    %919 = vmatpush.msra.mxu0 %v324
    %920 = vmatpush.msra.mxu0 %v319
    %921 = vmatpush.msra.mxu0 %v314
    %922 = vmatpush.msra.mxu0 %v309
    %923 = vmatpush.msra.mxu0 %v304
    %924 = vmatpush.msra.mxu0 %v299
    %925 = vmatpush.msra.mxu0 %v294
    %926 = vmatpush.msra.mxu0 %v289
    %927 = vmatpush.msra.mxu0 %v284
    %928 = vmatpush.msra.mxu0 %v279
    %929 = vmatpush.msra.mxu0 %v274
    %930 = vmatpush.msra.mxu0 %v269
    %931 = vmatpush.msra.mxu0 %v264
    %932 = vmatmul.f32.gmra.mxu0 %v683
    %v933 = vpop.f32.mrf.mxu0
    %v934 = vadd.f32 %v914, %v933
    %935 = vdwg.mxu0
    %936 = vmatpush.msra.mxu0 %v419
    %937 = vmatpush.msra.mxu0 %v414
    %938 = vmatpush.msra.mxu0 %v409
    %939 = vmatpush.msra.mxu0 %v404
    %940 = vmatpush.msra.mxu0 %v399
    %941 = vmatpush.msra.mxu0 %v394
    %942 = vmatpush.msra.mxu0 %v389
    %943 = vmatpush.msra.mxu0 %v384
    %944 = vmatpush.msra.mxu0 %v379
    %945 = vmatpush.msra.mxu0 %v374
    %946 = vmatpush.msra.mxu0 %v369
    %947 = vmatpush.msra.mxu0 %v364
    %948 = vmatpush.msra.mxu0 %v359
    %949 = vmatpush.msra.mxu0 %v354
    %950 = vmatpush.msra.mxu0 %v349
    %951 = vmatpush.msra.mxu0 %v344
    %952 = vmatmul.f32.gmra.mxu0 %v684
    %v953 = vpop.f32.mrf.mxu0
    %v954 = vadd.f32 %v934, %v953
    %955 = vdwg.mxu0
    %956 = vmatpush.msra.mxu0 %v499
    %957 = vmatpush.msra.mxu0 %v494
    %958 = vmatpush.msra.mxu0 %v489
    %959 = vmatpush.msra.mxu0 %v484
    %960 = vmatpush.msra.mxu0 %v479
    %961 = vmatpush.msra.mxu0 %v474
    %962 = vmatpush.msra.mxu0 %v469
    %963 = vmatpush.msra.mxu0 %v464
    %964 = vmatpush.msra.mxu0 %v459
    %965 = vmatpush.msra.mxu0 %v454
    %966 = vmatpush.msra.mxu0 %v449
    %967 = vmatpush.msra.mxu0 %v444
    %968 = vmatpush.msra.mxu0 %v439
    %969 = vmatpush.msra.mxu0 %v434
    %970 = vmatpush.msra.mxu0 %v429
    %971 = vmatpush.msra.mxu0 %v424
    %972 = vmatmul.f32.gmra.mxu0 %v685
    %v973 = vpop.f32.mrf.mxu0
    %v974 = vadd.f32 %v954, %v973
    %975 = vdwg.mxu0
    %976 = vmatpush.msra.mxu0 %v579
    %977 = vmatpush.msra.mxu0 %v574
    %978 = vmatpush.msra.mxu0 %v569
    %979 = vmatpush.msra.mxu0 %v564
    %980 = vmatpush.msra.mxu0 %v559
    %981 = vmatpush.msra.mxu0 %v554
    %982 = vmatpush.msra.mxu0 %v549
    %983 = vmatpush.msra.mxu0 %v544
    %984 = vmatpush.msra.mxu0 %v539
    %985 = vmatpush.msra.mxu0 %v534
    %986 = vmatpush.msra.mxu0 %v529
    %987 = vmatpush.msra.mxu0 %v524
    %988 = vmatpush.msra.mxu0 %v519
    %989 = vmatpush.msra.mxu0 %v514
    %990 = vmatpush.msra.mxu0 %v509
    %991 = vmatpush.msra.mxu0 %v504
    %992 = vmatmul.f32.gmra.mxu0 %v686
    %v993 = vpop.f32.mrf.mxu0
    %v994 = vadd.f32 %v974, %v993
    %995 = vdwg.mxu0
    %996 = vmatpush.msra.mxu0 %v659
    %997 = vmatpush.msra.mxu0 %v654
    %998 = vmatpush.msra.mxu0 %v649
    %999 = vmatpush.msra.mxu0 %v644
    %1000 = vmatpush.msra.mxu0 %v639
    %1001 = vmatpush.msra.mxu0 %v634
    %1002 = vmatpush.msra.mxu0 %v629
    %1003 = vmatpush.msra.mxu0 %v624
    %1004 = vmatpush.msra.mxu0 %v619
    %1005 = vmatpush.msra.mxu0 %v614
    %1006 = vmatpush.msra.mxu0 %v609
    %1007 = vmatpush.msra.mxu0 %v604
    %1008 = vmatpush.msra.mxu0 %v599
    %1009 = vmatpush.msra.mxu0 %v594
    %1010 = vmatpush.msra.mxu0 %v589
    %1011 = vmatpush.msra.mxu0 %v584
    %1012 = vmatmul.f32.gmra.mxu0 %v687
    %v1013 = vpop.f32.mrf.mxu0
    %v1014 = vadd.f32 %v994, %v1013
    %1015 = vdwg.mxu0
    %1016 = vmatpush.msra.mxu0 %v100
    %1017 = vmatpush.msra.mxu0 %v95
    %1018 = vmatpush.msra.mxu0 %v90
    %1019 = vmatpush.msra.mxu0 %v85
    %1020 = vmatpush.msra.mxu0 %v80
    %1021 = vmatpush.msra.mxu0 %v75
    %1022 = vmatpush.msra.mxu0 %v70
    %1023 = vmatpush.msra.mxu0 %v65
    %1024 = vmatpush.msra.mxu0 %v60
    %1025 = vmatpush.msra.mxu0 %v55
    %1026 = vmatpush.msra.mxu0 %v50
    %1027 = vmatpush.msra.mxu0 %v45
    %1028 = vmatpush.msra.mxu0 %v40
    %1029 = vmatpush.msra.mxu0 %v35
    %1030 = vmatpush.msra.mxu0 %v30
    %1031 = vmatpush.msra.mxu0 %v25
    %1032 = vmatmul.f32.gmra.mxu0 %v680
    %v1033 = vpop.f32.mrf.mxu0
    %v1034 = vadd.f32 %v667, %v1033
    %1035 = vdwg.mxu0
    %1036 = vmatpush.msra.mxu0 %v180
    %1037 = vmatpush.msra.mxu0 %v175
    %1038 = vmatpush.msra.mxu0 %v170
    %1039 = vmatpush.msra.mxu0 %v165
    %1040 = vmatpush.msra.mxu0 %v160
    %1041 = vmatpush.msra.mxu0 %v155
    %1042 = vmatpush.msra.mxu0 %v150
    %1043 = vmatpush.msra.mxu0 %v145
    %1044 = vmatpush.msra.mxu0 %v140
    %1045 = vmatpush.msra.mxu0 %v135
    %1046 = vmatpush.msra.mxu0 %v130
    %1047 = vmatpush.msra.mxu0 %v125
    %1048 = vmatpush.msra.mxu0 %v120
    %1049 = vmatpush.msra.mxu0 %v115
    %1050 = vmatpush.msra.mxu0 %v110
    %1051 = vmatpush.msra.mxu0 %v105
    %1052 = vmatmul.f32.gmra.mxu0 %v681
    %v1053 = vpop.f32.mrf.mxu0
    %v1054 = vadd.f32 %v1034, %v1053
    %1055 = vdwg.mxu0
    %1056 = vmatpush.msra.mxu0 %v260
    %1057 = vmatpush.msra.mxu0 %v255
    %1058 = vmatpush.msra.mxu0 %v250
    %1059 = vmatpush.msra.mxu0 %v245
    %1060 = vmatpush.msra.mxu0 %v240
    %1061 = vmatpush.msra.mxu0 %v235
    %1062 = vmatpush.msra.mxu0 %v230
    %1063 = vmatpush.msra.mxu0 %v225
    %1064 = vmatpush.msra.mxu0 %v220
    %1065 = vmatpush.msra.mxu0 %v215
    %1066 = vmatpush.msra.mxu0 %v210
    %1067 = vmatpush.msra.mxu0 %v205
    %1068 = vmatpush.msra.mxu0 %v200
    %1069 = vmatpush.msra.mxu0 %v195
    %1070 = vmatpush.msra.mxu0 %v190
    %1071 = vmatpush.msra.mxu0 %v185
    %1072 = vmatmul.f32.gmra.mxu0 %v682
    %v1073 = vpop.f32.mrf.mxu0
    %v1074 = vadd.f32 %v1054, %v1073
    %1075 = vdwg.mxu0
    %1076 = vmatpush.msra.mxu0 %v340
    %1077 = vmatpush.msra.mxu0 %v335
    %1078 = vmatpush.msra.mxu0 %v330
    %1079 = vmatpush.msra.mxu0 %v325
    %1080 = vmatpush.msra.mxu0 %v320
    %1081 = vmatpush.msra.mxu0 %v315
    %1082 = vmatpush.msra.mxu0 %v310
    %1083 = vmatpush.msra.mxu0 %v305
    %1084 = vmatpush.msra.mxu0 %v300
    %1085 = vmatpush.msra.mxu0 %v295
    %1086 = vmatpush.msra.mxu0 %v290
    %1087 = vmatpush.msra.mxu0 %v285
    %1088 = vmatpush.msra.mxu0 %v280
    %1089 = vmatpush.msra.mxu0 %v275
    %1090 = vmatpush.msra.mxu0 %v270
    %1091 = vmatpush.msra.mxu0 %v265
    %1092 = vmatmul.f32.gmra.mxu0 %v683
    %v1093 = vpop.f32.mrf.mxu0
    %v1094 = vadd.f32 %v1074, %v1093
    %1095 = vdwg.mxu0
    %1096 = vmatpush.msra.mxu0 %v420
    %1097 = vmatpush.msra.mxu0 %v415
    %1098 = vmatpush.msra.mxu0 %v410
    %1099 = vmatpush.msra.mxu0 %v405
    %1100 = vmatpush.msra.mxu0 %v400
    %1101 = vmatpush.msra.mxu0 %v395
    %1102 = vmatpush.msra.mxu0 %v390
    %1103 = vmatpush.msra.mxu0 %v385
    %1104 = vmatpush.msra.mxu0 %v380
    %1105 = vmatpush.msra.mxu0 %v375
    %1106 = vmatpush.msra.mxu0 %v370
    %1107 = vmatpush.msra.mxu0 %v365
    %1108 = vmatpush.msra.mxu0 %v360
    %1109 = vmatpush.msra.mxu0 %v355
    %1110 = vmatpush.msra.mxu0 %v350
    %1111 = vmatpush.msra.mxu0 %v345
    %1112 = vmatmul.f32.gmra.mxu0 %v684
    %v1113 = vpop.f32.mrf.mxu0
    %v1114 = vadd.f32 %v1094, %v1113
    %1115 = vdwg.mxu0
    %1116 = vmatpush.msra.mxu0 %v500
    %1117 = vmatpush.msra.mxu0 %v495
    %1118 = vmatpush.msra.mxu0 %v490
    %1119 = vmatpush.msra.mxu0 %v485
    %1120 = vmatpush.msra.mxu0 %v480
    %1121 = vmatpush.msra.mxu0 %v475
    %1122 = vmatpush.msra.mxu0 %v470
    %1123 = vmatpush.msra.mxu0 %v465
    %1124 = vmatpush.msra.mxu0 %v460
    %1125 = vmatpush.msra.mxu0 %v455
    %1126 = vmatpush.msra.mxu0 %v450
    %1127 = vmatpush.msra.mxu0 %v445
    %1128 = vmatpush.msra.mxu0 %v440
    %1129 = vmatpush.msra.mxu0 %v435
    %1130 = vmatpush.msra.mxu0 %v430
    %1131 = vmatpush.msra.mxu0 %v425
    %1132 = vmatmul.f32.gmra.mxu0 %v685
    %v1133 = vpop.f32.mrf.mxu0
    %v1134 = vadd.f32 %v1114, %v1133
    %1135 = vdwg.mxu0
    %1136 = vmatpush.msra.mxu0 %v580
    %1137 = vmatpush.msra.mxu0 %v575
    %1138 = vmatpush.msra.mxu0 %v570
    %1139 = vmatpush.msra.mxu0 %v565
    %1140 = vmatpush.msra.mxu0 %v560
    %1141 = vmatpush.msra.mxu0 %v555
    %1142 = vmatpush.msra.mxu0 %v550
    %1143 = vmatpush.msra.mxu0 %v545
    %1144 = vmatpush.msra.mxu0 %v540
    %1145 = vmatpush.msra.mxu0 %v535
    %1146 = vmatpush.msra.mxu0 %v530
    %1147 = vmatpush.msra.mxu0 %v525
    %1148 = vmatpush.msra.mxu0 %v520
    %1149 = vmatpush.msra.mxu0 %v515
    %1150 = vmatpush.msra.mxu0 %v510
    %1151 = vmatpush.msra.mxu0 %v505
    %1152 = vmatmul.f32.gmra.mxu0 %v686
    %v1153 = vpop.f32.mrf.mxu0
    %v1154 = vadd.f32 %v1134, %v1153
    %1155 = vdwg.mxu0
    %1156 = vmatpush.msra.mxu0 %v660
    %1157 = vmatpush.msra.mxu0 %v655
    %1158 = vmatpush.msra.mxu0 %v650
    %1159 = vmatpush.msra.mxu0 %v645
    %1160 = vmatpush.msra.mxu0 %v640
    %1161 = vmatpush.msra.mxu0 %v635
    %1162 = vmatpush.msra.mxu0 %v630
    %1163 = vmatpush.msra.mxu0 %v625
    %1164 = vmatpush.msra.mxu0 %v620
    %1165 = vmatpush.msra.mxu0 %v615
    %1166 = vmatpush.msra.mxu0 %v610
    %1167 = vmatpush.msra.mxu0 %v605
    %1168 = vmatpush.msra.mxu0 %v600
    %1169 = vmatpush.msra.mxu0 %v595
    %1170 = vmatpush.msra.mxu0 %v590
    %1171 = vmatpush.msra.mxu0 %v585
    %1172 = vmatmul.f32.gmra.mxu0 %v687
    %v1173 = vpop.f32.mrf.mxu0
    %v1174 = vadd.f32 %v1154, %v1173
    %1175 = vdwg.mxu0
    %1176 = vmatpush.msra.mxu0 %v101
    %1177 = vmatpush.msra.mxu0 %v96
    %1178 = vmatpush.msra.mxu0 %v91
    %1179 = vmatpush.msra.mxu0 %v86
    %1180 = vmatpush.msra.mxu0 %v81
    %1181 = vmatpush.msra.mxu0 %v76
    %1182 = vmatpush.msra.mxu0 %v71
    %1183 = vmatpush.msra.mxu0 %v66
    %1184 = vmatpush.msra.mxu0 %v61
    %1185 = vmatpush.msra.mxu0 %v56
    %1186 = vmatpush.msra.mxu0 %v51
    %1187 = vmatpush.msra.mxu0 %v46
    %1188 = vmatpush.msra.mxu0 %v41
    %1189 = vmatpush.msra.mxu0 %v36
    %1190 = vmatpush.msra.mxu0 %v31
    %1191 = vmatpush.msra.mxu0 %v26
    %1192 = vmatmul.f32.gmra.mxu0 %v680
    %v1193 = vpop.f32.mrf.mxu0
    %v1194 = vadd.f32 %v668, %v1193
    %1195 = vdwg.mxu0
    %1196 = vmatpush.msra.mxu0 %v181
    %1197 = vmatpush.msra.mxu0 %v176
    %1198 = vmatpush.msra.mxu0 %v171
    %1199 = vmatpush.msra.mxu0 %v166
    %1200 = vmatpush.msra.mxu0 %v161
    %1201 = vmatpush.msra.mxu0 %v156
    %1202 = vmatpush.msra.mxu0 %v151
    %1203 = vmatpush.msra.mxu0 %v146
    %1204 = vmatpush.msra.mxu0 %v141
    %1205 = vmatpush.msra.mxu0 %v136
    %1206 = vmatpush.msra.mxu0 %v131
    %1207 = vmatpush.msra.mxu0 %v126
    %1208 = vmatpush.msra.mxu0 %v121
    %1209 = vmatpush.msra.mxu0 %v116
    %1210 = vmatpush.msra.mxu0 %v111
    %1211 = vmatpush.msra.mxu0 %v106
    %1212 = vmatmul.f32.gmra.mxu0 %v681
    %v1213 = vpop.f32.mrf.mxu0
    %v1214 = vadd.f32 %v1194, %v1213
    %1215 = vdwg.mxu0
    %1216 = vmatpush.msra.mxu0 %v261
    %1217 = vmatpush.msra.mxu0 %v256
    %1218 = vmatpush.msra.mxu0 %v251
    %1219 = vmatpush.msra.mxu0 %v246
    %1220 = vmatpush.msra.mxu0 %v241
    %1221 = vmatpush.msra.mxu0 %v236
    %1222 = vmatpush.msra.mxu0 %v231
    %1223 = vmatpush.msra.mxu0 %v226
    %1224 = vmatpush.msra.mxu0 %v221
    %1225 = vmatpush.msra.mxu0 %v216
    %1226 = vmatpush.msra.mxu0 %v211
    %1227 = vmatpush.msra.mxu0 %v206
    %1228 = vmatpush.msra.mxu0 %v201
    %1229 = vmatpush.msra.mxu0 %v196
    %1230 = vmatpush.msra.mxu0 %v191
    %1231 = vmatpush.msra.mxu0 %v186
    %1232 = vmatmul.f32.gmra.mxu0 %v682
    %v1233 = vpop.f32.mrf.mxu0
    %v1234 = vadd.f32 %v1214, %v1233
    %1235 = vdwg.mxu0
    %1236 = vmatpush.msra.mxu0 %v341
    %1237 = vmatpush.msra.mxu0 %v336
    %1238 = vmatpush.msra.mxu0 %v331
    %1239 = vmatpush.msra.mxu0 %v326
    %1240 = vmatpush.msra.mxu0 %v321
    %1241 = vmatpush.msra.mxu0 %v316
    %1242 = vmatpush.msra.mxu0 %v311
    %1243 = vmatpush.msra.mxu0 %v306
    %1244 = vmatpush.msra.mxu0 %v301
    %1245 = vmatpush.msra.mxu0 %v296
    %1246 = vmatpush.msra.mxu0 %v291
    %1247 = vmatpush.msra.mxu0 %v286
    %1248 = vmatpush.msra.mxu0 %v281
    %1249 = vmatpush.msra.mxu0 %v276
    %1250 = vmatpush.msra.mxu0 %v271
    %1251 = vmatpush.msra.mxu0 %v266
    %1252 = vmatmul.f32.gmra.mxu0 %v683
    %v1253 = vpop.f32.mrf.mxu0
    %v1254 = vadd.f32 %v1234, %v1253
    %1255 = vdwg.mxu0
    %1256 = vmatpush.msra.mxu0 %v421
    %1257 = vmatpush.msra.mxu0 %v416
    %1258 = vmatpush.msra.mxu0 %v411
    %1259 = vmatpush.msra.mxu0 %v406
    %1260 = vmatpush.msra.mxu0 %v401
    %1261 = vmatpush.msra.mxu0 %v396
    %1262 = vmatpush.msra.mxu0 %v391
    %1263 = vmatpush.msra.mxu0 %v386
    %1264 = vmatpush.msra.mxu0 %v381
    %1265 = vmatpush.msra.mxu0 %v376
    %1266 = vmatpush.msra.mxu0 %v371
    %1267 = vmatpush.msra.mxu0 %v366
    %1268 = vmatpush.msra.mxu0 %v361
    %1269 = vmatpush.msra.mxu0 %v356
    %1270 = vmatpush.msra.mxu0 %v351
    %1271 = vmatpush.msra.mxu0 %v346
    %1272 = vmatmul.f32.gmra.mxu0 %v684
    %v1273 = vpop.f32.mrf.mxu0
    %v1274 = vadd.f32 %v1254, %v1273
    %1275 = vdwg.mxu0
    %1276 = vmatpush.msra.mxu0 %v501
    %1277 = vmatpush.msra.mxu0 %v496
    %1278 = vmatpush.msra.mxu0 %v491
    %1279 = vmatpush.msra.mxu0 %v486
    %1280 = vmatpush.msra.mxu0 %v481
    %1281 = vmatpush.msra.mxu0 %v476
    %1282 = vmatpush.msra.mxu0 %v471
    %1283 = vmatpush.msra.mxu0 %v466
    %1284 = vmatpush.msra.mxu0 %v461
    %1285 = vmatpush.msra.mxu0 %v456
    %1286 = vmatpush.msra.mxu0 %v451
    %1287 = vmatpush.msra.mxu0 %v446
    %1288 = vmatpush.msra.mxu0 %v441
    %1289 = vmatpush.msra.mxu0 %v436
    %1290 = vmatpush.msra.mxu0 %v431
    %1291 = vmatpush.msra.mxu0 %v426
    %1292 = vmatmul.f32.gmra.mxu0 %v685
    %v1293 = vpop.f32.mrf.mxu0
    %v1294 = vadd.f32 %v1274, %v1293
    %1295 = vdwg.mxu0
    %1296 = vmatpush.msra.mxu0 %v581
    %1297 = vmatpush.msra.mxu0 %v576
    %1298 = vmatpush.msra.mxu0 %v571
    %1299 = vmatpush.msra.mxu0 %v566
    %1300 = vmatpush.msra.mxu0 %v561
    %1301 = vmatpush.msra.mxu0 %v556
    %1302 = vmatpush.msra.mxu0 %v551
    %1303 = vmatpush.msra.mxu0 %v546
    %1304 = vmatpush.msra.mxu0 %v541
    %1305 = vmatpush.msra.mxu0 %v536
    %1306 = vmatpush.msra.mxu0 %v531
    %1307 = vmatpush.msra.mxu0 %v526
    %1308 = vmatpush.msra.mxu0 %v521
    %1309 = vmatpush.msra.mxu0 %v516
    %1310 = vmatpush.msra.mxu0 %v511
    %1311 = vmatpush.msra.mxu0 %v506
    %1312 = vmatmul.f32.gmra.mxu0 %v686
    %v1313 = vpop.f32.mrf.mxu0
    %v1314 = vadd.f32 %v1294, %v1313
    %1315 = vdwg.mxu0
    %1316 = vmatpush.msra.mxu0 %v661
    %1317 = vmatpush.msra.mxu0 %v656
    %1318 = vmatpush.msra.mxu0 %v651
    %1319 = vmatpush.msra.mxu0 %v646
    %1320 = vmatpush.msra.mxu0 %v641
    %1321 = vmatpush.msra.mxu0 %v636
    %1322 = vmatpush.msra.mxu0 %v631
    %1323 = vmatpush.msra.mxu0 %v626
    %1324 = vmatpush.msra.mxu0 %v621
    %1325 = vmatpush.msra.mxu0 %v616
    %1326 = vmatpush.msra.mxu0 %v611
    %1327 = vmatpush.msra.mxu0 %v606
    %1328 = vmatpush.msra.mxu0 %v601
    %1329 = vmatpush.msra.mxu0 %v596
    %1330 = vmatpush.msra.mxu0 %v591
    %1331 = vmatpush.msra.mxu0 %v586
    %1332 = vmatmul.f32.gmra.mxu0 %v687
    %v1333 = vpop.f32.mrf.mxu0
    %v1334 = vadd.f32 %v1314, %v1333
    %1335 = vdwg.mxu0
    %1336 = vmatpush.msra.mxu0 %v102
    %1337 = vmatpush.msra.mxu0 %v97
    %1338 = vmatpush.msra.mxu0 %v92
    %1339 = vmatpush.msra.mxu0 %v87
    %1340 = vmatpush.msra.mxu0 %v82
    %1341 = vmatpush.msra.mxu0 %v77
    %1342 = vmatpush.msra.mxu0 %v72
    %1343 = vmatpush.msra.mxu0 %v67
    %1344 = vmatpush.msra.mxu0 %v62
    %1345 = vmatpush.msra.mxu0 %v57
    %1346 = vmatpush.msra.mxu0 %v52
    %1347 = vmatpush.msra.mxu0 %v47
    %1348 = vmatpush.msra.mxu0 %v42
    %1349 = vmatpush.msra.mxu0 %v37
    %1350 = vmatpush.msra.mxu0 %v32
    %1351 = vmatpush.msra.mxu0 %v27
    %1352 = vmatmul.f32.gmra.mxu0 %v680
    %v1353 = vpop.f32.mrf.mxu0
    %v1354 = vadd.f32 %v669, %v1353
    %1355 = vdwg.mxu0
    %1356 = vmatpush.msra.mxu0 %v182
    %1357 = vmatpush.msra.mxu0 %v177
    %1358 = vmatpush.msra.mxu0 %v172
    %1359 = vmatpush.msra.mxu0 %v167
    %1360 = vmatpush.msra.mxu0 %v162
    %1361 = vmatpush.msra.mxu0 %v157
    %1362 = vmatpush.msra.mxu0 %v152
    %1363 = vmatpush.msra.mxu0 %v147
    %1364 = vmatpush.msra.mxu0 %v142
    %1365 = vmatpush.msra.mxu0 %v137
    %1366 = vmatpush.msra.mxu0 %v132
    %1367 = vmatpush.msra.mxu0 %v127
    %1368 = vmatpush.msra.mxu0 %v122
    %1369 = vmatpush.msra.mxu0 %v117
    %1370 = vmatpush.msra.mxu0 %v112
    %1371 = vmatpush.msra.mxu0 %v107
    %1372 = vmatmul.f32.gmra.mxu0 %v681
    %v1373 = vpop.f32.mrf.mxu0
    %v1374 = vadd.f32 %v1354, %v1373
    %1375 = vdwg.mxu0
    %1376 = vmatpush.msra.mxu0 %v262
    %1377 = vmatpush.msra.mxu0 %v257
    %1378 = vmatpush.msra.mxu0 %v252
    %1379 = vmatpush.msra.mxu0 %v247
    %1380 = vmatpush.msra.mxu0 %v242
    %1381 = vmatpush.msra.mxu0 %v237
    %1382 = vmatpush.msra.mxu0 %v232
    %1383 = vmatpush.msra.mxu0 %v227
    %1384 = vmatpush.msra.mxu0 %v222
    %1385 = vmatpush.msra.mxu0 %v217
    %1386 = vmatpush.msra.mxu0 %v212
    %1387 = vmatpush.msra.mxu0 %v207
    %1388 = vmatpush.msra.mxu0 %v202
    %1389 = vmatpush.msra.mxu0 %v197
    %1390 = vmatpush.msra.mxu0 %v192
    %1391 = vmatpush.msra.mxu0 %v187
    %1392 = vmatmul.f32.gmra.mxu0 %v682
    %v1393 = vpop.f32.mrf.mxu0
    %v1394 = vadd.f32 %v1374, %v1393
    %1395 = vdwg.mxu0
    %1396 = vmatpush.msra.mxu0 %v342
    %1397 = vmatpush.msra.mxu0 %v337
    %1398 = vmatpush.msra.mxu0 %v332
    %1399 = vmatpush.msra.mxu0 %v327
    %1400 = vmatpush.msra.mxu0 %v322
    %1401 = vmatpush.msra.mxu0 %v317
    %1402 = vmatpush.msra.mxu0 %v312
    %1403 = vmatpush.msra.mxu0 %v307
    %1404 = vmatpush.msra.mxu0 %v302
    %1405 = vmatpush.msra.mxu0 %v297
    %1406 = vmatpush.msra.mxu0 %v292
    %1407 = vmatpush.msra.mxu0 %v287
    %1408 = vmatpush.msra.mxu0 %v282
    %1409 = vmatpush.msra.mxu0 %v277
    %1410 = vmatpush.msra.mxu0 %v272
    %1411 = vmatpush.msra.mxu0 %v267
    %1412 = vmatmul.f32.gmra.mxu0 %v683
    %v1413 = vpop.f32.mrf.mxu0
    %v1414 = vadd.f32 %v1394, %v1413
    %1415 = vdwg.mxu0
    %1416 = vmatpush.msra.mxu0 %v422
    %1417 = vmatpush.msra.mxu0 %v417
    %1418 = vmatpush.msra.mxu0 %v412
    %1419 = vmatpush.msra.mxu0 %v407
    %1420 = vmatpush.msra.mxu0 %v402
    %1421 = vmatpush.msra.mxu0 %v397
    %1422 = vmatpush.msra.mxu0 %v392
    %1423 = vmatpush.msra.mxu0 %v387
    %1424 = vmatpush.msra.mxu0 %v382
    %1425 = vmatpush.msra.mxu0 %v377
    %1426 = vmatpush.msra.mxu0 %v372
    %1427 = vmatpush.msra.mxu0 %v367
    %1428 = vmatpush.msra.mxu0 %v362
    %1429 = vmatpush.msra.mxu0 %v357
    %1430 = vmatpush.msra.mxu0 %v352
    %1431 = vmatpush.msra.mxu0 %v347
    %1432 = vmatmul.f32.gmra.mxu0 %v684
    %v1433 = vpop.f32.mrf.mxu0
    %v1434 = vadd.f32 %v1414, %v1433
    %1435 = vdwg.mxu0
    %1436 = vmatpush.msra.mxu0 %v502
    %1437 = vmatpush.msra.mxu0 %v497
    %1438 = vmatpush.msra.mxu0 %v492
    %1439 = vmatpush.msra.mxu0 %v487
    %1440 = vmatpush.msra.mxu0 %v482
    %1441 = vmatpush.msra.mxu0 %v477
    %1442 = vmatpush.msra.mxu0 %v472
    %1443 = vmatpush.msra.mxu0 %v467
    %1444 = vmatpush.msra.mxu0 %v462
    %1445 = vmatpush.msra.mxu0 %v457
    %1446 = vmatpush.msra.mxu0 %v452
    %1447 = vmatpush.msra.mxu0 %v447
    %1448 = vmatpush.msra.mxu0 %v442
    %1449 = vmatpush.msra.mxu0 %v437
    %1450 = vmatpush.msra.mxu0 %v432
    %1451 = vmatpush.msra.mxu0 %v427
    %1452 = vmatmul.f32.gmra.mxu0 %v685
    %v1453 = vpop.f32.mrf.mxu0
    %v1454 = vadd.f32 %v1434, %v1453
    %1455 = vdwg.mxu0
    %1456 = vmatpush.msra.mxu0 %v582
    %1457 = vmatpush.msra.mxu0 %v577
    %1458 = vmatpush.msra.mxu0 %v572
    %1459 = vmatpush.msra.mxu0 %v567
    %1460 = vmatpush.msra.mxu0 %v562
    %1461 = vmatpush.msra.mxu0 %v557
    %1462 = vmatpush.msra.mxu0 %v552
    %1463 = vmatpush.msra.mxu0 %v547
    %1464 = vmatpush.msra.mxu0 %v542
    %1465 = vmatpush.msra.mxu0 %v537
    %1466 = vmatpush.msra.mxu0 %v532
    %1467 = vmatpush.msra.mxu0 %v527
    %1468 = vmatpush.msra.mxu0 %v522
    %1469 = vmatpush.msra.mxu0 %v517
    %1470 = vmatpush.msra.mxu0 %v512
    %1471 = vmatpush.msra.mxu0 %v507
    %1472 = vmatmul.f32.gmra.mxu0 %v686
    %v1473 = vpop.f32.mrf.mxu0
    %v1474 = vadd.f32 %v1454, %v1473
    %1475 = vdwg.mxu0
    %1476 = vmatpush.msra.mxu0 %v662
    %1477 = vmatpush.msra.mxu0 %v657
    %1478 = vmatpush.msra.mxu0 %v652
    %1479 = vmatpush.msra.mxu0 %v647
    %1480 = vmatpush.msra.mxu0 %v642
    %1481 = vmatpush.msra.mxu0 %v637
    %1482 = vmatpush.msra.mxu0 %v632
    %1483 = vmatpush.msra.mxu0 %v627
    %1484 = vmatpush.msra.mxu0 %v622
    %1485 = vmatpush.msra.mxu0 %v617
    %1486 = vmatpush.msra.mxu0 %v612
    %1487 = vmatpush.msra.mxu0 %v607
    %1488 = vmatpush.msra.mxu0 %v602
    %1489 = vmatpush.msra.mxu0 %v597
    %1490 = vmatpush.msra.mxu0 %v592
    %1491 = vmatpush.msra.mxu0 %v587
    %1492 = vmatmul.f32.gmra.mxu0 %v687
    %v1493 = vpop.f32.mrf.mxu0
    %v1494 = vadd.f32 %v1474, %v1493
    %1495 = vdwg.mxu0
    %v1496 = vmax.f32 %v854, 0.0
    %v1497 = vmax.f32 %v1014, 0.0
    %v1498 = vmax.f32 %v1174, 0.0
    %v1499 = vmax.f32 %v1334, 0.0
    %v1500 = vmax.f32 %v1494, 0.0
    %v1501 = vld [vmem:[%s3] sm:$0xff]
    %v1502 = vld [vmem:[%s3 + $0x8] sm:$0xff]
    %v1503 = vld [vmem:[%s3 + $0x10] sm:$0xff]
    %v1504 = vld [vmem:[%s3 + $0x18] sm:$0xff]
    %v1505 = vld [vmem:[%s3 + $0x20] sm:$0xff]
    %v1506 = vld [vmem:[%s3 + $0x28] sm:$0xff]
    %v1507 = vld [vmem:[%s3 + $0x30] sm:$0xff]
    %v1508 = vld [vmem:[%s3 + $0x38] sm:$0xff]
    %v1509 = vld [vmem:[%s3 + $0x40] sm:$0xff]
    %v1510 = vld [vmem:[%s3 + $0x48] sm:$0xff]
    %v1511 = vld [vmem:[%s3 + $0x50] sm:$0xff]
    %v1512 = vld [vmem:[%s3 + $0x58] sm:$0xff]
    %v1513 = vld [vmem:[%s3 + $0x60] sm:$0xff]
    %v1514 = vld [vmem:[%s3 + $0x68] sm:$0xff]
    %v1515 = vld [vmem:[%s3 + $0x70] sm:$0xff]
    %v1516 = vld [vmem:[%s3 + $0x78] sm:$0xff]
    %v1517 = vld [vmem:[%s3 + $0x80] sm:$0xff]
    %v1518 = vld [vmem:[%s3 + $0x88] sm:$0xff]
    %v1519 = vld [vmem:[%s3 + $0x90] sm:$0xff]
    %v1520 = vld [vmem:[%s3 + $0x98] sm:$0xff]
    %v1521 = vld [vmem:[%s3 + $0xa0] sm:$0xff]
    %v1522 = vld [vmem:[%s3 + $0xa8] sm:$0xff]
    %v1523 = vld [vmem:[%s3 + $0xb0] sm:$0xff]
    %v1524 = vld [vmem:[%s3 + $0xb8] sm:$0xff]
    %v1525 = vld [vmem:[%s3 + $0xc0] sm:$0xff]
    %v1526 = vld [vmem:[%s3 + $0xc8] sm:$0xff]
    %v1527 = vld [vmem:[%s3 + $0xd0] sm:$0xff]
    %v1528 = vld [vmem:[%s3 + $0xd8] sm:$0xff]
    %v1529 = vld [vmem:[%s3 + $0xe0] sm:$0xff]
    %v1530 = vld [vmem:[%s3 + $0xe8] sm:$0xff]
    %v1531 = vld [vmem:[%s3 + $0xf0] sm:$0xff]
    %v1532 = vld [vmem:[%s3 + $0xf8] sm:$0xff]
    %v1533 = vld [vmem:[%s3 + $0x100] sm:$0xff]
    %v1534 = vld [vmem:[%s3 + $0x108] sm:$0xff]
    %v1535 = vld [vmem:[%s3 + $0x110] sm:$0xff]
    %v1536 = vld [vmem:[%s3 + $0x118] sm:$0xff]
    %v1537 = vld [vmem:[%s3 + $0x120] sm:$0xff]
    %v1538 = vld [vmem:[%s3 + $0x128] sm:$0xff]
    %v1539 = vld [vmem:[%s3 + $0x130] sm:$0xff]
    %v1540 = vld [vmem:[%s3 + $0x138] sm:$0xff]
    %v1541 = vld [vmem:[%s3 + $0x140] sm:$0xff]
    %v1542 = vld [vmem:[%s3 + $0x148] sm:$0xff]
    %v1543 = vld [vmem:[%s3 + $0x150] sm:$0xff]
    %v1544 = vld [vmem:[%s3 + $0x158] sm:$0xff]
    %v1545 = vld [vmem:[%s3 + $0x160] sm:$0xff]
    %v1546 = vld [vmem:[%s3 + $0x168] sm:$0xff]
    %v1547 = vld [vmem:[%s3 + $0x170] sm:$0xff]
    %v1548 = vld [vmem:[%s3 + $0x178] sm:$0xff]
    %v1549 = vld [vmem:[%s3 + $0x180] sm:$0xff]
    %v1550 = vld [vmem:[%s3 + $0x188] sm:$0xff]
    %v1551 = vld [vmem:[%s3 + $0x190] sm:$0xff]
    %v1552 = vld [vmem:[%s3 + $0x198] sm:$0xff]
    %v1553 = vld [vmem:[%s3 + $0x1a0] sm:$0xff]
    %v1554 = vld [vmem:[%s3 + $0x1a8] sm:$0xff]
    %v1555 = vld [vmem:[%s3 + $0x1b0] sm:$0xff]
    %v1556 = vld [vmem:[%s3 + $0x1b8] sm:$0xff]
    %v1557 = vld [vmem:[%s3 + $0x1c0] sm:$0xff]
    %v1558 = vld [vmem:[%s3 + $0x1c8] sm:$0xff]
    %v1559 = vld [vmem:[%s3 + $0x1d0] sm:$0xff]
    %v1560 = vld [vmem:[%s3 + $0x1d8] sm:$0xff]
    %v1561 = vld [vmem:[%s3 + $0x1e0] sm:$0xff]
    %v1562 = vld [vmem:[%s3 + $0x1e8] sm:$0xff]
    %v1563 = vld [vmem:[%s3 + $0x1f0] sm:$0xff]
    %v1564 = vld [vmem:[%s3 + $0x1f8] sm:$0xff]
    %v1565 = vld [vmem:[%s3 + $0x200] sm:$0xff]
    %v1566 = vld [vmem:[%s3 + $0x208] sm:$0xff]
    %v1567 = vld [vmem:[%s3 + $0x210] sm:$0xff]
    %v1568 = vld [vmem:[%s3 + $0x218] sm:$0xff]
    %v1569 = vld [vmem:[%s3 + $0x220] sm:$0xff]
    %v1570 = vld [vmem:[%s3 + $0x228] sm:$0xff]
    %v1571 = vld [vmem:[%s3 + $0x230] sm:$0xff]
    %v1572 = vld [vmem:[%s3 + $0x238] sm:$0xff]
    %v1573 = vld [vmem:[%s3 + $0x240] sm:$0xff]
    %v1574 = vld [vmem:[%s3 + $0x248] sm:$0xff]
    %v1575 = vld [vmem:[%s3 + $0x250] sm:$0xff]
    %v1576 = vld [vmem:[%s3 + $0x258] sm:$0xff]
    %v1577 = vld [vmem:[%s3 + $0x260] sm:$0xff]
    %v1578 = vld [vmem:[%s3 + $0x268] sm:$0xff]
    %v1579 = vld [vmem:[%s3 + $0x270] sm:$0x1]
    %v1580 = vld [vmem:[%s4] sm:$0x1]
    %v1582 = vperm.slane %v1580, 0
    %vm1584 = vcmask 924672
    %v1586 = vsel %vm1584, %v1500, 0
    %vm1588 = vcmask 1040384
    %v1590 = vsel %vm1588, %v1579, 0
    %1592 = vmatpush.msra.mxu0 %v1516
    %1593 = vmatpush.msra.mxu0 %v1515
    %1594 = vmatpush.msra.mxu0 %v1514
    %1595 = vmatpush.msra.mxu0 %v1513
    %1596 = vmatpush.msra.mxu0 %v1512
    %1597 = vmatpush.msra.mxu0 %v1511
    %1598 = vmatpush.msra.mxu0 %v1510
    %1599 = vmatpush.msra.mxu0 %v1509
    %1600 = vmatpush.msra.mxu0 %v1508
    %1601 = vmatpush.msra.mxu0 %v1507
    %1602 = vmatpush.msra.mxu0 %v1506
    %1603 = vmatpush.msra.mxu0 %v1505
    %1604 = vmatpush.msra.mxu0 %v1504
    %1605 = vmatpush.msra.mxu0 %v1503
    %1606 = vmatpush.msra.mxu0 %v1502
    %1607 = vmatpush.msra.mxu0 %v1501
    %1608 = vmatmul.f32.gmra.mxu0 %v1496
    %v1609 = vpop.f32.mrf.mxu0
    %v1610 = vadd.f32 %v1582, %v1609
    %1611 = vdwg.mxu0
    %1612 = vmatpush.msra.mxu0 %v1532
    %1613 = vmatpush.msra.mxu0 %v1531
    %1614 = vmatpush.msra.mxu0 %v1530
    %1615 = vmatpush.msra.mxu0 %v1529
    %1616 = vmatpush.msra.mxu0 %v1528
    %1617 = vmatpush.msra.mxu0 %v1527
    %1618 = vmatpush.msra.mxu0 %v1526
    %1619 = vmatpush.msra.mxu0 %v1525
    %1620 = vmatpush.msra.mxu0 %v1524
    %1621 = vmatpush.msra.mxu0 %v1523
    %1622 = vmatpush.msra.mxu0 %v1522
    %1623 = vmatpush.msra.mxu0 %v1521
    %1624 = vmatpush.msra.mxu0 %v1520
    %1625 = vmatpush.msra.mxu0 %v1519
    %1626 = vmatpush.msra.mxu0 %v1518
    %1627 = vmatpush.msra.mxu0 %v1517
    %1628 = vmatmul.f32.gmra.mxu0 %v1497
    %v1629 = vpop.f32.mrf.mxu0
    %v1630 = vadd.f32 %v1610, %v1629
    %1631 = vdwg.mxu0
    %1632 = vmatpush.msra.mxu0 %v1548
    %1633 = vmatpush.msra.mxu0 %v1547
    %1634 = vmatpush.msra.mxu0 %v1546
    %1635 = vmatpush.msra.mxu0 %v1545
    %1636 = vmatpush.msra.mxu0 %v1544
    %1637 = vmatpush.msra.mxu0 %v1543
    %1638 = vmatpush.msra.mxu0 %v1542
    %1639 = vmatpush.msra.mxu0 %v1541
    %1640 = vmatpush.msra.mxu0 %v1540
    %1641 = vmatpush.msra.mxu0 %v1539
    %1642 = vmatpush.msra.mxu0 %v1538
    %1643 = vmatpush.msra.mxu0 %v1537
    %1644 = vmatpush.msra.mxu0 %v1536
    %1645 = vmatpush.msra.mxu0 %v1535
    %1646 = vmatpush.msra.mxu0 %v1534
    %1647 = vmatpush.msra.mxu0 %v1533
    %1648 = vmatmul.f32.gmra.mxu0 %v1498
    %v1649 = vpop.f32.mrf.mxu0
    %v1650 = vadd.f32 %v1630, %v1649
    %1651 = vdwg.mxu0
    %1652 = vmatpush.msra.mxu0 %v1564
    %1653 = vmatpush.msra.mxu0 %v1563
    %1654 = vmatpush.msra.mxu0 %v1562
    %1655 = vmatpush.msra.mxu0 %v1561
    %1656 = vmatpush.msra.mxu0 %v1560
    %1657 = vmatpush.msra.mxu0 %v1559
    %1658 = vmatpush.msra.mxu0 %v1558
    %1659 = vmatpush.msra.mxu0 %v1557
    %1660 = vmatpush.msra.mxu0 %v1556
    %1661 = vmatpush.msra.mxu0 %v1555
    %1662 = vmatpush.msra.mxu0 %v1554
    %1663 = vmatpush.msra.mxu0 %v1553
    %1664 = vmatpush.msra.mxu0 %v1552
    %1665 = vmatpush.msra.mxu0 %v1551
    %1666 = vmatpush.msra.mxu0 %v1550
    %1667 = vmatpush.msra.mxu0 %v1549
    %1668 = vmatmul.f32.gmra.mxu0 %v1499
    %v1669 = vpop.f32.mrf.mxu0
    %v1670 = vadd.f32 %v1650, %v1669
    %1671 = vdwg.mxu0
    %1672 = vmatpush.msra.mxu0 0.0
    %1673 = vmatpush.msra.mxu0 %v1590
    %1674 = vmatpush.msra.mxu0 %v1578
    %1675 = vmatpush.msra.mxu0 %v1577
    %1676 = vmatpush.msra.mxu0 %v1576
    %1677 = vmatpush.msra.mxu0 %v1575
    %1678 = vmatpush.msra.mxu0 %v1574
    %1679 = vmatpush.msra.mxu0 %v1573
    %1680 = vmatpush.msra.mxu0 %v1572
    %1681 = vmatpush.msra.mxu0 %v1571
    %1682 = vmatpush.msra.mxu0 %v1570
    %1683 = vmatpush.msra.mxu0 %v1569
    %1684 = vmatpush.msra.mxu0 %v1568
    %1685 = vmatpush.msra.mxu0 %v1567
    %1686 = vmatpush.msra.mxu0 %v1566
    %1687 = vmatpush.msra.mxu0 %v1565
    %1688 = vmatmul.f32.gmra.mxu0 %v1586
    %v1689 = vpop.f32.mrf.mxu0
    %v1690 = vadd.f32 %v1670, %v1689
    %1691 = vdwg.mxu0
    %vm1692 = vcmask 74752
    %1693 = vst.msk [vmem:[#allocation2] sm:$0x3] %vm1692, %v1690
    // Predicated region
    $region22: #{cnn_forward.5} parent=1 // pred_check
      _
    $region23: #{cnn_forward.5} parent=1 // pred_check_branch
      %1695 = sbr.rel (0) target = $region25
    $region24: #{cnn_forward.5} parent=1 // pred_region
      %1697 = vsyncadd [#allocation3], 0
      %s1699 = sshll.u32 [#allocation2], 4
      %s1700 = int_to_ptr.vmem [resolvable:$true] %s1699
      %s1701 = sshll.u32 %s5, 4
      %s1702 = int_to_ptr.hbm [resolvable:$true] %s1701
      %1704 = dma.vmem_to_hbm [thread:$0]  %s1700, 32, %s1702, [#allocation3]
    $region25: #{cnn_forward.5} parent=1 // pred_fallthru
      _
    // Predicated region
    $region26: #{cnn_forward.5} parent=1 // pred_check
      _
    $region27: #{cnn_forward.5} parent=1 // pred_check_branch
      %1706 = sbr.rel (0) target = $region29
    $region28: #{cnn_forward.5} parent=1 // pred_region
      %1708 = dma.done [#allocation3], 32
    $region29: #{cnn_forward.5} parent=1 // pred_fallthru
      _
    %1709 = vsyncpa [#allocation3], 1

</llo_original>
